<compile_context>
chip_gen: v7x
topology: tpu7x:2x2x1
jax: 0.10.0
libtpu: 0.0.40
codegen_flags: <defaults>
</compile_context>

<pallas_src>
import jax
import jax.numpy as jnp
from jax.experimental import pallas as pl
from jax.experimental.pallas import tpu as pltpu

EPS = 1e-5
LANE = 128                       # channel dims padded to this (lane width)
VMEM_LIMIT = 64 * 1024 * 1024    # scoped-VMEM budget (tiny working sets here)


# ----------------------------------------------------------------------------
# small helpers
# ----------------------------------------------------------------------------
def _round_up(x, m):
    return (x + m - 1) // m * m


def _pad_to(a, shape):
    pads = [(0, t - s) for s, t in zip(a.shape, shape)]
    return jnp.pad(a, pads)


def bn_fold(p):
    scale = p["gamma"] / jnp.sqrt(p["rvar"] + EPS)
    bias = p["beta"] - p["rmean"] * scale
    return scale, bias


def bn_fold_padded(p, c_pad):
    scale, bias = bn_fold(p)
    pad = c_pad - scale.shape[0]
    return (jnp.pad(scale, (0, pad)).reshape(1, c_pad),
            jnp.pad(bias, (0, pad)).reshape(1, c_pad))


# ----------------------------------------------------------------------------
# Kernel 1: row-tiled fused  (TP,K) @ (K,C)  ->  BN  ->  SiLU      (conv0)
# ----------------------------------------------------------------------------
def _matmul_bn_silu_kernel(x_ref, w_ref, scale_ref, bias_ref, o_ref):
    acc = jnp.dot(x_ref[...], w_ref[...], preferred_element_type=jnp.float32)
    y = acc * scale_ref[...] + bias_ref[...]
    o_ref[...] = (y * jax.nn.sigmoid(y)).astype(o_ref.dtype)


def matmul_bn_silu(x_bf16, w_bf16, scale, bias):
    P, K = x_bf16.shape
    C = w_bf16.shape[1]
    # Fixed row tile + cdiv grid: robust for any P (ragged last block is
    # padded by Pallas; the junk rows are dropped on the output write).
    TP = min(512, _round_up(P, 8))
    return pl.pallas_call(
        _matmul_bn_silu_kernel,
        out_shape=jax.ShapeDtypeStruct((P, C), jnp.bfloat16),
        grid=(pl.cdiv(P, TP),),
        in_specs=[
            pl.BlockSpec((TP, K), lambda i: (i, 0)),
            pl.BlockSpec((K, C), lambda i: (0, 0)),
            pl.BlockSpec((1, C), lambda i: (0, 0)),
            pl.BlockSpec((1, C), lambda i: (0, 0)),
        ],
        out_specs=pl.BlockSpec((TP, C), lambda i: (i, 0)),
        compiler_params=pltpu.CompilerParams(
            dimension_semantics=("parallel",),
            vmem_limit_bytes=VMEM_LIMIT),
    )(x_bf16, w_bf16, scale, bias)


# ----------------------------------------------------------------------------
# Kernel 2: fully fused ResUnit (one image per grid step)
#   1x1 conv + BN + SiLU  (h stays in VMEM)
#   -> bf16 flat halo scratch (pitch P = round_up(W+2, 8))
#   -> 3x3 conv as 9 contiguous slab matmuls, VALUE accumulation (f32)
#   -> BN + SiLU + residual epilogue
# ----------------------------------------------------------------------------
def _res_unit_kernel(x_ref, w1_ref, s1_ref, b1_ref, w2_ref, s2_ref, b2_ref,
                     o_ref, hs_ref):
    _, H, W, C_p = x_ref.shape
    Cmid = hs_ref.shape[-1]
    P = _round_up(W + 2, 8)          # sublane-aligned scratch row pitch

    # ---- 1x1 conv + BN1 + SiLU (no HBM round trip for h) -------------------
    xv = x_ref[0].reshape(H * W, C_p)                          # bf16
    h = jnp.dot(xv, w1_ref[...], preferred_element_type=jnp.float32)
    h = h * s1_ref[...] + b1_ref[...]
    h = (h * jax.nn.sigmoid(h)).astype(jnp.bfloat16)
    h3 = h.reshape(H, W, Cmid)

    # ---- fill the flat halo scratch -----------------------------------------
    # Only the top/bottom border row ranges are zeroed (every step: safe under
    # "parallel" grid sharding, and tiny); the interior store below carries its
    # own zero border columns, so the scratch is never fully re-zeroed.
    hs_ref[pl.ds(0, P), :] = jnp.zeros((P, Cmid), jnp.bfloat16)
    hs_ref[pl.ds((H + 1) * P, P + 8), :] = jnp.zeros((P + 8, Cmid), jnp.bfloat16)
    hp = jnp.concatenate(
        [jnp.zeros((H, 1, Cmid), jnp.bfloat16),                # left border col
         h3,
         jnp.zeros((H, P - W - 1, Cmid), jnp.bfloat16)],       # right border cols
        axis=1)
    # One contiguous, sublane-aligned store of the interior rows 1..H.
    hs_ref[pl.ds(P, H * P), :] = hp.reshape(H * P, Cmid)

    # ---- 3x3 conv: 9 contiguous slab matmuls, value accumulation -----------
    # Output pixel (i,j) lives at accumulator row i*P + j; tap (kh,kw) is the
    # contiguous scratch slice starting at flat row kh*P + kw.
    acc = jnp.zeros((H * P, C_p), jnp.float32)
    for kh in range(3):
        for kw in range(3):
            slab = hs_ref[pl.ds(kh * P + kw, H * P), :]        # bf16, contiguous
            acc = acc + jnp.dot(slab, w2_ref[kh * 3 + kw],
                                preferred_element_type=jnp.float32)

    # ---- BN2 + SiLU + residual ----------------------------------------------
    y = acc * s2_ref[...] + b2_ref[...]
    y = y * jax.nn.sigmoid(y)
    y = y.reshape(H, P, C_p)[:, :W, :]                         # drop junk cols
    out = y + x_ref[0].astype(jnp.float32)
    o_ref[...] = out.reshape(1, H, W, C_p).astype(o_ref.dtype)


def fused_res_unit(x, p1, p2):
    """ResUnit: SiLU(BN(1x1)) -> SiLU(BN(3x3)) -> + x, as one fused kernel."""
    N, H, W, C_p = x.shape
    Cmid = p1["w"].shape[0]
    Cmid_p = _round_up(Cmid, LANE)
    P = _round_up(W + 2, 8)
    # 1x1 weights: (Cmid, C, 1, 1) -> (C_p, Cmid_p), bf16.
    w1 = _pad_to(p1["w"][:, :, 0, 0].T, (C_p, Cmid_p)).astype(jnp.bfloat16)
    s1, b1 = bn_fold_padded(p1, Cmid_p)
    # 3x3 weights: (C, Cmid, 3, 3) -> HWIO -> (9, Cmid_p, C_p), bf16.
    w2 = _pad_to(jnp.transpose(p2["w"], (2, 3, 1, 0)), (3, 3, Cmid_p, C_p))
    w2 = w2.reshape(9, Cmid_p, C_p).astype(jnp.bfloat16)
    s2, b2 = bn_fold_padded(p2, C_p)
    return pl.pallas_call(
        _res_unit_kernel,
        out_shape=jax.ShapeDtypeStruct((N, H, W, C_p), jnp.bfloat16),
        grid=(N,),
        in_specs=[
            pl.BlockSpec((1, H, W, C_p), lambda n: (n, 0, 0, 0)),
            pl.BlockSpec((C_p, Cmid_p), lambda n: (0, 0)),
            pl.BlockSpec((1, Cmid_p), lambda n: (0, 0)),
            pl.BlockSpec((1, Cmid_p), lambda n: (0, 0)),
            pl.BlockSpec((9, Cmid_p, C_p), lambda n: (0, 0, 0)),
            pl.BlockSpec((1, C_p), lambda n: (0, 0)),
            pl.BlockSpec((1, C_p), lambda n: (0, 0)),
        ],
        out_specs=pl.BlockSpec((1, H, W, C_p), lambda n: (n, 0, 0, 0)),
        scratch_shapes=[
            # flat bf16 halo scratch; +8 rows so tap slabs never read OOB.
            pltpu.VMEM(((H + 2) * P + 8, Cmid_p), jnp.bfloat16),
        ],
        compiler_params=pltpu.CompilerParams(
            dimension_semantics=("parallel",),
            vmem_limit_bytes=VMEM_LIMIT),
    )(x, w1, s1, b1, w2, s2, b2)


# ----------------------------------------------------------------------------
# conv0: 3x3 stride-2 CBL as im2col-in-wrapper (9 taps packed into K) + matmul
# ----------------------------------------------------------------------------
def cbl_conv0_stride2(x_bf16, p):
    """CBLconv(in, out, 3, stride=2) on an un-padded-Cin NHWC bf16 input."""
    N, H, W, Cin = x_bf16.shape
    assert H % 2 == 0 and W % 2 == 0, "TODO(synk): odd spatial dims"
    Ho, Wo = H // 2, W // 2
    Cout = p["w"].shape[0]
    Cout_p = _round_up(Cout, LANE)
    # Pack the 9 taps into the contraction dim: K = 9*Cin (<< 9 * 128).
    xp = jnp.pad(x_bf16, ((0, 0), (1, 1), (1, 1), (0, 0)))
    patches = jnp.concatenate(
        [xp[:, kh:kh + H:2, kw:kw + W:2, :]
         for kh in range(3) for kw in range(3)], axis=-1)      # (N,Ho,Wo,9*Cin)
    K = 9 * Cin
    K_p = _round_up(K, LANE)
    patches = _pad_to(patches, (N, Ho, Wo, K_p)).reshape(N * Ho * Wo, K_p)
    w = jnp.transpose(p["w"], (2, 3, 1, 0)).reshape(K, Cout)   # (kh,kw,c) major
    w = _pad_to(w, (K_p, Cout_p)).astype(jnp.bfloat16)
    scale, bias = bn_fold_padded(p, Cout_p)
    y = matmul_bn_silu(patches, w, scale, bias)
    return y.reshape(N, Ho, Wo, Cout_p)


# ----------------------------------------------------------------------------
# Parameter init (deterministic, synthetic)
# ----------------------------------------------------------------------------
def init_cbl_params(key, cin, cout, ksize):
    kw_, kg, kb, km, kv = jax.random.split(key, 5)
    fan_in = cin * ksize * ksize
    return dict(
        w=jax.random.normal(kw_, (cout, cin, ksize, ksize), jnp.float32)
        / jnp.sqrt(float(fan_in)),
        gamma=1.0 + 0.1 * jax.random.normal(kg, (cout,), jnp.float32),
        beta=0.1 * jax.random.normal(kb, (cout,), jnp.float32),
        rmean=0.1 * jax.random.normal(km, (cout,), jnp.float32),
        rvar=jax.random.uniform(kv, (cout,), jnp.float32, minval=0.5, maxval=1.5),
    )


def init_res_block(key, cin, cout, nums):
    keys = jax.random.split(key, 1 + 2 * nums)
    conv0 = init_cbl_params(keys[0], cin, cout, 3)
    res = []
    for i in range(nums):
        p1 = init_cbl_params(keys[1 + 2 * i], cout, cout // 2, 1)
        p2 = init_cbl_params(keys[2 + 2 * i], cout // 2, cout, 3)
        res.append((p1, p2))
    return dict(conv0=conv0, res=res)


# ----------------------------------------------------------------------------
# Forward pass (glue in JAX, hot paths in Pallas); bf16 activations throughout
# ----------------------------------------------------------------------------
def res_block_forward(x_nchw, params):
    cout = params["conv0"]["w"].shape[0]
    x = jnp.transpose(x_nchw, (0, 2, 3, 1)).astype(jnp.bfloat16)   # NCHW->NHWC
    x = cbl_conv0_stride2(x, params["conv0"])                      # bf16, C padded
    for p1, p2 in params["res"]:
        x = fused_res_unit(x, p1, p2)                              # bf16, C padded
    x = x[..., :cout].astype(jnp.float32)                          # drop lane pad
    return jnp.transpose(x, (0, 3, 1, 2))                          # NHWC -> NCHW


# ----------------------------------------------------------------------------
# Pure-JAX reference (f32 lax.conv) for the correctness check
# ----------------------------------------------------------------------------
def _ref_cbl(x_nhwc, p, ksize, stride):
    w = jnp.transpose(p["w"], (2, 3, 1, 0))                        # HWIO
    pad = ksize // 2
    y = jax.lax.conv_general_dilated(
        x_nhwc, w, (stride, stride), [(pad, pad), (pad, pad)],
        dimension_numbers=("NHWC", "HWIO", "NHWC"))
    scale, bias = bn_fold(p)
    y = y * scale.reshape(1, 1, 1, -1) + bias.reshape(1, 1, 1, -1)
    return y * jax.nn.sigmoid(y)


def ref_res_block(x_nchw, params):
    x = jnp.transpose(x_nchw, (0, 2, 3, 1))
    x = _ref_cbl(x, params["conv0"], 3, 2)
    for p1, p2 in params["res"]:
        h = _ref_cbl(x, p1, 1, 1)
        h = _ref_cbl(h, p2, 3, 1)
        x = x + h
    return jnp.transpose(x, (0, 3, 1, 2))


if __name__ == "__main__":
    key = jax.random.PRNGKey(0)
    kx, kp = jax.random.split(key)

    N, Cin, H, W = 2, 4, 16, 16
    Cout, nums = 8, 2

    x = jax.random.normal(kx, (N, Cin, H, W), jnp.float32)    # NCHW, like PyTorch
    params = init_res_block(kp, Cin, Cout, nums)

    out = jax.jit(res_block_forward)(x, params)
    out = jax.block_until_ready(out)

    assert out.shape == (N, Cout, H // 2, W // 2), out.shape

    ref = ref_res_block(x, params)
    err = float(jnp.max(jnp.abs(out - ref)))
    # bf16 MXU operands AND bf16 inter-kernel activations (f32 accumulation /
    # f32 epilogue in-kernel) -> relaxed tolerance vs. the pure-f32 reference.
    assert jnp.allclose(out, ref, rtol=5e-2, atol=5e-2), err

    print("KERNEL_OK")
</pallas_src>

<mosaic_0001>
module attributes {stable_mosaic.version = 11 : i64} {
  func.func @_matmul_bn_silu_kernel(%arg0: i32, %arg1: memref<128x128xbf16, #tpu.memory_space<vmem>>, %arg2: memref<128x128xbf16, #tpu.memory_space<vmem>>, %arg3: memref<1x128xf32, #tpu.memory_space<vmem>>, %arg4: memref<1x128xf32, #tpu.memory_space<vmem>>, %arg5: memref<128x128xbf16, #tpu.memory_space<vmem>>) attributes {dimension_semantics = [#tpu.dimension_semantics<parallel>], iteration_bounds = array<i64: 1>, scalar_prefetch = 0 : i64, scratch_operands = 0 : i64, tpu.core_type = #tpu.core_type<tc>, window_params = [{transform_indices = @transform_0, window_bounds = array<i64: 128, 128>}, {pipeline_mode = #tpu.pipeline_mode<synchronous>, transform_indices = @transform_1, window_bounds = array<i64: 128, 128>}, {pipeline_mode = #tpu.pipeline_mode<synchronous>, transform_indices = @transform_2, window_bounds = array<i64: 1, 128>}, {pipeline_mode = #tpu.pipeline_mode<synchronous>, transform_indices = @transform_3, window_bounds = array<i64: 1, 128>}, {transform_indices = @transform_4, window_bounds = array<i64: 128, 128>}]} {
    %c0 = arith.constant 0 : index
    %c0_0 = arith.constant 0 : index
    %0 = vector.load %arg1[%c0, %c0_0] : memref<128x128xbf16, #tpu.memory_space<vmem>>, vector<128x128xbf16>
    %c0_1 = arith.constant 0 : index
    %c0_2 = arith.constant 0 : index
    %1 = vector.load %arg2[%c0_1, %c0_2] : memref<128x128xbf16, #tpu.memory_space<vmem>>, vector<128x128xbf16>
    %cst = arith.constant dense<0.000000e+00> : vector<128x128xf32>
    %2 = tpu.matmul %0, %1, %cst {dimension_numbers = #tpu.dot_dimension_numbers<[1], [0], [0], [1], [0, 0, 1, 1], [], []>} : vector<128x128xbf16>, vector<128x128xbf16>, vector<128x128xf32> -> vector<128x128xf32>
    %c0_3 = arith.constant 0 : index
    %c0_4 = arith.constant 0 : index
    %3 = vector.load %arg3[%c0_3, %c0_4] : memref<1x128xf32, #tpu.memory_space<vmem>>, vector<1x128xf32>
    %4 = vector.broadcast %3 : vector<1x128xf32> to vector<128x128xf32>
    %5 = arith.mulf %2, %4 : vector<128x128xf32>
    %c0_5 = arith.constant 0 : index
    %c0_6 = arith.constant 0 : index
    %6 = vector.load %arg4[%c0_5, %c0_6] : memref<1x128xf32, #tpu.memory_space<vmem>>, vector<1x128xf32>
    %7 = vector.broadcast %6 : vector<1x128xf32> to vector<128x128xf32>
    %8 = arith.addf %5, %7 : vector<128x128xf32>
    %9 = arith.negf %8 : vector<128x128xf32>
    %10 = math.exp %9 : vector<128x128xf32>
    %cst_7 = arith.constant 1.000000e+00 : f32
    %11 = vector.broadcast %cst_7 : f32 to vector<128x128xf32>
    %12 = arith.addf %11, %10 : vector<128x128xf32>
    %13 = arith.divf %11, %12 : vector<128x128xf32>
    %14 = arith.mulf %8, %13 : vector<128x128xf32>
    %15 = arith.truncf %14 : vector<128x128xf32> to vector<128x128xbf16>
    %c0_8 = arith.constant 0 : index
    %c0_9 = arith.constant 0 : index
    %16 = vector.load %arg5[%c0_8, %c0_9] : memref<128x128xbf16, #tpu.memory_space<vmem>>, vector<128x128xbf16>
    tpu.vector_store %arg5[%c0_8, %c0_9], %15 {strides = array<i32>} : memref<128x128xbf16, #tpu.memory_space<vmem>>, vector<128x128xbf16>,
    return
  }
  func.func @transform_0(%arg0: i32) -> (i32, i32) {
    %c0_i32 = arith.constant 0 : i32
    %c0_i32_0 = arith.constant 0 : i32
    return %arg0, %c0_i32 : i32, i32
  }
  func.func @transform_1(%arg0: i32) -> (i32, i32) {
    %c0_i32 = arith.constant 0 : i32
    %c0_i32_0 = arith.constant 0 : i32
    %c0_i32_1 = arith.constant 0 : i32
    return %c0_i32, %c0_i32_0 : i32, i32
  }
  func.func @transform_2(%arg0: i32) -> (i32, i32) {
    %c0_i32 = arith.constant 0 : i32
    %c0_i32_0 = arith.constant 0 : i32
    %c0_i32_1 = arith.constant 0 : i32
    return %c0_i32, %c0_i32_0 : i32, i32
  }
  func.func @transform_3(%arg0: i32) -> (i32, i32) {
    %c0_i32 = arith.constant 0 : i32
    %c0_i32_0 = arith.constant 0 : i32
    %c0_i32_1 = arith.constant 0 : i32
    return %c0_i32, %c0_i32_0 : i32, i32
  }
  func.func @transform_4(%arg0: i32) -> (i32, i32) {
    %c0_i32 = arith.constant 0 : i32
    %c0_i32_0 = arith.constant 0 : i32
    return %arg0, %c0_i32 : i32, i32
  }
}

module attributes {stable_mosaic.version = 11 : i64} {
  func.func @_res_unit_kernel(%arg0: i32, %arg1: memref<1x8x8x128xbf16, #tpu.memory_space<vmem>>, %arg2: memref<128x128xbf16, #tpu.memory_space<vmem>>, %arg3: memref<1x128xf32, #tpu.memory_space<vmem>>, %arg4: memref<1x128xf32, #tpu.memory_space<vmem>>, %arg5: memref<9x128x128xbf16, #tpu.memory_space<vmem>>, %arg6: memref<1x128xf32, #tpu.memory_space<vmem>>, %arg7: memref<1x128xf32, #tpu.memory_space<vmem>>, %arg8: memref<1x8x8x128xbf16, #tpu.memory_space<vmem>>, %arg9: memref<168x128xbf16, #tpu.memory_space<vmem>>) attributes {dimension_semantics = [#tpu.dimension_semantics<parallel>], iteration_bounds = array<i64: 2>, scalar_prefetch = 0 : i64, scratch_operands = 1 : i64, tpu.core_type = #tpu.core_type<tc>, window_params = [{transform_indices = @transform_0, window_bounds = array<i64: 1, 8, 8, 128>}, {pipeline_mode = #tpu.pipeline_mode<synchronous>, transform_indices = @transform_1, window_bounds = array<i64: 128, 128>}, {pipeline_mode = #tpu.pipeline_mode<synchronous>, transform_indices = @transform_2, window_bounds = array<i64: 1, 128>}, {pipeline_mode = #tpu.pipeline_mode<synchronous>, transform_indices = @transform_3, window_bounds = array<i64: 1, 128>}, {pipeline_mode = #tpu.pipeline_mode<synchronous>, transform_indices = @transform_4, window_bounds = array<i64: 9, 128, 128>}, {pipeline_mode = #tpu.pipeline_mode<synchronous>, transform_indices = @transform_5, window_bounds = array<i64: 1, 128>}, {pipeline_mode = #tpu.pipeline_mode<synchronous>, transform_indices = @transform_6, window_bounds = array<i64: 1, 128>}, {transform_indices = @transform_7, window_bounds = array<i64: 1, 8, 8, 128>}]} {
    %c0 = arith.constant 0 : index
    %c0_0 = arith.constant 0 : index
    %c0_1 = arith.constant 0 : index
    %c0_2 = arith.constant 0 : index
    %0 = vector.load %arg1[%c0, %c0_0, %c0_1, %c0_2] : memref<1x8x8x128xbf16, #tpu.memory_space<vmem>>, vector<1x8x8x128xbf16>
    %1 = vector.shape_cast %0 : vector<1x8x8x128xbf16> to vector<8x8x128xbf16>
    %2 = vector.shape_cast %1 : vector<8x8x128xbf16> to vector<64x128xbf16>
    %c0_3 = arith.constant 0 : index
    %c0_4 = arith.constant 0 : index
    %3 = vector.load %arg2[%c0_3, %c0_4] : memref<128x128xbf16, #tpu.memory_space<vmem>>, vector<128x128xbf16>
    %cst = arith.constant dense<0.000000e+00> : vector<64x128xf32>
    %4 = tpu.matmul %2, %3, %cst {dimension_numbers = #tpu.dot_dimension_numbers<[1], [0], [0], [1], [0, 0, 1, 1], [], []>} : vector<64x128xbf16>, vector<128x128xbf16>, vector<64x128xf32> -> vector<64x128xf32>
    %c0_5 = arith.constant 0 : index
    %c0_6 = arith.constant 0 : index
    %5 = vector.load %arg3[%c0_5, %c0_6] : memref<1x128xf32, #tpu.memory_space<vmem>>, vector<1x128xf32>
    %6 = vector.broadcast %5 : vector<1x128xf32> to vector<64x128xf32>
    %7 = arith.mulf %4, %6 : vector<64x128xf32>
    %c0_7 = arith.constant 0 : index
    %c0_8 = arith.constant 0 : index
    %8 = vector.load %arg4[%c0_7, %c0_8] : memref<1x128xf32, #tpu.memory_space<vmem>>, vector<1x128xf32>
    %9 = vector.broadcast %8 : vector<1x128xf32> to vector<64x128xf32>
    %10 = arith.addf %7, %9 : vector<64x128xf32>
    %11 = arith.negf %10 : vector<64x128xf32>
    %12 = math.exp %11 : vector<64x128xf32>
    %cst_9 = arith.constant 1.000000e+00 : f32
    %13 = vector.broadcast %cst_9 : f32 to vector<64x128xf32>
    %14 = arith.addf %13, %12 : vector<64x128xf32>
    %15 = arith.divf %13, %14 : vector<64x128xf32>
    %16 = arith.mulf %10, %15 : vector<64x128xf32>
    %17 = arith.truncf %16 : vector<64x128xf32> to vector<64x128xbf16>
    %18 = vector.shape_cast %17 : vector<64x128xbf16> to vector<8x8x128xbf16>
    %cst_10 = arith.constant 0.000000e+00 : bf16
    %19 = vector.broadcast %cst_10 : bf16 to vector<16x128xbf16>
    %c0_11 = arith.constant 0 : index
    %c0_12 = arith.constant 0 : index
    %20 = vector.load %arg9[%c0_11, %c0_12] : memref<168x128xbf16, #tpu.memory_space<vmem>>, vector<16x128xbf16>
    tpu.vector_store %arg9[%c0_11, %c0_12], %19 {strides = array<i32>} : memref<168x128xbf16, #tpu.memory_space<vmem>>, vector<16x128xbf16>,
    %cst_13 = arith.constant 0.000000e+00 : bf16
    %21 = vector.broadcast %cst_13 : bf16 to vector<24x128xbf16>
    %c144 = arith.constant 144 : index
    %c0_14 = arith.constant 0 : index
    %22 = vector.load %arg9[%c144, %c0_14] : memref<168x128xbf16, #tpu.memory_space<vmem>>, vector<24x128xbf16>
    tpu.vector_store %arg9[%c144, %c0_14], %21 {strides = array<i32>} : memref<168x128xbf16, #tpu.memory_space<vmem>>, vector<24x128xbf16>,
    %cst_15 = arith.constant 0.000000e+00 : bf16
    %23 = vector.broadcast %cst_15 : bf16 to vector<8x1x128xbf16>
    %cst_16 = arith.constant 0.000000e+00 : bf16
    %24 = vector.broadcast %cst_16 : bf16 to vector<8x7x128xbf16>
    %25 = tpu.concatenate %23, %18, %24 in 1 : vector<8x1x128xbf16>, vector<8x8x128xbf16>, vector<8x7x128xbf16> -> vector<8x16x128xbf16>
    %26 = vector.shape_cast %25 : vector<8x16x128xbf16> to vector<128x128xbf16>
    %c16 = arith.constant 16 : index
    %c0_17 = arith.constant 0 : index
    %27 = vector.load %arg9[%c16, %c0_17] : memref<168x128xbf16, #tpu.memory_space<vmem>>, vector<128x128xbf16>
    tpu.vector_store %arg9[%c16, %c0_17], %26 {strides = array<i32>} : memref<168x128xbf16, #tpu.memory_space<vmem>>, vector<128x128xbf16>,
    %cst_18 = arith.constant 0.000000e+00 : f32
    %28 = vector.broadcast %cst_18 : f32 to vector<128x128xf32>
    %c0_19 = arith.constant 0 : index
    %c0_20 = arith.constant 0 : index
    %29 = vector.load %arg9[%c0_19, %c0_20] : memref<168x128xbf16, #tpu.memory_space<vmem>>, vector<128x128xbf16>
    %c0_21 = arith.constant 0 : index
    %c0_22 = arith.constant 0 : index
    %c0_23 = arith.constant 0 : index
    %30 = vector.load %arg5[%c0_21, %c0_22, %c0_23] : memref<9x128x128xbf16, #tpu.memory_space<vmem>>, vector<1x128x128xbf16>
    %31 = vector.shape_cast %30 : vector<1x128x128xbf16> to vector<128x128xbf16>
    %cst_24 = arith.constant dense<0.000000e+00> : vector<128x128xf32>
    %32 = tpu.matmul %29, %31, %cst_24 {dimension_numbers = #tpu.dot_dimension_numbers<[1], [0], [0], [1], [0, 0, 1, 1], [], []>} : vector<128x128xbf16>, vector<128x128xbf16>, vector<128x128xf32> -> vector<128x128xf32>
    %33 = arith.addf %28, %32 : vector<128x128xf32>
    %c1 = arith.constant 1 : index
    %c0_25 = arith.constant 0 : index
    %34 = vector.load %arg9[%c1, %c0_25] : memref<168x128xbf16, #tpu.memory_space<vmem>>, vector<128x128xbf16>
    %c1_26 = arith.constant 1 : index
    %c0_27 = arith.constant 0 : index
    %c0_28 = arith.constant 0 : index
    %35 = vector.load %arg5[%c1_26, %c0_27, %c0_28] : memref<9x128x128xbf16, #tpu.memory_space<vmem>>, vector<1x128x128xbf16>
    %36 = vector.shape_cast %35 : vector<1x128x128xbf16> to vector<128x128xbf16>
    %cst_29 = arith.constant dense<0.000000e+00> : vector<128x128xf32>
    %37 = tpu.matmul %34, %36, %cst_29 {dimension_numbers = #tpu.dot_dimension_numbers<[1], [0], [0], [1], [0, 0, 1, 1], [], []>} : vector<128x128xbf16>, vector<128x128xbf16>, vector<128x128xf32> -> vector<128x128xf32>
    %38 = arith.addf %33, %37 : vector<128x128xf32>
    %c2 = arith.constant 2 : index
    %c0_30 = arith.constant 0 : index
    %39 = vector.load %arg9[%c2, %c0_30] : memref<168x128xbf16, #tpu.memory_space<vmem>>, vector<128x128xbf16>
    %c2_31 = arith.constant 2 : index
    %c0_32 = arith.constant 0 : index
    %c0_33 = arith.constant 0 : index
    %40 = vector.load %arg5[%c2_31, %c0_32, %c0_33] : memref<9x128x128xbf16, #tpu.memory_space<vmem>>, vector<1x128x128xbf16>
    %41 = vector.shape_cast %40 : vector<1x128x128xbf16> to vector<128x128xbf16>
    %cst_34 = arith.constant dense<0.000000e+00> : vector<128x128xf32>
    %42 = tpu.matmul %39, %41, %cst_34 {dimension_numbers = #tpu.dot_dimension_numbers<[1], [0], [0], [1], [0, 0, 1, 1], [], []>} : vector<128x128xbf16>, vector<128x128xbf16>, vector<128x128xf32> -> vector<128x128xf32>
    %43 = arith.addf %38, %42 : vector<128x128xf32>
    %c16_35 = arith.constant 16 : index
    %c0_36 = arith.constant 0 : index
    %44 = vector.load %arg9[%c16_35, %c0_36] : memref<168x128xbf16, #tpu.memory_space<vmem>>, vector<128x128xbf16>
    %c3 = arith.constant 3 : index
    %c0_37 = arith.constant 0 : index
    %c0_38 = arith.constant 0 : index
    %45 = vector.load %arg5[%c3, %c0_37, %c0_38] : memref<9x128x128xbf16, #tpu.memory_space<vmem>>, vector<1x128x128xbf16>
    %46 = vector.shape_cast %45 : vector<1x128x128xbf16> to vector<128x128xbf16>
    %cst_39 = arith.constant dense<0.000000e+00> : vector<128x128xf32>
    %47 = tpu.matmul %44, %46, %cst_39 {dimension_numbers = #tpu.dot_dimension_numbers<[1], [0], [0], [1], [0, 0, 1, 1], [], []>} : vector<128x128xbf16>, vector<128x128xbf16>, vector<128x128xf32> -> vector<128x128xf32>
    %48 = arith.addf %43, %47 : vector<128x128xf32>
    %c17 = arith.constant 17 : index
    %c0_40 = arith.constant 0 : index
    %49 = vector.load %arg9[%c17, %c0_40] : memref<168x128xbf16, #tpu.memory_space<vmem>>, vector<128x128xbf16>
    %c4 = arith.constant 4 : index
    %c0_41 = arith.constant 0 : index
    %c0_42 = arith.constant 0 : index
    %50 = vector.load %arg5[%c4, %c0_41, %c0_42] : memref<9x128x128xbf16, #tpu.memory_space<vmem>>, vector<1x128x128xbf16>
    %51 = vector.shape_cast %50 : vector<1x128x128xbf16> to vector<128x128xbf16>
    %cst_43 = arith.constant dense<0.000000e+00> : vector<128x128xf32>
    %52 = tpu.matmul %49, %51, %cst_43 {dimension_numbers = #tpu.dot_dimension_numbers<[1], [0], [0], [1], [0, 0, 1, 1], [], []>} : vector<128x128xbf16>, vector<128x128xbf16>, vector<128x128xf32> -> vector<128x128xf32>
    %53 = arith.addf %48, %52 : vector<128x128xf32>
    %c18 = arith.constant 18 : index
    %c0_44 = arith.constant 0 : index
    %54 = vector.load %arg9[%c18, %c0_44] : memref<168x128xbf16, #tpu.memory_space<vmem>>, vector<128x128xbf16>
    %c5 = arith.constant 5 : index
    %c0_45 = arith.constant 0 : index
    %c0_46 = arith.constant 0 : index
    %55 = vector.load %arg5[%c5, %c0_45, %c0_46] : memref<9x128x128xbf16, #tpu.memory_space<vmem>>, vector<1x128x128xbf16>
    %56 = vector.shape_cast %55 : vector<1x128x128xbf16> to vector<128x128xbf16>
    %cst_47 = arith.constant dense<0.000000e+00> : vector<128x128xf32>
    %57 = tpu.matmul %54, %56, %cst_47 {dimension_numbers = #tpu.dot_dimension_numbers<[1], [0], [0], [1], [0, 0, 1, 1], [], []>} : vector<128x128xbf16>, vector<128x128xbf16>, vector<128x128xf32> -> vector<128x128xf32>
    %58 = arith.addf %53, %57 : vector<128x128xf32>
    %c32 = arith.constant 32 : index
    %c0_48 = arith.constant 0 : index
    %59 = vector.load %arg9[%c32, %c0_48] : memref<168x128xbf16, #tpu.memory_space<vmem>>, vector<128x128xbf16>
    %c6 = arith.constant 6 : index
    %c0_49 = arith.constant 0 : index
    %c0_50 = arith.constant 0 : index
    %60 = vector.load %arg5[%c6, %c0_49, %c0_50] : memref<9x128x128xbf16, #tpu.memory_space<vmem>>, vector<1x128x128xbf16>
    %61 = vector.shape_cast %60 : vector<1x128x128xbf16> to vector<128x128xbf16>
    %cst_51 = arith.constant dense<0.000000e+00> : vector<128x128xf32>
    %62 = tpu.matmul %59, %61, %cst_51 {dimension_numbers = #tpu.dot_dimension_numbers<[1], [0], [0], [1], [0, 0, 1, 1], [], []>} : vector<128x128xbf16>, vector<128x128xbf16>, vector<128x128xf32> -> vector<128x128xf32>
    %63 = arith.addf %58, %62 : vector<128x128xf32>
    %c33 = arith.constant 33 : index
    %c0_52 = arith.constant 0 : index
    %64 = vector.load %arg9[%c33, %c0_52] : memref<168x128xbf16, #tpu.memory_space<vmem>>, vector<128x128xbf16>
    %c7 = arith.constant 7 : index
    %c0_53 = arith.constant 0 : index
    %c0_54 = arith.constant 0 : index
    %65 = vector.load %arg5[%c7, %c0_53, %c0_54] : memref<9x128x128xbf16, #tpu.memory_space<vmem>>, vector<1x128x128xbf16>
    %66 = vector.shape_cast %65 : vector<1x128x128xbf16> to vector<128x128xbf16>
    %cst_55 = arith.constant dense<0.000000e+00> : vector<128x128xf32>
    %67 = tpu.matmul %64, %66, %cst_55 {dimension_numbers = #tpu.dot_dimension_numbers<[1], [0], [0], [1], [0, 0, 1, 1], [], []>} : vector<128x128xbf16>, vector<128x128xbf16>, vector<128x128xf32> -> vector<128x128xf32>
    %68 = arith.addf %63, %67 : vector<128x128xf32>
    %c34 = arith.constant 34 : index
    %c0_56 = arith.constant 0 : index
    %69 = vector.load %arg9[%c34, %c0_56] : memref<168x128xbf16, #tpu.memory_space<vmem>>, vector<128x128xbf16>
    %c8 = arith.constant 8 : index
    %c0_57 = arith.constant 0 : index
    %c0_58 = arith.constant 0 : index
    %70 = vector.load %arg5[%c8, %c0_57, %c0_58] : memref<9x128x128xbf16, #tpu.memory_space<vmem>>, vector<1x128x128xbf16>
    %71 = vector.shape_cast %70 : vector<1x128x128xbf16> to vector<128x128xbf16>
    %cst_59 = arith.constant dense<0.000000e+00> : vector<128x128xf32>
    %72 = tpu.matmul %69, %71, %cst_59 {dimension_numbers = #tpu.dot_dimension_numbers<[1], [0], [0], [1], [0, 0, 1, 1], [], []>} : vector<128x128xbf16>, vector<128x128xbf16>, vector<128x128xf32> -> vector<128x128xf32>
    %73 = arith.addf %68, %72 : vector<128x128xf32>
    %c0_60 = arith.constant 0 : index
    %c0_61 = arith.constant 0 : index
    %74 = vector.load %arg6[%c0_60, %c0_61] : memref<1x128xf32, #tpu.memory_space<vmem>>, vector<1x128xf32>
    %75 = vector.broadcast %74 : vector<1x128xf32> to vector<128x128xf32>
    %76 = arith.mulf %73, %75 : vector<128x128xf32>
    %c0_62 = arith.constant 0 : index
    %c0_63 = arith.constant 0 : index
    %77 = vector.load %arg7[%c0_62, %c0_63] : memref<1x128xf32, #tpu.memory_space<vmem>>, vector<1x128xf32>
    %78 = vector.broadcast %77 : vector<1x128xf32> to vector<128x128xf32>
    %79 = arith.addf %76, %78 : vector<128x128xf32>
    %80 = arith.negf %79 : vector<128x128xf32>
    %81 = math.exp %80 : vector<128x128xf32>
    %cst_64 = arith.constant 1.000000e+00 : f32
    %82 = vector.broadcast %cst_64 : f32 to vector<128x128xf32>
    %83 = arith.addf %82, %81 : vector<128x128xf32>
    %84 = arith.divf %82, %83 : vector<128x128xf32>
    %85 = arith.mulf %79, %84 : vector<128x128xf32>
    %86 = vector.shape_cast %85 : vector<128x128xf32> to vector<8x16x128xf32>
    %87 = vector.extract_strided_slice %86 {offsets = [0, 0, 0], sizes = [8, 8, 128], strides = [1, 1, 1]} : vector<8x16x128xf32> to vector<8x8x128xf32>
    %c0_65 = arith.constant 0 : index
    %c0_66 = arith.constant 0 : index
    %c0_67 = arith.constant 0 : index
    %c0_68 = arith.constant 0 : index
    %88 = vector.load %arg1[%c0_65, %c0_66, %c0_67, %c0_68] : memref<1x8x8x128xbf16, #tpu.memory_space<vmem>>, vector<1x8x8x128xbf16>
    %89 = vector.shape_cast %88 : vector<1x8x8x128xbf16> to vector<8x8x128xbf16>
    %90 = arith.extf %89 : vector<8x8x128xbf16> to vector<8x8x128xf32>
    %91 = arith.addf %87, %90 : vector<8x8x128xf32>
    %92 = vector.shape_cast %91 : vector<8x8x128xf32> to vector<1x8x8x128xf32>
    %93 = arith.truncf %92 : vector<1x8x8x128xf32> to vector<1x8x8x128xbf16>
    %c0_69 = arith.constant 0 : index
    %c0_70 = arith.constant 0 : index
    %c0_71 = arith.constant 0 : index
    %c0_72 = arith.constant 0 : index
    %94 = vector.load %arg8[%c0_69, %c0_70, %c0_71, %c0_72] : memref<1x8x8x128xbf16, #tpu.memory_space<vmem>>, vector<1x8x8x128xbf16>
    tpu.vector_store %arg8[%c0_69, %c0_70, %c0_71, %c0_72], %93 {strides = array<i32>} : memref<1x8x8x128xbf16, #tpu.memory_space<vmem>>, vector<1x8x8x128xbf16>,
    return
  }
  func.func @transform_0(%arg0: i32) -> (i32, i32, i32, i32) {
    %c0_i32 = arith.constant 0 : i32
    %c0_i32_0 = arith.constant 0 : i32
    %c0_i32_1 = arith.constant 0 : i32
    %c0_i32_2 = arith.constant 0 : i32
    return %arg0, %c0_i32, %c0_i32_0, %c0_i32_1 : i32, i32, i32, i32
  }
  func.func @transform_1(%arg0: i32) -> (i32, i32) {
    %c0_i32 = arith.constant 0 : i32
    %c0_i32_0 = arith.constant 0 : i32
    %c0_i32_1 = arith.constant 0 : i32
    return %c0_i32, %c0_i32_0 : i32, i32
  }
  func.func @transform_2(%arg0: i32) -> (i32, i32) {
    %c0_i32 = arith.constant 0 : i32
    %c0_i32_0 = arith.constant 0 : i32
    %c0_i32_1 = arith.constant 0 : i32
    return %c0_i32, %c0_i32_0 : i32, i32
  }
  func.func @transform_3(%arg0: i32) -> (i32, i32) {
    %c0_i32 = arith.constant 0 : i32
    %c0_i32_0 = arith.constant 0 : i32
    %c0_i32_1 = arith.constant 0 : i32
    return %c0_i32, %c0_i32_0 : i32, i32
  }
  func.func @transform_4(%arg0: i32) -> (i32, i32, i32) {
    %c0_i32 = arith.constant 0 : i32
    %c0_i32_0 = arith.constant 0 : i32
    %c0_i32_1 = arith.constant 0 : i32
    %c0_i32_2 = arith.constant 0 : i32
    return %c0_i32, %c0_i32_0, %c0_i32_1 : i32, i32, i32
  }
  func.func @transform_5(%arg0: i32) -> (i32, i32) {
    %c0_i32 = arith.constant 0 : i32
    %c0_i32_0 = arith.constant 0 : i32
    %c0_i32_1 = arith.constant 0 : i32
    return %c0_i32, %c0_i32_0 : i32, i32
  }
  func.func @transform_6(%arg0: i32) -> (i32, i32) {
    %c0_i32 = arith.constant 0 : i32
    %c0_i32_0 = arith.constant 0 : i32
    %c0_i32_1 = arith.constant 0 : i32
    return %c0_i32, %c0_i32_0 : i32, i32
  }
  func.func @transform_7(%arg0: i32) -> (i32, i32, i32, i32) {
    %c0_i32 = arith.constant 0 : i32
    %c0_i32_0 = arith.constant 0 : i32
    %c0_i32_1 = arith.constant 0 : i32
    %c0_i32_2 = arith.constant 0 : i32
    return %arg0, %c0_i32, %c0_i32_0, %c0_i32_1 : i32, i32, i32, i32
  }
}

</mosaic_0001>

<llo_original>
// kernel: res_block_forward.3
$region0: #{res_block_forward.3}
  #allocation0 [shape = 'u32[]', space=smem, size = 0x4, offset = 0x4, fixed_abs, tag = 'smem constant byte address 0x4 - core index']
  #allocation1 [shape = 'u32[144,128]{1,0:T(1,128)}', space=vmem, size = 0x12000, scoped, tag = 'internal scratch']
  %s0 = inlined_call_operand.hbm [shape: bf16[128,128], index: 0, kind: input, shape index: {}]
  %s1 = inlined_call_operand.hbm [shape: bf16[128,128], index: 1, kind: input, shape index: {}]
  %s2 = inlined_call_operand.hbm [shape: f32[1,128], index: 2, kind: input, shape index: {}]
  %s3 = inlined_call_operand.hbm [shape: f32[1,128], index: 3, kind: input, shape index: {}]
  %s4 = inlined_call_operand.hbm [shape: bf16[128,128], index: 4, kind: output, shape index: {}]
  %s5 = sld [smem:[#allocation0]]
  $region42: #{res_block_forward.3} parent=0
    _
  %s7 = ssub.s32 1, %s5
  %s8 = scalar_select 0, %s7, %s5
  $region1: #{res_block_forward.3} parent=0
    #allocation2 [shape = 'u8[32768]{0}', space=vmem, size = 0x8000, scoped, tag = 'input window, operand 0, single buffered']
    #allocation3 [shape = 's32[1]{0}', space=sflag, size = 0x4, scoped, tag = 'scoped memory for res_block_forward.3']
    #allocation4 [shape = 's32[1]{0}', space=sflag, size = 0x4, scoped, tag = 'scoped memory for res_block_forward.3']
    #allocation5 [shape = 'u8[32768]{0}', space=vmem, size = 0x8000, scoped, tag = 'input window, operand 1, single buffered']
    #allocation6 [shape = 's32[1]{0}', space=sflag, size = 0x4, scoped, tag = 'scoped memory for res_block_forward.3']
    #allocation7 [shape = 'u8[512]{0}', space=vmem, size = 0x400, scoped, tag = 'input window, operand 2, single buffered']
    #allocation8 [shape = 'u8[512]{0}', space=vmem, size = 0x400, scoped, tag = 'input window, operand 3, single buffered']
    #allocation9 [shape = 's32[1]{0}', space=sflag, size = 0x4, scoped, tag = 'scoped memory for res_block_forward.3']
    #allocation10 [shape = 'u8[32768]{0}', space=vmem, size = 0x8000, scoped, tag = 'output window, operand 0, single buffered']
    %9 = vsyncpa [#allocation3], 0
    %10 = vsyncpa [#allocation6], 0
    %11 = vsyncpa [#allocation9], 0
    %12 = vsyncpa [#allocation4], 0
    // Predicated region
    $region2: #{res_block_forward.3} parent=1 // pred_check
      _
    $region3: #{res_block_forward.3} parent=1 // pred_check_branch
      %14 = sbr.rel (0) target = $region5
    $region4: #{res_block_forward.3} parent=1 // pred_region
      %s16 = ssub.s32 1024, 1024
      %17 = vsyncadd [#allocation3], %s16
      %s18 = sshll.u32 [#allocation2], 4
      %s19 = int_to_ptr.vmem [resolvable:$true] %s18
      %24 = dma.hbm_to_vmem [thread:$0]  %s0, 1024, %s19, [#allocation3], 64, 64, 4
    $region5: #{res_block_forward.3} parent=1 // pred_fallthru
      _
    // Predicated region
    $region6: #{res_block_forward.3} parent=1 // pred_check
      _
    $region7: #{res_block_forward.3} parent=1 // pred_check_branch
      %26 = sbr.rel (0) target = $region9
    $region8: #{res_block_forward.3} parent=1 // pred_region
      %s28 = ssub.s32 1024, 1024
      %29 = vsyncadd [#allocation6], %s28
      %s30 = sshll.u32 [#allocation5], 4
      %s31 = int_to_ptr.vmem [resolvable:$true] %s30
      %36 = dma.hbm_to_vmem [thread:$0]  %s1, 1024, %s31, [#allocation6], 64, 64, 4
    $region9: #{res_block_forward.3} parent=1 // pred_fallthru
      _
    // Predicated region
    $region10: #{res_block_forward.3} parent=1 // pred_check
      _
    $region11: #{res_block_forward.3} parent=1 // pred_check_branch
      %38 = sbr.rel (0) target = $region13
    $region12: #{res_block_forward.3} parent=1 // pred_region
      %s40 = ssub.s32 16, 16
      %41 = vsyncadd [#allocation6], %s40
      %s43 = sshll.u32 [#allocation7], 4
      %s44 = int_to_ptr.vmem [resolvable:$true] %s43
      %46 = dma.hbm_to_vmem [thread:$0]  %s2, 16, %s44, [#allocation6]
    $region13: #{res_block_forward.3} parent=1 // pred_fallthru
      _
    // Predicated region
    $region14: #{res_block_forward.3} parent=1 // pred_check
      _
    $region15: #{res_block_forward.3} parent=1 // pred_check_branch
      %48 = sbr.rel (0) target = $region17
    $region16: #{res_block_forward.3} parent=1 // pred_region
      %s50 = ssub.s32 16, 16
      %51 = vsyncadd [#allocation9], %s50
      %s53 = sshll.u32 [#allocation8], 4
      %s54 = int_to_ptr.vmem [resolvable:$true] %s53
      %56 = dma.hbm_to_vmem [thread:$0]  %s3, 16, %s54, [#allocation9]
    $region17: #{res_block_forward.3} parent=1 // pred_fallthru
      _
    // Predicated region
    $region18: #{res_block_forward.3} parent=1 // pred_check
      _
    $region19: #{res_block_forward.3} parent=1 // pred_check_branch
      %58 = sbr.rel (0) target = $region21
    $region20: #{res_block_forward.3} parent=1 // pred_region
      %59 = dma.done [#allocation3], 1024
    $region21: #{res_block_forward.3} parent=1 // pred_fallthru
      _
    // Predicated region
    $region22: #{res_block_forward.3} parent=1 // pred_check
      _
    $region23: #{res_block_forward.3} parent=1 // pred_check_branch
      %61 = sbr.rel (0) target = $region25
    $region24: #{res_block_forward.3} parent=1 // pred_region
      %62 = dma.done [#allocation6], 1024
    $region25: #{res_block_forward.3} parent=1 // pred_fallthru
      _
    // Predicated region
    $region26: #{res_block_forward.3} parent=1 // pred_check
      _
    $region27: #{res_block_forward.3} parent=1 // pred_check_branch
      %64 = sbr.rel (0) target = $region29
    $region28: #{res_block_forward.3} parent=1 // pred_region
      %65 = dma.done [#allocation6], 16
    $region29: #{res_block_forward.3} parent=1 // pred_fallthru
      _
    // Predicated region
    $region30: #{res_block_forward.3} parent=1 // pred_check
      _
    $region31: #{res_block_forward.3} parent=1 // pred_check_branch
      %67 = sbr.rel (0) target = $region33
    $region32: #{res_block_forward.3} parent=1 // pred_region
      %68 = dma.done [#allocation9], 16
    $region33: #{res_block_forward.3} parent=1 // pred_fallthru
      _
    %v70 = vld [vmem:[#allocation2] sm:$0xf]
    %v71 = vld [vmem:[#allocation2 + $0x4] sm:$0xf]
    %v72 = vld [vmem:[#allocation2 + $0x8] sm:$0xf]
    %v73 = vld [vmem:[#allocation2 + $0xc] sm:$0xf]
    %v74 = vld [vmem:[#allocation2 + $0x10] sm:$0xf]
    %v75 = vld [vmem:[#allocation2 + $0x14] sm:$0xf]
    %v76 = vld [vmem:[#allocation2 + $0x18] sm:$0xf]
    %v77 = vld [vmem:[#allocation2 + $0x1c] sm:$0xf]
    %v78 = vld [vmem:[#allocation2 + $0x20] sm:$0xf]
    %v79 = vld [vmem:[#allocation2 + $0x24] sm:$0xf]
    %v80 = vld [vmem:[#allocation2 + $0x28] sm:$0xf]
    %v81 = vld [vmem:[#allocation2 + $0x2c] sm:$0xf]
    %v82 = vld [vmem:[#allocation2 + $0x30] sm:$0xf]
    %v83 = vld [vmem:[#allocation2 + $0x34] sm:$0xf]
    %v84 = vld [vmem:[#allocation2 + $0x38] sm:$0xf]
    %v85 = vld [vmem:[#allocation2 + $0x3c] sm:$0xf]
    %v86 = vld [vmem:[#allocation5] sm:$0xf]
    %v87 = vld [vmem:[#allocation5 + $0x4] sm:$0xf]
    %v88 = vld [vmem:[#allocation5 + $0x8] sm:$0xf]
    %v89 = vld [vmem:[#allocation5 + $0xc] sm:$0xf]
    %v90 = vld [vmem:[#allocation5 + $0x10] sm:$0xf]
    %v91 = vld [vmem:[#allocation5 + $0x14] sm:$0xf]
    %v92 = vld [vmem:[#allocation5 + $0x18] sm:$0xf]
    %v93 = vld [vmem:[#allocation5 + $0x1c] sm:$0xf]
    %v94 = vld [vmem:[#allocation5 + $0x20] sm:$0xf]
    %v95 = vld [vmem:[#allocation5 + $0x24] sm:$0xf]
    %v96 = vld [vmem:[#allocation5 + $0x28] sm:$0xf]
    %v97 = vld [vmem:[#allocation5 + $0x2c] sm:$0xf]
    %v98 = vld [vmem:[#allocation5 + $0x30] sm:$0xf]
    %v99 = vld [vmem:[#allocation5 + $0x34] sm:$0xf]
    %v100 = vld [vmem:[#allocation5 + $0x38] sm:$0xf]
    %v101 = vld [vmem:[#allocation5 + $0x3c] sm:$0xf]
    %v118 = vunpack.c.l.b16 %v70
    %v119 = vunpack.c.l.b16 %v71
    %v120 = vunpack.c.l.b16 %v72
    %v121 = vunpack.c.l.b16 %v73
    %v122 = vunpack.c.l.b16 %v74
    %v123 = vunpack.c.l.b16 %v75
    %v124 = vunpack.c.l.b16 %v76
    %v125 = vunpack.c.l.b16 %v77
    %v126 = vunpack.c.l.b16 %v78
    %v127 = vunpack.c.l.b16 %v79
    %v128 = vunpack.c.l.b16 %v80
    %v129 = vunpack.c.l.b16 %v81
    %v130 = vunpack.c.l.b16 %v82
    %v131 = vunpack.c.l.b16 %v83
    %v132 = vunpack.c.l.b16 %v84
    %v133 = vunpack.c.l.b16 %v85
    %v134 = vpack.c.b16 %v119, %v118
    %v135 = vpack.c.b16 %v121, %v120
    %v136 = vpack.c.b16 %v123, %v122
    %v137 = vpack.c.b16 %v125, %v124
    %v138 = vpack.c.b16 %v127, %v126
    %v139 = vpack.c.b16 %v129, %v128
    %v140 = vpack.c.b16 %v131, %v130
    %v141 = vpack.c.b16 %v133, %v132
    %v166 = vunpack.c.l.b16 %v86
    %v167 = vunpack.c.l.b16 %v87
    %v168 = vunpack.c.l.b16 %v88
    %v169 = vunpack.c.l.b16 %v89
    %v170 = vunpack.c.l.b16 %v90
    %v171 = vunpack.c.l.b16 %v91
    %v172 = vunpack.c.l.b16 %v92
    %v173 = vunpack.c.l.b16 %v93
    %v174 = vunpack.c.l.b16 %v94
    %v175 = vunpack.c.l.b16 %v95
    %v176 = vunpack.c.l.b16 %v96
    %v177 = vunpack.c.l.b16 %v97
    %v178 = vunpack.c.l.b16 %v98
    %v179 = vunpack.c.l.b16 %v99
    %v180 = vunpack.c.l.b16 %v100
    %v181 = vunpack.c.l.b16 %v101
    %v182 = vpack.c.b16 %v167, %v166
    %v183 = vpack.c.b16 %v169, %v168
    %v184 = vpack.c.b16 %v171, %v170
    %v185 = vpack.c.b16 %v173, %v172
    %v186 = vpack.c.b16 %v175, %v174
    %v187 = vpack.c.b16 %v177, %v176
    %v188 = vpack.c.b16 %v179, %v178
    %v189 = vpack.c.b16 %v181, %v180
    %198 = vmatprep.subr.bf16.mxu0 0
    %199 = vmatpush1.bf16.msra.mxu0 %v182
    %200 = vmatprep.subr.bf16.mxu0 0
    %201 = vmatpush1.bf16.msra.mxu0 %v183
    %202 = vmatprep.subr.bf16.mxu0 0
    %203 = vmatpush1.bf16.msra.mxu0 %v184
    %204 = vmatprep.subr.bf16.mxu0 0
    %205 = vmatpush1.bf16.msra.mxu0 %v185
    %206 = vmatprep.subr.bf16.mxu0 0
    %207 = vmatpush1.bf16.msra.mxu0 %v186
    %208 = vmatprep.subr.bf16.mxu0 0
    %209 = vmatpush1.bf16.msra.mxu0 %v187
    %210 = vmatprep.subr.bf16.mxu0 0
    %211 = vmatpush1.bf16.msra.mxu0 %v188
    %212 = vmatprep.subr.bf16.mxu0 0
    %213 = vmatpush1.bf16.msra.mxu0 %v189
    %214 = vmatprep.subr.bf16.mxu0 0
    %215 = vmatpush1.bf16.msra.mxu0 0
    %216 = vmatprep.subr.bf16.mxu0 0
    %217 = vmatpush1.bf16.msra.mxu0 0
    %218 = vmatprep.subr.bf16.mxu0 0
    %219 = vmatpush1.bf16.msra.mxu0 0
    %220 = vmatprep.subr.bf16.mxu0 0
    %221 = vmatpush1.bf16.msra.mxu0 0
    %222 = vmatprep.subr.bf16.mxu0 0
    %223 = vmatpush1.bf16.msra.mxu0 0
    %224 = vmatprep.subr.bf16.mxu0 0
    %225 = vmatpush1.bf16.msra.mxu0 0
    %226 = vmatprep.subr.bf16.mxu0 0
    %227 = vmatpush1.bf16.msra.mxu0 0
    %228 = vmatprep.subr.bf16.mxu0 0
    %229 = vmatpush1.bf16.msra.mxu0 0
    %230 = vmatprep.mubr.bf16.mxu0 0
    %231 = vmatmul.mubr.bf16.gmra.mrb[0].mxu0 %v134
    %v232 = vpop.f32.mrb[0].mxu0
    %v233 = vadd.f32 0.0, %v232
    %v234 = vpop.f32.mrb[0].mxu0
    %v235 = vpop.f32.mrb[0].mxu0
    %v236 = vadd.f32 0.0, %v235
    %v237 = vpop.f32.mrb[0].mxu0
    %238 = vmatprep.mubr.bf16.mxu0 0
    %239 = vmatmul.mubr.bf16.gmra.mrb[0].mxu0 %v135
    %v240 = vpop.f32.mrb[0].mxu0
    %v241 = vadd.f32 0.0, %v240
    %v242 = vpop.f32.mrb[0].mxu0
    %v243 = vpop.f32.mrb[0].mxu0
    %v244 = vadd.f32 0.0, %v243
    %v245 = vpop.f32.mrb[0].mxu0
    %246 = vmatprep.mubr.bf16.mxu0 0
    %247 = vmatmul.mubr.bf16.gmra.mrb[0].mxu0 %v136
    %v248 = vpop.f32.mrb[0].mxu0
    %v249 = vadd.f32 0.0, %v248
    %v250 = vpop.f32.mrb[0].mxu0
    %v251 = vpop.f32.mrb[0].mxu0
    %v252 = vadd.f32 0.0, %v251
    %v253 = vpop.f32.mrb[0].mxu0
    %254 = vmatprep.mubr.bf16.mxu0 0
    %255 = vmatmul.mubr.bf16.gmra.mrb[0].mxu0 %v137
    %v256 = vpop.f32.mrb[0].mxu0
    %v257 = vadd.f32 0.0, %v256
    %v258 = vpop.f32.mrb[0].mxu0
    %v259 = vpop.f32.mrb[0].mxu0
    %v260 = vadd.f32 0.0, %v259
    %v261 = vpop.f32.mrb[0].mxu0
    %262 = vmatprep.mubr.bf16.mxu0 0
    %263 = vmatmul.mubr.bf16.gmra.mrb[0].mxu0 %v138
    %v264 = vpop.f32.mrb[0].mxu0
    %v265 = vadd.f32 0.0, %v264
    %v266 = vpop.f32.mrb[0].mxu0
    %v267 = vpop.f32.mrb[0].mxu0
    %v268 = vadd.f32 0.0, %v267
    %v269 = vpop.f32.mrb[0].mxu0
    %270 = vmatprep.mubr.bf16.mxu0 0
    %271 = vmatmul.mubr.bf16.gmra.mrb[0].mxu0 %v139
    %v272 = vpop.f32.mrb[0].mxu0
    %v273 = vadd.f32 0.0, %v272
    %v274 = vpop.f32.mrb[0].mxu0
    %v275 = vpop.f32.mrb[0].mxu0
    %v276 = vadd.f32 0.0, %v275
    %v277 = vpop.f32.mrb[0].mxu0
    %278 = vmatprep.mubr.bf16.mxu0 0
    %279 = vmatmul.mubr.bf16.gmra.mrb[0].mxu0 %v140
    %v280 = vpop.f32.mrb[0].mxu0
    %v281 = vadd.f32 0.0, %v280
    %v282 = vpop.f32.mrb[0].mxu0
    %v283 = vpop.f32.mrb[0].mxu0
    %v284 = vadd.f32 0.0, %v283
    %v285 = vpop.f32.mrb[0].mxu0
    %286 = vmatprep.mubr.bf16.mxu0 0
    %287 = vmatmul.mubr.bf16.gmra.mrb[0].mxu0 %v141
    %v288 = vpop.f32.mrb[0].mxu0
    %v289 = vadd.f32 0.0, %v288
    %v290 = vpop.f32.mrb[0].mxu0
    %v291 = vpop.f32.mrb[0].mxu0
    %v292 = vadd.f32 0.0, %v291
    %v293 = vpop.f32.mrb[0].mxu0
    %294 = vdwg.mxu0
    %v295 = vld [vmem:[#allocation7] sm:$0x1]
    %v297 = vlaneseq
    %v298 = vshrl.u32 %v297, 7
    %v299 = vsub.s32 0, %v298
    %v300 = vrot.slane %v295, %v299
    %v302 = vmul.f32 %v233, %v300
    %v303 = vmul.f32 %v236, %v300
    %v304 = vmul.f32 %v241, %v300
    %v305 = vmul.f32 %v244, %v300
    %v306 = vmul.f32 %v249, %v300
    %v307 = vmul.f32 %v252, %v300
    %v308 = vmul.f32 %v257, %v300
    %v309 = vmul.f32 %v260, %v300
    %v310 = vmul.f32 %v265, %v300
    %v311 = vmul.f32 %v268, %v300
    %v312 = vmul.f32 %v273, %v300
    %v313 = vmul.f32 %v276, %v300
    %v314 = vmul.f32 %v281, %v300
    %v315 = vmul.f32 %v284, %v300
    %v316 = vmul.f32 %v289, %v300
    %v317 = vmul.f32 %v292, %v300
    %v318 = vld [vmem:[#allocation8] sm:$0x1]
    %v320 = vlaneseq
    %v321 = vshrl.u32 %v320, 7
    %v322 = vsub.s32 0, %v321
    %v323 = vrot.slane %v318, %v322
    %v325 = vadd.f32 %v302, %v323
    %v326 = vadd.f32 %v303, %v323
    %v327 = vadd.f32 %v304, %v323
    %v328 = vadd.f32 %v305, %v323
    %v329 = vadd.f32 %v306, %v323
    %v330 = vadd.f32 %v307, %v323
    %v331 = vadd.f32 %v308, %v323
    %v332 = vadd.f32 %v309, %v323
    %v333 = vadd.f32 %v310, %v323
    %v334 = vadd.f32 %v311, %v323
    %v335 = vadd.f32 %v312, %v323
    %v336 = vadd.f32 %v313, %v323
    %v337 = vadd.f32 %v314, %v323
    %v338 = vadd.f32 %v315, %v323
    %v339 = vadd.f32 %v316, %v323
    %v340 = vadd.f32 %v317, %v323
    %v341 = vxor.u32 %v325, 2147483648
    %v342 = vxor.u32 %v326, 2147483648
    %v343 = vxor.u32 %v327, 2147483648
    %v344 = vxor.u32 %v328, 2147483648
    %v345 = vxor.u32 %v329, 2147483648
    %v346 = vxor.u32 %v330, 2147483648
    %v347 = vxor.u32 %v331, 2147483648
    %v348 = vxor.u32 %v332, 2147483648
    %v349 = vxor.u32 %v333, 2147483648
    %v350 = vxor.u32 %v334, 2147483648
    %v351 = vxor.u32 %v335, 2147483648
    %v352 = vxor.u32 %v336, 2147483648
    %v353 = vxor.u32 %v337, 2147483648
    %v354 = vxor.u32 %v338, 2147483648
    %v355 = vxor.u32 %v339, 2147483648
    %v356 = vxor.u32 %v340, 2147483648
    %v357 = vmul.f32 %v341, 1.442695
    %v358 = vpow.pop %v357
    %v359 = vmul.f32 %v342, 1.442695
    %v360 = vpow.pop %v359
    %v361 = vmul.f32 %v343, 1.442695
    %v362 = vpow.pop %v361
    %v363 = vmul.f32 %v344, 1.442695
    %v364 = vpow.pop %v363
    %v365 = vmul.f32 %v345, 1.442695
    %v366 = vpow.pop %v365
    %v367 = vmul.f32 %v346, 1.442695
    %v368 = vpow.pop %v367
    %v369 = vmul.f32 %v347, 1.442695
    %v370 = vpow.pop %v369
    %v371 = vmul.f32 %v348, 1.442695
    %v372 = vpow.pop %v371
    %v373 = vmul.f32 %v349, 1.442695
    %v374 = vpow.pop %v373
    %v375 = vmul.f32 %v350, 1.442695
    %v376 = vpow.pop %v375
    %v377 = vmul.f32 %v351, 1.442695
    %v378 = vpow.pop %v377
    %v379 = vmul.f32 %v352, 1.442695
    %v380 = vpow.pop %v379
    %v381 = vmul.f32 %v353, 1.442695
    %v382 = vpow.pop %v381
    %v383 = vmul.f32 %v354, 1.442695
    %v384 = vpow.pop %v383
    %v385 = vmul.f32 %v355, 1.442695
    %v386 = vpow.pop %v385
    %v387 = vmul.f32 %v356, 1.442695
    %v388 = vpow.pop %v387
    %v389 = vadd.f32 %v358, 1.0
    %v390 = vadd.f32 %v360, 1.0
    %v391 = vadd.f32 %v362, 1.0
    %v392 = vadd.f32 %v364, 1.0
    %v393 = vadd.f32 %v366, 1.0
    %v394 = vadd.f32 %v368, 1.0
    %v395 = vadd.f32 %v370, 1.0
    %v396 = vadd.f32 %v372, 1.0
    %v397 = vadd.f32 %v374, 1.0
    %v398 = vadd.f32 %v376, 1.0
    %v399 = vadd.f32 %v378, 1.0
    %v400 = vadd.f32 %v380, 1.0
    %v401 = vadd.f32 %v382, 1.0
    %v402 = vadd.f32 %v384, 1.0
    %v403 = vadd.f32 %v386, 1.0
    %v404 = vadd.f32 %v388, 1.0
    %v405 = vrcp.pop %v389
    %v406 = vmul.f32 1.0, %v405
    %v407 = vrcp.pop %v390
    %v408 = vmul.f32 1.0, %v407
    %v409 = vrcp.pop %v391
    %v410 = vmul.f32 1.0, %v409
    %v411 = vrcp.pop %v392
    %v412 = vmul.f32 1.0, %v411
    %v413 = vrcp.pop %v393
    %v414 = vmul.f32 1.0, %v413
    %v415 = vrcp.pop %v394
    %v416 = vmul.f32 1.0, %v415
    %v417 = vrcp.pop %v395
    %v418 = vmul.f32 1.0, %v417
    %v419 = vrcp.pop %v396
    %v420 = vmul.f32 1.0, %v419
    %v421 = vrcp.pop %v397
    %v422 = vmul.f32 1.0, %v421
    %v423 = vrcp.pop %v398
    %v424 = vmul.f32 1.0, %v423
    %v425 = vrcp.pop %v399
    %v426 = vmul.f32 1.0, %v425
    %v427 = vrcp.pop %v400
    %v428 = vmul.f32 1.0, %v427
    %v429 = vrcp.pop %v401
    %v430 = vmul.f32 1.0, %v429
    %v431 = vrcp.pop %v402
    %v432 = vmul.f32 1.0, %v431
    %v433 = vrcp.pop %v403
    %v434 = vmul.f32 1.0, %v433
    %v435 = vrcp.pop %v404
    %v436 = vmul.f32 1.0, %v435
    %v437 = vmul.f32 %v325, %v406
    %v438 = vmul.f32 %v326, %v408
    %v439 = vmul.f32 %v327, %v410
    %v440 = vmul.f32 %v328, %v412
    %v441 = vmul.f32 %v329, %v414
    %v442 = vmul.f32 %v330, %v416
    %v443 = vmul.f32 %v331, %v418
    %v444 = vmul.f32 %v332, %v420
    %v445 = vmul.f32 %v333, %v422
    %v446 = vmul.f32 %v334, %v424
    %v447 = vmul.f32 %v335, %v426
    %v448 = vmul.f32 %v336, %v428
    %v449 = vmul.f32 %v337, %v430
    %v450 = vmul.f32 %v338, %v432
    %v451 = vmul.f32 %v339, %v434
    %v452 = vmul.f32 %v340, %v436
    %v453 = vpack.c.bf16 %v438, %v437
    %v454 = vpack.c.bf16 %v440, %v439
    %v455 = vpack.c.bf16 %v442, %v441
    %v456 = vpack.c.bf16 %v444, %v443
    %v457 = vpack.c.bf16 %v446, %v445
    %v458 = vpack.c.bf16 %v448, %v447
    %v459 = vpack.c.bf16 %v450, %v449
    %v460 = vpack.c.bf16 %v452, %v451
    %v469 = vunpack.c.l.b16 %v453
    %v470 = vunpack.c.h.b16 %v453
    %v471 = vunpack.c.l.b16 %v454
    %v472 = vunpack.c.h.b16 %v454
    %v473 = vunpack.c.l.b16 %v455
    %v474 = vunpack.c.h.b16 %v455
    %v475 = vunpack.c.l.b16 %v456
    %v476 = vunpack.c.h.b16 %v456
    %v477 = vunpack.c.l.b16 %v457
    %v478 = vunpack.c.h.b16 %v457
    %v479 = vunpack.c.l.b16 %v458
    %v480 = vunpack.c.h.b16 %v458
    %v481 = vunpack.c.l.b16 %v459
    %v482 = vunpack.c.h.b16 %v459
    %v483 = vunpack.c.l.b16 %v460
    %v484 = vunpack.c.h.b16 %v460
    %v485 = vpack.c.b16 %v469, %v469
    %v486 = vpack.c.b16 %v470, %v470
    %v487 = vpack.c.b16 %v471, %v471
    %v488 = vpack.c.b16 %v472, %v472
    %v489 = vpack.c.b16 %v473, %v473
    %v490 = vpack.c.b16 %v474, %v474
    %v491 = vpack.c.b16 %v475, %v475
    %v492 = vpack.c.b16 %v476, %v476
    %v493 = vpack.c.b16 %v477, %v477
    %v494 = vpack.c.b16 %v478, %v478
    %v495 = vpack.c.b16 %v479, %v479
    %v496 = vpack.c.b16 %v480, %v480
    %v497 = vpack.c.b16 %v481, %v481
    %v498 = vpack.c.b16 %v482, %v482
    %v499 = vpack.c.b16 %v483, %v483
    %v500 = vpack.c.b16 %v484, %v484
    %517 = vst [vmem:[#allocation10] sm:$0xf] %v485
    %518 = vst [vmem:[#allocation10 + $0x4] sm:$0xf] %v486
    %519 = vst [vmem:[#allocation10 + $0x8] sm:$0xf] %v487
    %520 = vst [vmem:[#allocation10 + $0xc] sm:$0xf] %v488
    %521 = vst [vmem:[#allocation10 + $0x10] sm:$0xf] %v489
    %522 = vst [vmem:[#allocation10 + $0x14] sm:$0xf] %v490
    %523 = vst [vmem:[#allocation10 + $0x18] sm:$0xf] %v491
    %524 = vst [vmem:[#allocation10 + $0x1c] sm:$0xf] %v492
    %525 = vst [vmem:[#allocation10 + $0x20] sm:$0xf] %v493
    %526 = vst [vmem:[#allocation10 + $0x24] sm:$0xf] %v494
    %527 = vst [vmem:[#allocation10 + $0x28] sm:$0xf] %v495
    %528 = vst [vmem:[#allocation10 + $0x2c] sm:$0xf] %v496
    %529 = vst [vmem:[#allocation10 + $0x30] sm:$0xf] %v497
    %530 = vst [vmem:[#allocation10 + $0x34] sm:$0xf] %v498
    %531 = vst [vmem:[#allocation10 + $0x38] sm:$0xf] %v499
    %532 = vst [vmem:[#allocation10 + $0x3c] sm:$0xf] %v500
    // Predicated region
    $region34: #{res_block_forward.3} parent=1 // pred_check
      _
    $region35: #{res_block_forward.3} parent=1 // pred_check_branch
      %534 = sbr.rel (0) target = $region37
    $region36: #{res_block_forward.3} parent=1 // pred_region
      %s536 = ssub.s32 1024, 1024
      %537 = vsyncadd [#allocation4], %s536
      %s538 = sshll.u32 [#allocation10], 4
      %s539 = int_to_ptr.vmem [resolvable:$true] %s538
      %544 = dma.vmem_to_hbm [thread:$0]  %s539, 1024, %s4, [#allocation4], 64, 64, 4
    $region37: #{res_block_forward.3} parent=1 // pred_fallthru
      _
    // Predicated region
    $region38: #{res_block_forward.3} parent=1 // pred_check
      _
    $region39: #{res_block_forward.3} parent=1 // pred_check_branch
      %546 = sbr.rel (0) target = $region41
    $region40: #{res_block_forward.3} parent=1 // pred_region
      %547 = dma.done [#allocation4], 1024
    $region41: #{res_block_forward.3} parent=1 // pred_fallthru
      _
    %548 = vsyncpa [#allocation3], 1
    %549 = vsyncpa [#allocation6], 1
    %550 = vsyncpa [#allocation9], 1
    %551 = vsyncpa [#allocation4], 1

// kernel: res_block_forward.4
$region0: #{res_block_forward.4}
  #allocation0 [shape = 'u32[]', space=smem, size = 0x4, offset = 0x4, fixed_abs, tag = 'smem constant byte address 0x4 - core index']
  #allocation1 [shape = 'u32[144,128]{1,0:T(1,128)}', space=vmem, size = 0x12000, scoped, tag = 'internal scratch']
  #allocation2 [shape = 'bf16[168,128]{1,0:T(8,128)(2,1)}', space=vmem, size = 0xa800, scoped, tag = 'scratch operand']
  %s0 = inlined_call_operand.hbm [shape: bf16[2,8,8,128], index: 0, kind: input, shape index: {}]
  %s1 = inlined_call_operand.hbm [shape: bf16[128,128], index: 1, kind: input, shape index: {}]
  %s2 = inlined_call_operand.hbm [shape: f32[1,128], index: 2, kind: input, shape index: {}]
  %s3 = inlined_call_operand.hbm [shape: f32[1,128], index: 3, kind: input, shape index: {}]
  %s4 = inlined_call_operand.hbm [shape: bf16[9,128,128], index: 4, kind: input, shape index: {}]
  %s5 = inlined_call_operand.hbm [shape: f32[1,128], index: 5, kind: input, shape index: {}]
  %s6 = inlined_call_operand.hbm [shape: f32[1,128], index: 6, kind: input, shape index: {}]
  %s7 = inlined_call_operand.hbm [shape: bf16[2,8,8,128], index: 7, kind: output, shape index: {}]
  %s8 = sld [smem:[#allocation0]]
  $region89: #{res_block_forward.4} parent=0
    _
  %s10 = ssub.s32 1, %s8
  %s11 = scalar_select 0, %s10, %s8
  $region1: #{res_block_forward.4} parent=0
    #allocation3 [shape = 'u8[32768]{0}', space=vmem, size = 0x8000, scoped, tag = 'input window, operand 0']
    #allocation4 [shape = 's32[2]{0}', space=sflag, size = 0x8, scoped, tag = 'scoped memory for res_block_forward.4']
    #allocation5 [shape = 's32[2]{0}', space=sflag, size = 0x8, scoped, tag = 'scoped memory for res_block_forward.4']
    #allocation6 [shape = 'u8[32768]{0}', space=vmem, size = 0x8000, scoped, tag = 'input window, operand 1, single buffered']
    #allocation7 [shape = 's32[1]{0}', space=sflag, size = 0x4, scoped, tag = 'scoped memory for res_block_forward.4']
    #allocation8 [shape = 'u8[512]{0}', space=vmem, size = 0x400, scoped, tag = 'input window, operand 2, single buffered']
    #allocation9 [shape = 'u8[512]{0}', space=vmem, size = 0x400, scoped, tag = 'input window, operand 3, single buffered']
    #allocation10 [shape = 's32[1]{0}', space=sflag, size = 0x4, scoped, tag = 'scoped memory for res_block_forward.4']
    #allocation11 [shape = 'u8[294912]{0}', space=vmem, size = 0x48000, scoped, tag = 'input window, operand 4, single buffered']
    #allocation12 [shape = 'u8[512]{0}', space=vmem, size = 0x400, scoped, tag = 'input window, operand 5, single buffered']
    #allocation13 [shape = 's32[1]{0}', space=sflag, size = 0x4, scoped, tag = 'scoped memory for res_block_forward.4']
    #allocation14 [shape = 'u8[512]{0}', space=vmem, size = 0x400, scoped, tag = 'input window, operand 6, single buffered']
    #allocation15 [shape = 'u8[32768]{0}', space=vmem, size = 0x8000, scoped, tag = 'output window, operand 0']
    %12 = vsyncpa [#allocation4], 0
    %s13 = scalar_lea.sflag [#allocation4], 1
    %14 = vsyncpa %s13, 0
    %15 = vsyncpa [#allocation7], 0
    %16 = vsyncpa [#allocation10], 0
    %17 = vsyncpa [#allocation13], 0
    %18 = vsyncpa [#allocation5], 0
    %s19 = scalar_lea.sflag [#allocation5], 1
    %20 = vsyncpa %s19, 0
    loop: start=0, step=1, limit=4
    $region2: #{res_block_forward.4} parent=1 // loop_pre_header
      _
    $region3: #{res_block_forward.4} parent=1 // loop_header
      %s22 = sphi 0, %s26
      %p23 = scmp.ge.s32.totalorder %s22, 4
      %s32 = sphi 0, %s34
      %s35 = sphi 0, %s32
      %s36 = sphi 0, %s35
      %s52 = sphi 0, %s36
      %s56 = sphi 0, %s56
      %s58 = sphi 0, %s56
      %s59 = sphi 0, %s58
      %s73 = sphi 0, %s59
      %s77 = sphi 0, %s77
      %s79 = sphi 0, %s77
      %s80 = sphi 0, %s79
      %s94 = sphi 0, %s80
      %s98 = sphi 0, %s98
      %s100 = sphi 0, %s98
      %s101 = sphi 0, %s100
      %s115 = sphi 0, %s101
      %s119 = sphi 0, %s119
      %s121 = sphi 0, %s119
      %s122 = sphi 0, %s121
      %s136 = sphi 0, %s122
      %s140 = sphi 0, %s140
      %s142 = sphi 0, %s140
      %s143 = sphi 0, %s142
      %s157 = sphi 0, %s143
      %s161 = sphi 0, %s161
      %s163 = sphi 0, %s161
      %s164 = sphi 0, %s163
      %s178 = sphi 0, %s164
      %s184 = sphi 0, %s186
      %s187 = sphi 0, %s184
      %s188 = sphi 0, %s187
      %s204 = sphi 0, %s188
    $region4: #{res_block_forward.4} parent=1 // loop_header_branch
      %25 = sbr.rel (%p23) target = $region8
    $region5: #{res_block_forward.4} parent=1 // loop_body
      %s27 = ssub.s32 %s22, 1
      %s28 = ssub.s32 %s22, 2
      %s29 = sadd.s32 %s22, 1
      %s30 = ssub.s32 %s22, %s29
      %p31 = scmp.eq.s32.totalorder %s30, 0
      %s33 = sadd.s32 %s32, 1
      %s34 = scalar_select %p31, %s32, %s33
      %p37 = pneg %p31
      %p38 = scmp.eq.s32.totalorder %s22, 1
      %p39 = por %p37, %p38
      %p40 = scmp.ne.s32.totalorder %s32, %s35
      %p41 = scmp.eq.s32.totalorder %s22, 0
      %p42 = por %p40, %p41
      %p43 = scmp.ne.s32.totalorder %s32, %s35
      %p44 = scmp.eq.s32.totalorder %s27, 1
      %p45 = por %p43, %p44
      %p46 = scmp.ne.s32.totalorder %s35, %s36
      %p47 = scmp.eq.s32.totalorder %s27, 0
      %p48 = por %p46, %p47
      %p49 = scmp.ne.s32.totalorder %s35, %s36
      %p50 = scmp.eq.s32.totalorder %s28, 1
      %p51 = por %p49, %p50
      %p53 = scmp.ne.s32.totalorder %s36, %s52
      %p54 = scmp.eq.s32.totalorder %s28, 0
      %p55 = por %p53, %p54
      %s57 = sadd.s32 %s56, 1
      %p60 = scmp.eq.s32.totalorder %s22, 1
      %p61 = scmp.ne.s32.totalorder %s56, %s58
      %p62 = scmp.eq.s32.totalorder %s22, 0
      %p63 = por %p61, %p62
      %p64 = scmp.ne.s32.totalorder %s56, %s58
      %p65 = scmp.eq.s32.totalorder %s27, 1
      %p66 = por %p64, %p65
      %p67 = scmp.ne.s32.totalorder %s58, %s59
      %p68 = scmp.eq.s32.totalorder %s27, 0
      %p69 = por %p67, %p68
      %p70 = scmp.ne.s32.totalorder %s58, %s59
      %p71 = scmp.eq.s32.totalorder %s28, 1
      %p72 = por %p70, %p71
      %p74 = scmp.ne.s32.totalorder %s59, %s73
      %p75 = scmp.eq.s32.totalorder %s28, 0
      %p76 = por %p74, %p75
      %s78 = sadd.s32 %s77, 1
      %p81 = scmp.eq.s32.totalorder %s22, 1
      %p82 = scmp.ne.s32.totalorder %s77, %s79
      %p83 = scmp.eq.s32.totalorder %s22, 0
      %p84 = por %p82, %p83
      %p85 = scmp.ne.s32.totalorder %s77, %s79
      %p86 = scmp.eq.s32.totalorder %s27, 1
      %p87 = por %p85, %p86
      %p88 = scmp.ne.s32.totalorder %s79, %s80
      %p89 = scmp.eq.s32.totalorder %s27, 0
      %p90 = por %p88, %p89
      %p91 = scmp.ne.s32.totalorder %s79, %s80
      %p92 = scmp.eq.s32.totalorder %s28, 1
      %p93 = por %p91, %p92
      %p95 = scmp.ne.s32.totalorder %s80, %s94
      %p96 = scmp.eq.s32.totalorder %s28, 0
      %p97 = por %p95, %p96
      %s99 = sadd.s32 %s98, 1
      %p102 = scmp.eq.s32.totalorder %s22, 1
      %p103 = scmp.ne.s32.totalorder %s98, %s100
      %p104 = scmp.eq.s32.totalorder %s22, 0
      %p105 = por %p103, %p104
      %p106 = scmp.ne.s32.totalorder %s98, %s100
      %p107 = scmp.eq.s32.totalorder %s27, 1
      %p108 = por %p106, %p107
      %p109 = scmp.ne.s32.totalorder %s100, %s101
      %p110 = scmp.eq.s32.totalorder %s27, 0
      %p111 = por %p109, %p110
      %p112 = scmp.ne.s32.totalorder %s100, %s101
      %p113 = scmp.eq.s32.totalorder %s28, 1
      %p114 = por %p112, %p113
      %p116 = scmp.ne.s32.totalorder %s101, %s115
      %p117 = scmp.eq.s32.totalorder %s28, 0
      %p118 = por %p116, %p117
      %s120 = sadd.s32 %s119, 1
      %p123 = scmp.eq.s32.totalorder %s22, 1
      %p124 = scmp.ne.s32.totalorder %s119, %s121
      %p125 = scmp.eq.s32.totalorder %s22, 0
      %p126 = por %p124, %p125
      %p127 = scmp.ne.s32.totalorder %s119, %s121
      %p128 = scmp.eq.s32.totalorder %s27, 1
      %p129 = por %p127, %p128
      %p130 = scmp.ne.s32.totalorder %s121, %s122
      %p131 = scmp.eq.s32.totalorder %s27, 0
      %p132 = por %p130, %p131
      %p133 = scmp.ne.s32.totalorder %s121, %s122
      %p134 = scmp.eq.s32.totalorder %s28, 1
      %p135 = por %p133, %p134
      %p137 = scmp.ne.s32.totalorder %s122, %s136
      %p138 = scmp.eq.s32.totalorder %s28, 0
      %p139 = por %p137, %p138
      %s141 = sadd.s32 %s140, 1
      %p144 = scmp.eq.s32.totalorder %s22, 1
      %p145 = scmp.ne.s32.totalorder %s140, %s142
      %p146 = scmp.eq.s32.totalorder %s22, 0
      %p147 = por %p145, %p146
      %p148 = scmp.ne.s32.totalorder %s140, %s142
      %p149 = scmp.eq.s32.totalorder %s27, 1
      %p150 = por %p148, %p149
      %p151 = scmp.ne.s32.totalorder %s142, %s143
      %p152 = scmp.eq.s32.totalorder %s27, 0
      %p153 = por %p151, %p152
      %p154 = scmp.ne.s32.totalorder %s142, %s143
      %p155 = scmp.eq.s32.totalorder %s28, 1
      %p156 = por %p154, %p155
      %p158 = scmp.ne.s32.totalorder %s143, %s157
      %p159 = scmp.eq.s32.totalorder %s28, 0
      %p160 = por %p158, %p159
      %s162 = sadd.s32 %s161, 1
      %p165 = scmp.eq.s32.totalorder %s22, 1
      %p166 = scmp.ne.s32.totalorder %s161, %s163
      %p167 = scmp.eq.s32.totalorder %s22, 0
      %p168 = por %p166, %p167
      %p169 = scmp.ne.s32.totalorder %s161, %s163
      %p170 = scmp.eq.s32.totalorder %s27, 1
      %p171 = por %p169, %p170
      %p172 = scmp.ne.s32.totalorder %s163, %s164
      %p173 = scmp.eq.s32.totalorder %s27, 0
      %p174 = por %p172, %p173
      %p175 = scmp.ne.s32.totalorder %s163, %s164
      %p176 = scmp.eq.s32.totalorder %s28, 1
      %p177 = por %p175, %p176
      %p179 = scmp.ne.s32.totalorder %s164, %s178
      %p180 = scmp.eq.s32.totalorder %s28, 0
      %p181 = por %p179, %p180
      %s182 = ssub.s32 %s22, %s29
      %p183 = scmp.eq.s32.totalorder %s182, 0
      %s185 = sadd.s32 %s184, 1
      %s186 = scalar_select %p183, %s184, %s185
      %p189 = pneg %p183
      %p190 = scmp.eq.s32.totalorder %s22, 1
      %p191 = por %p189, %p190
      %p192 = scmp.ne.s32.totalorder %s184, %s187
      %p193 = scmp.eq.s32.totalorder %s22, 0
      %p194 = por %p192, %p193
      %p195 = scmp.ne.s32.totalorder %s184, %s187
      %p196 = scmp.eq.s32.totalorder %s27, 1
      %p197 = por %p195, %p196
      %p198 = scmp.ne.s32.totalorder %s187, %s188
      %p199 = scmp.eq.s32.totalorder %s27, 0
      %p200 = por %p198, %p199
      %p201 = scmp.ne.s32.totalorder %s187, %s188
      %p202 = scmp.eq.s32.totalorder %s28, 1
      %p203 = por %p201, %p202
      %p205 = scmp.ne.s32.totalorder %s188, %s204
      %p206 = scmp.eq.s32.totalorder %s28, 0
      %p207 = por %p205, %p206
      %p208 = scmp.le.s32.totalorder 1, %s22
      %p209 = scmp.lt.s32.totalorder %s22, 3
      %p210 = pnand %p208, %p209
      %p211 = pneg %p210
      // Predicated region
      $region9: #{res_block_forward.4} parent=5 // pred_check
        _
      $region10: #{res_block_forward.4} parent=5 // pred_check_branch
        %213 = sbr.rel (%p210) target = $region12
      $region11: #{res_block_forward.4} parent=5 // pred_region
        %s214 = ssub.s32 %s22, 1
        // Predicated region
        $region13: #{res_block_forward.4} parent=11 // pred_check
          %p215 = pneg %p69
        $region14: #{res_block_forward.4} parent=11 // pred_check_branch
          %217 = sbr.rel (%p215) target = $region16
        $region15: #{res_block_forward.4} parent=11 // pred_region
          %s219 = ssub.s32 1024, 1024
          %220 = vsyncadd [#allocation7], %s219
          %s221 = sshll.u32 [#allocation6], 4
          %s222 = int_to_ptr.vmem [resolvable:$true] %s221
          %227 = dma.hbm_to_vmem [thread:$0]  %s1, 1024, %s222, [#allocation7], 64, 64, 4
        $region16: #{res_block_forward.4} parent=11 // pred_fallthru
          _
        // Predicated region
        $region17: #{res_block_forward.4} parent=11 // pred_check
          %p228 = pneg %p90
        $region18: #{res_block_forward.4} parent=11 // pred_check_branch
          %230 = sbr.rel (%p228) target = $region20
        $region19: #{res_block_forward.4} parent=11 // pred_region
          %s232 = ssub.s32 16, 16
          %233 = vsyncadd [#allocation7], %s232
          %s235 = sshll.u32 [#allocation8], 4
          %s236 = int_to_ptr.vmem [resolvable:$true] %s235
          %238 = dma.hbm_to_vmem [thread:$0]  %s2, 16, %s236, [#allocation7]
        $region20: #{res_block_forward.4} parent=11 // pred_fallthru
          _
        // Predicated region
        $region21: #{res_block_forward.4} parent=11 // pred_check
          %p239 = pneg %p111
        $region22: #{res_block_forward.4} parent=11 // pred_check_branch
          %241 = sbr.rel (%p239) target = $region24
        $region23: #{res_block_forward.4} parent=11 // pred_region
          %s243 = ssub.s32 16, 16
          %244 = vsyncadd [#allocation10], %s243
          %s246 = sshll.u32 [#allocation9], 4
          %s247 = int_to_ptr.vmem [resolvable:$true] %s246
          %249 = dma.hbm_to_vmem [thread:$0]  %s3, 16, %s247, [#allocation10]
        $region24: #{res_block_forward.4} parent=11 // pred_fallthru
          _
        // Predicated region
        $region25: #{res_block_forward.4} parent=11 // pred_check
          %p250 = pneg %p132
        $region26: #{res_block_forward.4} parent=11 // pred_check_branch
          %252 = sbr.rel (%p250) target = $region28
        $region27: #{res_block_forward.4} parent=11 // pred_region
          %s254 = ssub.s32 9216, 9216
          %255 = vsyncadd [#allocation10], %s254
          %s256 = sshll.u32 [#allocation11], 4
          %s257 = int_to_ptr.vmem [resolvable:$true] %s256
          %262 = dma.hbm_to_vmem [thread:$0]  %s4, 9216, %s257, [#allocation10], 64, 64, 4
        $region28: #{res_block_forward.4} parent=11 // pred_fallthru
          _
        // Predicated region
        $region29: #{res_block_forward.4} parent=11 // pred_check
          %p263 = pneg %p153
        $region30: #{res_block_forward.4} parent=11 // pred_check_branch
          %265 = sbr.rel (%p263) target = $region32
        $region31: #{res_block_forward.4} parent=11 // pred_region
          %s267 = ssub.s32 16, 16
          %268 = vsyncadd [#allocation13], %s267
          %s270 = sshll.u32 [#allocation12], 4
          %s271 = int_to_ptr.vmem [resolvable:$true] %s270
          %273 = dma.hbm_to_vmem [thread:$0]  %s5, 16, %s271, [#allocation13]
        $region32: #{res_block_forward.4} parent=11 // pred_fallthru
          _
        // Predicated region
        $region33: #{res_block_forward.4} parent=11 // pred_check
          %p274 = pneg %p174
        $region34: #{res_block_forward.4} parent=11 // pred_check_branch
          %276 = sbr.rel (%p274) target = $region36
        $region35: #{res_block_forward.4} parent=11 // pred_region
          %s278 = ssub.s32 16, 16
          %279 = vsyncadd [#allocation13], %s278
          %s281 = sshll.u32 [#allocation14], 4
          %s282 = int_to_ptr.vmem [resolvable:$true] %s281
          %284 = dma.hbm_to_vmem [thread:$0]  %s6, 16, %s282, [#allocation13]
        $region36: #{res_block_forward.4} parent=11 // pred_fallthru
          _
      $region12: #{res_block_forward.4} parent=5 // pred_fallthru
        _
      %p285 = scmp.lt.s32.totalorder %s22, 2
      // Predicated region
      $region37: #{res_block_forward.4} parent=5 // pred_check
        %p286 = pneg %p285
      $region38: #{res_block_forward.4} parent=5 // pred_check_branch
        %288 = sbr.rel (%p286) target = $region40
      $region39: #{res_block_forward.4} parent=5 // pred_region
        // Predicated region
        $region41: #{res_block_forward.4} parent=39 // pred_check
          %p289 = pneg %p42
        $region42: #{res_block_forward.4} parent=39 // pred_check_branch
          %291 = sbr.rel (%p289) target = $region44
        $region43: #{res_block_forward.4} parent=39 // pred_region
          %s292 = sand.u32 %s32, 1
          %s293 = scalar_lea.sflag [#allocation4], %s292
          %s294 = sand.u32 %s32, 1
          %s295 = smul.addr %s294, 32
          %s296 = scalar_lea.vmem [#allocation3], %s295
          %s298 = ssub.s32 512, 512
          %299 = vsyncadd %s293, %s298
          %s300 = smul.addr %s22, 8
          %s301 = smul.addr %s300, 64
          %s302 = scalar_lea.hbm %s0, %s301
          %s303 = sshll.u32 %s296, 4
          %s304 = int_to_ptr.vmem [resolvable:$true] %s303
          %309 = dma.hbm_to_vmem [thread:$0]  %s302, 512, %s304, %s293, 64, 64, 4
        $region44: #{res_block_forward.4} parent=39 // pred_fallthru
          _
      $region40: #{res_block_forward.4} parent=5 // pred_fallthru
        _
      %p310 = scmp.le.s32.totalorder 1, %s22
      %p311 = scmp.lt.s32.totalorder %s22, 3
      %p312 = pnand %p310, %p311
      %p313 = pneg %p312
      // Predicated region
      $region45: #{res_block_forward.4} parent=5 // pred_check
        _
      $region46: #{res_block_forward.4} parent=5 // pred_check_branch
        %315 = sbr.rel (%p312) target = $region48
      $region47: #{res_block_forward.4} parent=5 // pred_region
        %s316 = ssub.s32 %s22, 1
        %s317 = sand.u32 %s35, 1
        %s318 = scalar_lea.sflag [#allocation4], %s317
        %s319 = sand.u32 %s35, 1
        %s320 = smul.addr %s319, 32
        %s321 = scalar_lea.vmem [#allocation3], %s320
        // Predicated region
        $region49: #{res_block_forward.4} parent=47 // pred_check
          %p322 = pneg %p48
        $region50: #{res_block_forward.4} parent=47 // pred_check_branch
          %324 = sbr.rel (%p322) target = $region52
        $region51: #{res_block_forward.4} parent=47 // pred_region
          %325 = dma.done %s318, 512
        $region52: #{res_block_forward.4} parent=47 // pred_fallthru
          _
        // Predicated region
        $region53: #{res_block_forward.4} parent=47 // pred_check
          %p326 = pneg %p69
        $region54: #{res_block_forward.4} parent=47 // pred_check_branch
          %328 = sbr.rel (%p326) target = $region56
        $region55: #{res_block_forward.4} parent=47 // pred_region
          %329 = dma.done [#allocation7], 1024
        $region56: #{res_block_forward.4} parent=47 // pred_fallthru
          _
        // Predicated region
        $region57: #{res_block_forward.4} parent=47 // pred_check
          %p330 = pneg %p90
        $region58: #{res_block_forward.4} parent=47 // pred_check_branch
          %332 = sbr.rel (%p330) target = $region60
        $region59: #{res_block_forward.4} parent=47 // pred_region
          %333 = dma.done [#allocation7], 16
        $region60: #{res_block_forward.4} parent=47 // pred_fallthru
          _
        // Predicated region
        $region61: #{res_block_forward.4} parent=47 // pred_check
          %p334 = pneg %p111
        $region62: #{res_block_forward.4} parent=47 // pred_check_branch
          %336 = sbr.rel (%p334) target = $region64
        $region63: #{res_block_forward.4} parent=47 // pred_region
          %337 = dma.done [#allocation10], 16
        $region64: #{res_block_forward.4} parent=47 // pred_fallthru
          _
        // Predicated region
        $region65: #{res_block_forward.4} parent=47 // pred_check
          %p338 = pneg %p132
        $region66: #{res_block_forward.4} parent=47 // pred_check_branch
          %340 = sbr.rel (%p338) target = $region68
        $region67: #{res_block_forward.4} parent=47 // pred_region
          %341 = dma.done [#allocation10], 9216
        $region68: #{res_block_forward.4} parent=47 // pred_fallthru
          _
        // Predicated region
        $region69: #{res_block_forward.4} parent=47 // pred_check
          %p342 = pneg %p153
        $region70: #{res_block_forward.4} parent=47 // pred_check_branch
          %344 = sbr.rel (%p342) target = $region72
        $region71: #{res_block_forward.4} parent=47 // pred_region
          %345 = dma.done [#allocation13], 16
        $region72: #{res_block_forward.4} parent=47 // pred_fallthru
          _
        // Predicated region
        $region73: #{res_block_forward.4} parent=47 // pred_check
          %p346 = pneg %p174
        $region74: #{res_block_forward.4} parent=47 // pred_check_branch
          %348 = sbr.rel (%p346) target = $region76
        $region75: #{res_block_forward.4} parent=47 // pred_region
          %349 = dma.done [#allocation13], 16
        $region76: #{res_block_forward.4} parent=47 // pred_fallthru
          _
        %s350 = sand.u32 %s35, 1
        %s351 = scalar_lea.sflag [#allocation4], %s350
        %s352 = sand.u32 %s35, 1
        %s353 = smul.addr %s352, 32
        %s354 = scalar_lea.vmem [#allocation3], %s353
        %p355 = pneg %p48
        %p356 = pneg %p45
        %p357 = pneg %p69
        %p358 = pneg %p66
        %p359 = pneg %p90
        %p360 = pneg %p87
        %p361 = pneg %p111
        %p362 = pneg %p108
        %p363 = pneg %p132
        %p364 = pneg %p129
        %p365 = pneg %p153
        %p366 = pneg %p150
        %p367 = pneg %p174
        %p368 = pneg %p171
        %p369 = pneg %p200
        %p370 = pneg %p197
        %s371 = sand.u32 %s187, 1
        %s372 = scalar_lea.sflag [#allocation5], %s371
        %s373 = sand.u32 %s187, 1
        %s374 = smul.addr %s373, 32
        %s375 = scalar_lea.vmem [#allocation15], %s374
        %v377 = vld [vmem:[%s321] sm:$0xf]
        %v378 = vld [vmem:[%s321 + $0x4] sm:$0xf]
        %v379 = vld [vmem:[%s321 + $0x8] sm:$0xf]
        %v380 = vld [vmem:[%s321 + $0xc] sm:$0xf]
        %v381 = vld [vmem:[%s321 + $0x10] sm:$0xf]
        %v382 = vld [vmem:[%s321 + $0x14] sm:$0xf]
        %v383 = vld [vmem:[%s321 + $0x18] sm:$0xf]
        %v384 = vld [vmem:[%s321 + $0x1c] sm:$0xf]
        %v385 = vld [vmem:[#allocation6] sm:$0xf]
        %v386 = vld [vmem:[#allocation6 + $0x4] sm:$0xf]
        %v387 = vld [vmem:[#allocation6 + $0x8] sm:$0xf]
        %v388 = vld [vmem:[#allocation6 + $0xc] sm:$0xf]
        %v389 = vld [vmem:[#allocation6 + $0x10] sm:$0xf]
        %v390 = vld [vmem:[#allocation6 + $0x14] sm:$0xf]
        %v391 = vld [vmem:[#allocation6 + $0x18] sm:$0xf]
        %v392 = vld [vmem:[#allocation6 + $0x1c] sm:$0xf]
        %v393 = vld [vmem:[#allocation6 + $0x20] sm:$0xf]
        %v394 = vld [vmem:[#allocation6 + $0x24] sm:$0xf]
        %v395 = vld [vmem:[#allocation6 + $0x28] sm:$0xf]
        %v396 = vld [vmem:[#allocation6 + $0x2c] sm:$0xf]
        %v397 = vld [vmem:[#allocation6 + $0x30] sm:$0xf]
        %v398 = vld [vmem:[#allocation6 + $0x34] sm:$0xf]
        %v399 = vld [vmem:[#allocation6 + $0x38] sm:$0xf]
        %v400 = vld [vmem:[#allocation6 + $0x3c] sm:$0xf]
        %v409 = vunpack.c.l.b16 %v377
        %v410 = vunpack.c.l.b16 %v378
        %v411 = vunpack.c.l.b16 %v379
        %v412 = vunpack.c.l.b16 %v380
        %v413 = vunpack.c.l.b16 %v381
        %v414 = vunpack.c.l.b16 %v382
        %v415 = vunpack.c.l.b16 %v383
        %v416 = vunpack.c.l.b16 %v384
        %v417 = vpack.c.b16 %v410, %v409
        %v418 = vpack.c.b16 %v412, %v411
        %v419 = vpack.c.b16 %v414, %v413
        %v420 = vpack.c.b16 %v416, %v415
        %v441 = vunpack.c.l.b16 %v385
        %v442 = vunpack.c.l.b16 %v386
        %v443 = vunpack.c.l.b16 %v387
        %v444 = vunpack.c.l.b16 %v388
        %v445 = vunpack.c.l.b16 %v389
        %v446 = vunpack.c.l.b16 %v390
        %v447 = vunpack.c.l.b16 %v391
        %v448 = vunpack.c.l.b16 %v392
        %v449 = vunpack.c.l.b16 %v393
        %v450 = vunpack.c.l.b16 %v394
        %v451 = vunpack.c.l.b16 %v395
        %v452 = vunpack.c.l.b16 %v396
        %v453 = vunpack.c.l.b16 %v397
        %v454 = vunpack.c.l.b16 %v398
        %v455 = vunpack.c.l.b16 %v399
        %v456 = vunpack.c.l.b16 %v400
        %v457 = vpack.c.b16 %v442, %v441
        %v458 = vpack.c.b16 %v444, %v443
        %v459 = vpack.c.b16 %v446, %v445
        %v460 = vpack.c.b16 %v448, %v447
        %v461 = vpack.c.b16 %v450, %v449
        %v462 = vpack.c.b16 %v452, %v451
        %v463 = vpack.c.b16 %v454, %v453
        %v464 = vpack.c.b16 %v456, %v455
        %473 = vmatprep.subr.bf16.mxu0 0
        %474 = vmatpush1.bf16.msra.mxu0 %v457
        %475 = vmatprep.subr.bf16.mxu0 0
        %476 = vmatpush1.bf16.msra.mxu0 %v458
        %477 = vmatprep.subr.bf16.mxu0 0
        %478 = vmatpush1.bf16.msra.mxu0 %v459
        %479 = vmatprep.subr.bf16.mxu0 0
        %480 = vmatpush1.bf16.msra.mxu0 %v460
        %481 = vmatprep.subr.bf16.mxu0 0
        %482 = vmatpush1.bf16.msra.mxu0 %v461
        %483 = vmatprep.subr.bf16.mxu0 0
        %484 = vmatpush1.bf16.msra.mxu0 %v462
        %485 = vmatprep.subr.bf16.mxu0 0
        %486 = vmatpush1.bf16.msra.mxu0 %v463
        %487 = vmatprep.subr.bf16.mxu0 0
        %488 = vmatpush1.bf16.msra.mxu0 %v464
        %489 = vmatprep.subr.bf16.mxu0 0
        %490 = vmatpush1.bf16.msra.mxu0 0
        %491 = vmatprep.subr.bf16.mxu0 0
        %492 = vmatpush1.bf16.msra.mxu0 0
        %493 = vmatprep.subr.bf16.mxu0 0
        %494 = vmatpush1.bf16.msra.mxu0 0
        %495 = vmatprep.subr.bf16.mxu0 0
        %496 = vmatpush1.bf16.msra.mxu0 0
        %497 = vmatprep.subr.bf16.mxu0 0
        %498 = vmatpush1.bf16.msra.mxu0 0
        %499 = vmatprep.subr.bf16.mxu0 0
        %500 = vmatpush1.bf16.msra.mxu0 0
        %501 = vmatprep.subr.bf16.mxu0 0
        %502 = vmatpush1.bf16.msra.mxu0 0
        %503 = vmatprep.subr.bf16.mxu0 0
        %504 = vmatpush1.bf16.msra.mxu0 0
        %505 = vmatprep.mubr.bf16.mxu0 0
        %506 = vmatmul.mubr.bf16.gmra.mrb[0].mxu0 %v417
        %v507 = vpop.f32.mrb[0].mxu0
        %v508 = vadd.f32 0.0, %v507
        %v509 = vpop.f32.mrb[0].mxu0
        %v510 = vpop.f32.mrb[0].mxu0
        %v511 = vadd.f32 0.0, %v510
        %v512 = vpop.f32.mrb[0].mxu0
        %513 = vmatprep.mubr.bf16.mxu0 0
        %514 = vmatmul.mubr.bf16.gmra.mrb[0].mxu0 %v418
        %v515 = vpop.f32.mrb[0].mxu0
        %v516 = vadd.f32 0.0, %v515
        %v517 = vpop.f32.mrb[0].mxu0
        %v518 = vpop.f32.mrb[0].mxu0
        %v519 = vadd.f32 0.0, %v518
        %v520 = vpop.f32.mrb[0].mxu0
        %521 = vmatprep.mubr.bf16.mxu0 0
        %522 = vmatmul.mubr.bf16.gmra.mrb[0].mxu0 %v419
        %v523 = vpop.f32.mrb[0].mxu0
        %v524 = vadd.f32 0.0, %v523
        %v525 = vpop.f32.mrb[0].mxu0
        %v526 = vpop.f32.mrb[0].mxu0
        %v527 = vadd.f32 0.0, %v526
        %v528 = vpop.f32.mrb[0].mxu0
        %529 = vmatprep.mubr.bf16.mxu0 0
        %530 = vmatmul.mubr.bf16.gmra.mrb[0].mxu0 %v420
        %v531 = vpop.f32.mrb[0].mxu0
        %v532 = vadd.f32 0.0, %v531
        %v533 = vpop.f32.mrb[0].mxu0
        %v534 = vpop.f32.mrb[0].mxu0
        %v535 = vadd.f32 0.0, %v534
        %v536 = vpop.f32.mrb[0].mxu0
        %537 = vdwg.mxu0
        %v538 = vld [vmem:[#allocation8] sm:$0x1]
        %v540 = vlaneseq
        %v541 = vshrl.u32 %v540, 7
        %v542 = vsub.s32 0, %v541
        %v543 = vrot.slane %v538, %v542
        %v545 = vmul.f32 %v508, %v543
        %v546 = vmul.f32 %v511, %v543
        %v547 = vmul.f32 %v516, %v543
        %v548 = vmul.f32 %v519, %v543
        %v549 = vmul.f32 %v524, %v543
        %v550 = vmul.f32 %v527, %v543
        %v551 = vmul.f32 %v532, %v543
        %v552 = vmul.f32 %v535, %v543
        %v553 = vld [vmem:[#allocation9] sm:$0x1]
        %v555 = vlaneseq
        %v556 = vshrl.u32 %v555, 7
        %v557 = vsub.s32 0, %v556
        %v558 = vrot.slane %v553, %v557
        %v560 = vadd.f32 %v545, %v558
        %v561 = vadd.f32 %v546, %v558
        %v562 = vadd.f32 %v547, %v558
        %v563 = vadd.f32 %v548, %v558
        %v564 = vadd.f32 %v549, %v558
        %v565 = vadd.f32 %v550, %v558
        %v566 = vadd.f32 %v551, %v558
        %v567 = vadd.f32 %v552, %v558
        %v568 = vxor.u32 %v560, 2147483648
        %v569 = vxor.u32 %v561, 2147483648
        %v570 = vxor.u32 %v562, 2147483648
        %v571 = vxor.u32 %v563, 2147483648
        %v572 = vxor.u32 %v564, 2147483648
        %v573 = vxor.u32 %v565, 2147483648
        %v574 = vxor.u32 %v566, 2147483648
        %v575 = vxor.u32 %v567, 2147483648
        %v576 = vmul.f32 %v568, 1.442695
        %v577 = vpow.pop %v576
        %v578 = vmul.f32 %v569, 1.442695
        %v579 = vpow.pop %v578
        %v580 = vmul.f32 %v570, 1.442695
        %v581 = vpow.pop %v580
        %v582 = vmul.f32 %v571, 1.442695
        %v583 = vpow.pop %v582
        %v584 = vmul.f32 %v572, 1.442695
        %v585 = vpow.pop %v584
        %v586 = vmul.f32 %v573, 1.442695
        %v587 = vpow.pop %v586
        %v588 = vmul.f32 %v574, 1.442695
        %v589 = vpow.pop %v588
        %v590 = vmul.f32 %v575, 1.442695
        %v591 = vpow.pop %v590
        %v592 = vadd.f32 %v577, 1.0
        %v593 = vadd.f32 %v579, 1.0
        %v594 = vadd.f32 %v581, 1.0
        %v595 = vadd.f32 %v583, 1.0
        %v596 = vadd.f32 %v585, 1.0
        %v597 = vadd.f32 %v587, 1.0
        %v598 = vadd.f32 %v589, 1.0
        %v599 = vadd.f32 %v591, 1.0
        %v600 = vrcp.pop %v592
        %v601 = vmul.f32 1.0, %v600
        %v602 = vrcp.pop %v593
        %v603 = vmul.f32 1.0, %v602
        %v604 = vrcp.pop %v594
        %v605 = vmul.f32 1.0, %v604
        %v606 = vrcp.pop %v595
        %v607 = vmul.f32 1.0, %v606
        %v608 = vrcp.pop %v596
        %v609 = vmul.f32 1.0, %v608
        %v610 = vrcp.pop %v597
        %v611 = vmul.f32 1.0, %v610
        %v612 = vrcp.pop %v598
        %v613 = vmul.f32 1.0, %v612
        %v614 = vrcp.pop %v599
        %v615 = vmul.f32 1.0, %v614
        %v616 = vmul.f32 %v560, %v601
        %v617 = vmul.f32 %v561, %v603
        %v618 = vmul.f32 %v562, %v605
        %v619 = vmul.f32 %v563, %v607
        %v620 = vmul.f32 %v564, %v609
        %v621 = vmul.f32 %v565, %v611
        %v622 = vmul.f32 %v566, %v613
        %v623 = vmul.f32 %v567, %v615
        %v624 = vpack.c.bf16 %v617, %v616
        %v625 = vpack.c.bf16 %v619, %v618
        %v626 = vpack.c.bf16 %v621, %v620
        %v627 = vpack.c.bf16 %v623, %v622
        %v632 = vunpack.c.l.b16 %v624
        %v633 = vunpack.c.h.b16 %v624
        %v634 = vunpack.c.l.b16 %v625
        %v635 = vunpack.c.h.b16 %v625
        %v636 = vunpack.c.l.b16 %v626
        %v637 = vunpack.c.h.b16 %v626
        %v638 = vunpack.c.l.b16 %v627
        %v639 = vunpack.c.h.b16 %v627
        %640 = vst [vmem:[#allocation2] sm:$0xf] 0
        %641 = vst [vmem:[#allocation2 + $0x4] sm:$0xf] 0
        %642 = vst [vmem:[#allocation2 + $0x48] sm:$0xf] 0
        %643 = vst [vmem:[#allocation2 + $0x4c] sm:$0xf] 0
        %644 = vst [vmem:[#allocation2 + $0x50] sm:$0xf] 0
        %v645 = vpack.c.b16 %v632, %v632
        %v646 = vpack.c.b16 %v633, %v633
        %v647 = vpack.c.b16 %v634, %v634
        %v648 = vpack.c.b16 %v635, %v635
        %v649 = vpack.c.b16 %v636, %v636
        %v650 = vpack.c.b16 %v637, %v637
        %v651 = vpack.c.b16 %v638, %v638
        %v652 = vpack.c.b16 %v639, %v639
        %v654 = vshrl.u32 %v645, 16
        %v656 = vrot.slane %v654, 7
        %v657 = vshll.u32 %v645, 16
        %v659 = vor.u32 %v656, %v657
        %v661 = vshrl.u32 %v646, 16
        %v663 = vrot.slane %v661, 7
        %v664 = vshll.u32 %v646, 16
        %v666 = vor.u32 %v663, %v664
        %v668 = vshrl.u32 %v647, 16
        %v670 = vrot.slane %v668, 7
        %v671 = vshll.u32 %v647, 16
        %v673 = vor.u32 %v670, %v671
        %v675 = vshrl.u32 %v648, 16
        %v677 = vrot.slane %v675, 7
        %v678 = vshll.u32 %v648, 16
        %v680 = vor.u32 %v677, %v678
        %v682 = vshrl.u32 %v649, 16
        %v684 = vrot.slane %v682, 7
        %v685 = vshll.u32 %v649, 16
        %v687 = vor.u32 %v684, %v685
        %v689 = vshrl.u32 %v650, 16
        %v691 = vrot.slane %v689, 7
        %v692 = vshll.u32 %v650, 16
        %v694 = vor.u32 %v691, %v692
        %v696 = vshrl.u32 %v651, 16
        %v698 = vrot.slane %v696, 7
        %v699 = vshll.u32 %v651, 16
        %v701 = vor.u32 %v698, %v699
        %v703 = vshrl.u32 %v652, 16
        %v705 = vrot.slane %v703, 7
        %v706 = vshll.u32 %v652, 16
        %v708 = vor.u32 %v705, %v706
        %vm717 = vcmask 1040384
        %vm718 = vsmask.f32 256
        %vm719 = vmand %vm717, %vm718
        %v720 = vsel %vm719, 0, %v659
        %v721 = vsel %vm719, 0, %v666
        %v722 = vsel %vm719, 0, %v673
        %v723 = vsel %vm719, 0, %v680
        %v724 = vsel %vm719, 0, %v687
        %v725 = vsel %vm719, 0, %v694
        %v726 = vsel %vm719, 0, %v701
        %v727 = vsel %vm719, 0, %v708
        %vm728 = vcmask 1044480
        %vm729 = vsmask.f32 4352
        %vm730 = vmand %vm728, %vm729
        %v731 = vsel %vm730, %v720, 0
        %v732 = vsel %vm730, %v721, 0
        %v733 = vsel %vm730, %v722, 0
        %v734 = vsel %vm730, %v723, 0
        %v735 = vsel %vm730, %v724, 0
        %v736 = vsel %vm730, %v725, 0
        %v737 = vsel %vm730, %v726, 0
        %v738 = vsel %vm730, %v727, 0
        %v747 = vunpack.c.l.b16 %v731
        %v748 = vunpack.c.h.b16 %v731
        %v749 = vunpack.c.l.b16 %v732
        %v750 = vunpack.c.h.b16 %v732
        %v751 = vunpack.c.l.b16 %v733
        %v752 = vunpack.c.h.b16 %v733
        %v753 = vunpack.c.l.b16 %v734
        %v754 = vunpack.c.h.b16 %v734
        %v755 = vunpack.c.l.b16 %v735
        %v756 = vunpack.c.h.b16 %v735
        %v757 = vunpack.c.l.b16 %v736
        %v758 = vunpack.c.h.b16 %v736
        %v759 = vunpack.c.l.b16 %v737
        %v760 = vunpack.c.h.b16 %v737
        %v761 = vunpack.c.l.b16 %v738
        %v762 = vunpack.c.h.b16 %v738
        %v763 = vpack.c.b16 %v747, %v747
        %v764 = vpack.c.b16 %v748, %v748
        %v765 = vpack.c.b16 %v749, %v749
        %v766 = vpack.c.b16 %v750, %v750
        %v767 = vpack.c.b16 %v751, %v751
        %v768 = vpack.c.b16 %v752, %v752
        %v769 = vpack.c.b16 %v753, %v753
        %v770 = vpack.c.b16 %v754, %v754
        %v771 = vpack.c.b16 %v755, %v755
        %v772 = vpack.c.b16 %v756, %v756
        %v773 = vpack.c.b16 %v757, %v757
        %v774 = vpack.c.b16 %v758, %v758
        %v775 = vpack.c.b16 %v759, %v759
        %v776 = vpack.c.b16 %v760, %v760
        %v777 = vpack.c.b16 %v761, %v761
        %v778 = vpack.c.b16 %v762, %v762
        %795 = vst [vmem:[#allocation2 + $0x8] sm:$0xf] %v763
        %796 = vst [vmem:[#allocation2 + $0xc] sm:$0xf] %v764
        %797 = vst [vmem:[#allocation2 + $0x10] sm:$0xf] %v765
        %798 = vst [vmem:[#allocation2 + $0x14] sm:$0xf] %v766
        %799 = vst [vmem:[#allocation2 + $0x18] sm:$0xf] %v767
        %800 = vst [vmem:[#allocation2 + $0x1c] sm:$0xf] %v768
        %801 = vst [vmem:[#allocation2 + $0x20] sm:$0xf] %v769
        %802 = vst [vmem:[#allocation2 + $0x24] sm:$0xf] %v770
        %803 = vst [vmem:[#allocation2 + $0x28] sm:$0xf] %v771
        %804 = vst [vmem:[#allocation2 + $0x2c] sm:$0xf] %v772
        %805 = vst [vmem:[#allocation2 + $0x30] sm:$0xf] %v773
        %806 = vst [vmem:[#allocation2 + $0x34] sm:$0xf] %v774
        %807 = vst [vmem:[#allocation2 + $0x38] sm:$0xf] %v775
        %808 = vst [vmem:[#allocation2 + $0x3c] sm:$0xf] %v776
        %809 = vst [vmem:[#allocation2 + $0x40] sm:$0xf] %v777
        %810 = vst [vmem:[#allocation2 + $0x44] sm:$0xf] %v778
        %v811 = vld [vmem:[#allocation2] sm:$0xf]
        %v812 = vld [vmem:[#allocation2 + $0x4] sm:$0xf]
        %v813 = vld [vmem:[#allocation2 + $0x8] sm:$0xf]
        %v814 = vld [vmem:[#allocation2 + $0xc] sm:$0xf]
        %v815 = vld [vmem:[#allocation2 + $0x10] sm:$0xf]
        %v816 = vld [vmem:[#allocation2 + $0x14] sm:$0xf]
        %v817 = vld [vmem:[#allocation2 + $0x18] sm:$0xf]
        %v818 = vld [vmem:[#allocation2 + $0x1c] sm:$0xf]
        %v819 = vld [vmem:[#allocation2 + $0x20] sm:$0xf]
        %v820 = vld [vmem:[#allocation2 + $0x24] sm:$0xf]
        %v821 = vld [vmem:[#allocation2 + $0x28] sm:$0xf]
        %v822 = vld [vmem:[#allocation2 + $0x2c] sm:$0xf]
        %v823 = vld [vmem:[#allocation2 + $0x30] sm:$0xf]
        %v824 = vld [vmem:[#allocation2 + $0x34] sm:$0xf]
        %v825 = vld [vmem:[#allocation2 + $0x38] sm:$0xf]
        %v826 = vld [vmem:[#allocation2 + $0x3c] sm:$0xf]
        %v827 = vld [vmem:[#allocation11] sm:$0xf]
        %v828 = vld [vmem:[#allocation11 + $0x4] sm:$0xf]
        %v829 = vld [vmem:[#allocation11 + $0x8] sm:$0xf]
        %v830 = vld [vmem:[#allocation11 + $0xc] sm:$0xf]
        %v831 = vld [vmem:[#allocation11 + $0x10] sm:$0xf]
        %v832 = vld [vmem:[#allocation11 + $0x14] sm:$0xf]
        %v833 = vld [vmem:[#allocation11 + $0x18] sm:$0xf]
        %v834 = vld [vmem:[#allocation11 + $0x1c] sm:$0xf]
        %v835 = vld [vmem:[#allocation11 + $0x20] sm:$0xf]
        %v836 = vld [vmem:[#allocation11 + $0x24] sm:$0xf]
        %v837 = vld [vmem:[#allocation11 + $0x28] sm:$0xf]
        %v838 = vld [vmem:[#allocation11 + $0x2c] sm:$0xf]
        %v839 = vld [vmem:[#allocation11 + $0x30] sm:$0xf]
        %v840 = vld [vmem:[#allocation11 + $0x34] sm:$0xf]
        %v841 = vld [vmem:[#allocation11 + $0x38] sm:$0xf]
        %v842 = vld [vmem:[#allocation11 + $0x3c] sm:$0xf]
        %v843 = vld [vmem:[#allocation2 + $0x40] sm:$0x1]
        %s844 = scalar_lea.vmem [#allocation11], 64
        %v845 = vld [vmem:[%s844] sm:$0xf]
        %v846 = vld [vmem:[%s844 + $0x4] sm:$0xf]
        %v847 = vld [vmem:[%s844 + $0x8] sm:$0xf]
        %v848 = vld [vmem:[%s844 + $0xc] sm:$0xf]
        %v849 = vld [vmem:[%s844 + $0x10] sm:$0xf]
        %v850 = vld [vmem:[%s844 + $0x14] sm:$0xf]
        %v851 = vld [vmem:[%s844 + $0x18] sm:$0xf]
        %v852 = vld [vmem:[%s844 + $0x1c] sm:$0xf]
        %v853 = vld [vmem:[%s844 + $0x20] sm:$0xf]
        %v854 = vld [vmem:[%s844 + $0x24] sm:$0xf]
        %v855 = vld [vmem:[%s844 + $0x28] sm:$0xf]
        %v856 = vld [vmem:[%s844 + $0x2c] sm:$0xf]
        %v857 = vld [vmem:[%s844 + $0x30] sm:$0xf]
        %v858 = vld [vmem:[%s844 + $0x34] sm:$0xf]
        %v859 = vld [vmem:[%s844 + $0x38] sm:$0xf]
        %v860 = vld [vmem:[%s844 + $0x3c] sm:$0xf]
        %v878 = vunpack.c.l.b16 %v811
        %v879 = vunpack.c.l.b16 %v812
        %v880 = vunpack.c.l.b16 %v813
        %v881 = vunpack.c.l.b16 %v814
        %v882 = vunpack.c.l.b16 %v815
        %v883 = vunpack.c.l.b16 %v816
        %v884 = vunpack.c.l.b16 %v817
        %v885 = vunpack.c.l.b16 %v818
        %v886 = vunpack.c.l.b16 %v819
        %v887 = vunpack.c.l.b16 %v820
        %v888 = vunpack.c.l.b16 %v821
        %v889 = vunpack.c.l.b16 %v822
        %v890 = vunpack.c.l.b16 %v823
        %v891 = vunpack.c.l.b16 %v824
        %v892 = vunpack.c.l.b16 %v825
        %v893 = vunpack.c.l.b16 %v826
        %v894 = vunpack.c.l.b16 %v843
        %v895 = vpack.c.b16 %v879, %v878
        %v896 = vpack.c.b16 %v881, %v880
        %v897 = vpack.c.b16 %v883, %v882
        %v898 = vpack.c.b16 %v885, %v884
        %v899 = vpack.c.b16 %v887, %v886
        %v900 = vpack.c.b16 %v889, %v888
        %v901 = vpack.c.b16 %v891, %v890
        %v902 = vpack.c.b16 %v893, %v892
        %v903 = vpack.c.b16 %v894, %v894
        %vm904 = vsmask.f32 7424
        %v906 = vshrl.u32 %v895, 16
        %v908 = vshll.u32 %v895, 16
        %v910 = vrot.slane %v908, 1
        %v911 = vor.u32 %v906, %v910
        %v913 = vshll.u32 %v896, 16
        %v915 = vrot.slane %v913, 1
        %v916 = vsel %vm904, %v911, %v915
        %v917 = vshrl.u32 %v896, 16
        %v919 = vor.u32 %v917, %v915
        %v921 = vshll.u32 %v897, 16
        %v923 = vrot.slane %v921, 1
        %v924 = vsel %vm904, %v919, %v923
        %v925 = vshrl.u32 %v897, 16
        %v927 = vor.u32 %v925, %v923
        %v929 = vshll.u32 %v898, 16
        %v931 = vrot.slane %v929, 1
        %v932 = vsel %vm904, %v927, %v931
        %v933 = vshrl.u32 %v898, 16
        %v935 = vor.u32 %v933, %v931
        %v937 = vshll.u32 %v899, 16
        %v939 = vrot.slane %v937, 1
        %v940 = vsel %vm904, %v935, %v939
        %v941 = vshrl.u32 %v899, 16
        %v943 = vor.u32 %v941, %v939
        %v945 = vshll.u32 %v900, 16
        %v947 = vrot.slane %v945, 1
        %v948 = vsel %vm904, %v943, %v947
        %v949 = vshrl.u32 %v900, 16
        %v951 = vor.u32 %v949, %v947
        %v953 = vshll.u32 %v901, 16
        %v955 = vrot.slane %v953, 1
        %v956 = vsel %vm904, %v951, %v955
        %v957 = vshrl.u32 %v901, 16
        %v959 = vor.u32 %v957, %v955
        %v961 = vshll.u32 %v902, 16
        %v963 = vrot.slane %v961, 1
        %v964 = vsel %vm904, %v959, %v963
        %v965 = vshrl.u32 %v902, 16
        %v967 = vor.u32 %v965, %v963
        %v969 = vshll.u32 %v903, 16
        %v971 = vrot.slane %v969, 1
        %v972 = vsel %vm904, %v967, %v971
        %v997 = vunpack.c.l.b16 %v845
        %v998 = vunpack.c.l.b16 %v846
        %v999 = vunpack.c.l.b16 %v847
        %v1000 = vunpack.c.l.b16 %v848
        %v1001 = vunpack.c.l.b16 %v849
        %v1002 = vunpack.c.l.b16 %v850
        %v1003 = vunpack.c.l.b16 %v851
        %v1004 = vunpack.c.l.b16 %v852
        %v1005 = vunpack.c.l.b16 %v853
        %v1006 = vunpack.c.l.b16 %v854
        %v1007 = vunpack.c.l.b16 %v855
        %v1008 = vunpack.c.l.b16 %v856
        %v1009 = vunpack.c.l.b16 %v857
        %v1010 = vunpack.c.l.b16 %v858
        %v1011 = vunpack.c.l.b16 %v859
        %v1012 = vunpack.c.l.b16 %v860
        %v1013 = vpack.c.b16 %v998, %v997
        %v1014 = vpack.c.b16 %v1000, %v999
        %v1015 = vpack.c.b16 %v1002, %v1001
        %v1016 = vpack.c.b16 %v1004, %v1003
        %v1017 = vpack.c.b16 %v1006, %v1005
        %v1018 = vpack.c.b16 %v1008, %v1007
        %v1019 = vpack.c.b16 %v1010, %v1009
        %v1020 = vpack.c.b16 %v1012, %v1011
        %1029 = vmatprep.subr.bf16.mxu0 0
        %1030 = vmatpush1.bf16.msra.mxu0 %v1013
        %1031 = vmatprep.subr.bf16.mxu0 0
        %1032 = vmatpush1.bf16.msra.mxu0 %v1014
        %1033 = vmatprep.subr.bf16.mxu0 0
        %1034 = vmatpush1.bf16.msra.mxu0 %v1015
        %1035 = vmatprep.subr.bf16.mxu0 0
        %1036 = vmatpush1.bf16.msra.mxu0 %v1016
        %1037 = vmatprep.subr.bf16.mxu0 0
        %1038 = vmatpush1.bf16.msra.mxu0 %v1017
        %1039 = vmatprep.subr.bf16.mxu0 0
        %1040 = vmatpush1.bf16.msra.mxu0 %v1018
        %1041 = vmatprep.subr.bf16.mxu0 0
        %1042 = vmatpush1.bf16.msra.mxu0 %v1019
        %1043 = vmatprep.subr.bf16.mxu0 0
        %1044 = vmatpush1.bf16.msra.mxu0 %v1020
        %1045 = vmatprep.subr.bf16.mxu0 0
        %1046 = vmatpush1.bf16.msra.mxu0 0
        %1047 = vmatprep.subr.bf16.mxu0 0
        %1048 = vmatpush1.bf16.msra.mxu0 0
        %1049 = vmatprep.subr.bf16.mxu0 0
        %1050 = vmatpush1.bf16.msra.mxu0 0
        %1051 = vmatprep.subr.bf16.mxu0 0
        %1052 = vmatpush1.bf16.msra.mxu0 0
        %1053 = vmatprep.subr.bf16.mxu0 0
        %1054 = vmatpush1.bf16.msra.mxu0 0
        %1055 = vmatprep.subr.bf16.mxu0 0
        %1056 = vmatpush1.bf16.msra.mxu0 0
        %1057 = vmatprep.subr.bf16.mxu0 0
        %1058 = vmatpush1.bf16.msra.mxu0 0
        %1059 = vmatprep.subr.bf16.mxu0 0
        %1060 = vmatpush1.bf16.msra.mxu0 0
        %1061 = vmatprep.mubr.bf16.mxu0 0
        %1062 = vmatmul.mubr.bf16.gmra.mrb[0].mxu0 %v916
        %v1063 = vpop.f32.mrb[0].mxu0
        %v1064 = vadd.f32 0.0, %v1063
        %v1065 = vpop.f32.mrb[0].mxu0
        %v1066 = vpop.f32.mrb[0].mxu0
        %v1067 = vpop.f32.mrb[0].mxu0
        %1068 = vmatprep.mubr.bf16.mxu0 0
        %1069 = vmatmul.mubr.bf16.gmra.mrb[0].mxu0 %v924
        %v1070 = vpop.f32.mrb[0].mxu0
        %v1071 = vadd.f32 0.0, %v1070
        %v1072 = vpop.f32.mrb[0].mxu0
        %v1073 = vpop.f32.mrb[0].mxu0
        %v1074 = vpop.f32.mrb[0].mxu0
        %1075 = vmatprep.mubr.bf16.mxu0 0
        %1076 = vmatmul.mubr.bf16.gmra.mrb[0].mxu0 %v932
        %v1077 = vpop.f32.mrb[0].mxu0
        %v1078 = vadd.f32 0.0, %v1077
        %v1079 = vpop.f32.mrb[0].mxu0
        %v1080 = vpop.f32.mrb[0].mxu0
        %v1081 = vpop.f32.mrb[0].mxu0
        %1082 = vmatprep.mubr.bf16.mxu0 0
        %1083 = vmatmul.mubr.bf16.gmra.mrb[0].mxu0 %v940
        %v1084 = vpop.f32.mrb[0].mxu0
        %v1085 = vadd.f32 0.0, %v1084
        %v1086 = vpop.f32.mrb[0].mxu0
        %v1087 = vpop.f32.mrb[0].mxu0
        %v1088 = vpop.f32.mrb[0].mxu0
        %1089 = vmatprep.mubr.bf16.mxu0 0
        %1090 = vmatmul.mubr.bf16.gmra.mrb[0].mxu0 %v948
        %v1091 = vpop.f32.mrb[0].mxu0
        %v1092 = vadd.f32 0.0, %v1091
        %v1093 = vpop.f32.mrb[0].mxu0
        %v1094 = vpop.f32.mrb[0].mxu0
        %v1095 = vpop.f32.mrb[0].mxu0
        %1096 = vmatprep.mubr.bf16.mxu0 0
        %1097 = vmatmul.mubr.bf16.gmra.mrb[0].mxu0 %v956
        %v1098 = vpop.f32.mrb[0].mxu0
        %v1099 = vadd.f32 0.0, %v1098
        %v1100 = vpop.f32.mrb[0].mxu0
        %v1101 = vpop.f32.mrb[0].mxu0
        %v1102 = vpop.f32.mrb[0].mxu0
        %1103 = vmatprep.mubr.bf16.mxu0 0
        %1104 = vmatmul.mubr.bf16.gmra.mrb[0].mxu0 %v964
        %v1105 = vpop.f32.mrb[0].mxu0
        %v1106 = vadd.f32 0.0, %v1105
        %v1107 = vpop.f32.mrb[0].mxu0
        %v1108 = vpop.f32.mrb[0].mxu0
        %v1109 = vpop.f32.mrb[0].mxu0
        %1110 = vmatprep.mubr.bf16.mxu0 0
        %1111 = vmatmul.mubr.bf16.gmra.mrb[0].mxu0 %v972
        %v1112 = vpop.f32.mrb[0].mxu0
        %v1113 = vadd.f32 0.0, %v1112
        %v1114 = vpop.f32.mrb[0].mxu0
        %v1115 = vpop.f32.mrb[0].mxu0
        %v1116 = vpop.f32.mrb[0].mxu0
        %1117 = vdwg.mxu0
        %v1142 = vunpack.c.l.b16 %v827
        %v1143 = vunpack.c.l.b16 %v828
        %v1144 = vunpack.c.l.b16 %v829
        %v1145 = vunpack.c.l.b16 %v830
        %v1146 = vunpack.c.l.b16 %v831
        %v1147 = vunpack.c.l.b16 %v832
        %v1148 = vunpack.c.l.b16 %v833
        %v1149 = vunpack.c.l.b16 %v834
        %v1150 = vunpack.c.l.b16 %v835
        %v1151 = vunpack.c.l.b16 %v836
        %v1152 = vunpack.c.l.b16 %v837
        %v1153 = vunpack.c.l.b16 %v838
        %v1154 = vunpack.c.l.b16 %v839
        %v1155 = vunpack.c.l.b16 %v840
        %v1156 = vunpack.c.l.b16 %v841
        %v1157 = vunpack.c.l.b16 %v842
        %v1158 = vpack.c.b16 %v1143, %v1142
        %v1159 = vpack.c.b16 %v1145, %v1144
        %v1160 = vpack.c.b16 %v1147, %v1146
        %v1161 = vpack.c.b16 %v1149, %v1148
        %v1162 = vpack.c.b16 %v1151, %v1150
        %v1163 = vpack.c.b16 %v1153, %v1152
        %v1164 = vpack.c.b16 %v1155, %v1154
        %v1165 = vpack.c.b16 %v1157, %v1156
        %1174 = vmatprep.subr.bf16.mxu0 0
        %1175 = vmatpush1.bf16.msra.mxu0 %v1158
        %1176 = vmatprep.subr.bf16.mxu0 0
        %1177 = vmatpush1.bf16.msra.mxu0 %v1159
        %1178 = vmatprep.subr.bf16.mxu0 0
        %1179 = vmatpush1.bf16.msra.mxu0 %v1160
        %1180 = vmatprep.subr.bf16.mxu0 0
        %1181 = vmatpush1.bf16.msra.mxu0 %v1161
        %1182 = vmatprep.subr.bf16.mxu0 0
        %1183 = vmatpush1.bf16.msra.mxu0 %v1162
        %1184 = vmatprep.subr.bf16.mxu0 0
        %1185 = vmatpush1.bf16.msra.mxu0 %v1163
        %1186 = vmatprep.subr.bf16.mxu0 0
        %1187 = vmatpush1.bf16.msra.mxu0 %v1164
        %1188 = vmatprep.subr.bf16.mxu0 0
        %1189 = vmatpush1.bf16.msra.mxu0 %v1165
        %1190 = vmatprep.subr.bf16.mxu0 0
        %1191 = vmatpush1.bf16.msra.mxu0 0
        %1192 = vmatprep.subr.bf16.mxu0 0
        %1193 = vmatpush1.bf16.msra.mxu0 0
        %1194 = vmatprep.subr.bf16.mxu0 0
        %1195 = vmatpush1.bf16.msra.mxu0 0
        %1196 = vmatprep.subr.bf16.mxu0 0
        %1197 = vmatpush1.bf16.msra.mxu0 0
        %1198 = vmatprep.subr.bf16.mxu0 0
        %1199 = vmatpush1.bf16.msra.mxu0 0
        %1200 = vmatprep.subr.bf16.mxu0 0
        %1201 = vmatpush1.bf16.msra.mxu0 0
        %1202 = vmatprep.subr.bf16.mxu0 0
        %1203 = vmatpush1.bf16.msra.mxu0 0
        %1204 = vmatprep.subr.bf16.mxu0 0
        %1205 = vmatpush1.bf16.msra.mxu0 0
        %1206 = vmatprep.mubr.bf16.mxu0 0
        %1207 = vmatmul.mubr.bf16.gmra.mrb[0].mxu0 %v895
        %v1208 = vpop.f32.mrb[0].mxu0
        %v1209 = vadd.f32 %v1064, %v1208
        %v1210 = vpop.f32.mrb[0].mxu0
        %v1211 = vpop.f32.mrb[0].mxu0
        %v1212 = vpop.f32.mrb[0].mxu0
        %1213 = vmatprep.mubr.bf16.mxu0 0
        %1214 = vmatmul.mubr.bf16.gmra.mrb[0].mxu0 %v896
        %v1215 = vpop.f32.mrb[0].mxu0
        %v1216 = vadd.f32 %v1071, %v1215
        %v1217 = vpop.f32.mrb[0].mxu0
        %v1218 = vpop.f32.mrb[0].mxu0
        %v1219 = vpop.f32.mrb[0].mxu0
        %1220 = vmatprep.mubr.bf16.mxu0 0
        %1221 = vmatmul.mubr.bf16.gmra.mrb[0].mxu0 %v897
        %v1222 = vpop.f32.mrb[0].mxu0
        %v1223 = vadd.f32 %v1078, %v1222
        %v1224 = vpop.f32.mrb[0].mxu0
        %v1225 = vpop.f32.mrb[0].mxu0
        %v1226 = vpop.f32.mrb[0].mxu0
        %1227 = vmatprep.mubr.bf16.mxu0 0
        %1228 = vmatmul.mubr.bf16.gmra.mrb[0].mxu0 %v898
        %v1229 = vpop.f32.mrb[0].mxu0
        %v1230 = vadd.f32 %v1085, %v1229
        %v1231 = vpop.f32.mrb[0].mxu0
        %v1232 = vpop.f32.mrb[0].mxu0
        %v1233 = vpop.f32.mrb[0].mxu0
        %1234 = vmatprep.mubr.bf16.mxu0 0
        %1235 = vmatmul.mubr.bf16.gmra.mrb[0].mxu0 %v899
        %v1236 = vpop.f32.mrb[0].mxu0
        %v1237 = vadd.f32 %v1092, %v1236
        %v1238 = vpop.f32.mrb[0].mxu0
        %v1239 = vpop.f32.mrb[0].mxu0
        %v1240 = vpop.f32.mrb[0].mxu0
        %1241 = vmatprep.mubr.bf16.mxu0 0
        %1242 = vmatmul.mubr.bf16.gmra.mrb[0].mxu0 %v900
        %v1243 = vpop.f32.mrb[0].mxu0
        %v1244 = vadd.f32 %v1099, %v1243
        %v1245 = vpop.f32.mrb[0].mxu0
        %v1246 = vpop.f32.mrb[0].mxu0
        %v1247 = vpop.f32.mrb[0].mxu0
        %1248 = vmatprep.mubr.bf16.mxu0 0
        %1249 = vmatmul.mubr.bf16.gmra.mrb[0].mxu0 %v901
        %v1250 = vpop.f32.mrb[0].mxu0
        %v1251 = vadd.f32 %v1106, %v1250
        %v1252 = vpop.f32.mrb[0].mxu0
        %v1253 = vpop.f32.mrb[0].mxu0
        %v1254 = vpop.f32.mrb[0].mxu0
        %1255 = vmatprep.mubr.bf16.mxu0 0
        %1256 = vmatmul.mubr.bf16.gmra.mrb[0].mxu0 %v902
        %v1257 = vpop.f32.mrb[0].mxu0
        %v1258 = vadd.f32 %v1113, %v1257
        %v1259 = vpop.f32.mrb[0].mxu0
        %v1260 = vpop.f32.mrb[0].mxu0
        %v1261 = vpop.f32.mrb[0].mxu0
        %1262 = vdwg.mxu0
        %v1263 = vld [vmem:[#allocation2] sm:$0xe]
        %s1264 = scalar_lea.vmem [#allocation11], 128
        %v1265 = vld [vmem:[%s1264] sm:$0xf]
        %v1266 = vld [vmem:[%s1264 + $0x4] sm:$0xf]
        %v1267 = vld [vmem:[%s1264 + $0x8] sm:$0xf]
        %v1268 = vld [vmem:[%s1264 + $0xc] sm:$0xf]
        %v1269 = vld [vmem:[%s1264 + $0x10] sm:$0xf]
        %v1270 = vld [vmem:[%s1264 + $0x14] sm:$0xf]
        %v1271 = vld [vmem:[%s1264 + $0x18] sm:$0xf]
        %v1272 = vld [vmem:[%s1264 + $0x1c] sm:$0xf]
        %v1273 = vld [vmem:[%s1264 + $0x20] sm:$0xf]
        %v1274 = vld [vmem:[%s1264 + $0x24] sm:$0xf]
        %v1275 = vld [vmem:[%s1264 + $0x28] sm:$0xf]
        %v1276 = vld [vmem:[%s1264 + $0x2c] sm:$0xf]
        %v1277 = vld [vmem:[%s1264 + $0x30] sm:$0xf]
        %v1278 = vld [vmem:[%s1264 + $0x34] sm:$0xf]
        %v1279 = vld [vmem:[%s1264 + $0x38] sm:$0xf]
        %v1280 = vld [vmem:[%s1264 + $0x3c] sm:$0xf]
        %v1282 = vunpack.c.l.b16 %v1263
        %v1283 = vpack.c.b16 %v879, %v1282
        %vm1284 = vcmask 1046528
        %v1285 = vrot.slane %v1283, 1
        %v1286 = vrot.slane %v896, 1
        %v1287 = vsel %vm1284, %v1285, %v1286
        %v1288 = vrot.slane %v897, 1
        %v1289 = vsel %vm1284, %v1286, %v1288
        %v1290 = vrot.slane %v898, 1
        %v1291 = vsel %vm1284, %v1288, %v1290
        %v1292 = vrot.slane %v899, 1
        %v1293 = vsel %vm1284, %v1290, %v1292
        %v1294 = vrot.slane %v900, 1
        %v1295 = vsel %vm1284, %v1292, %v1294
        %v1296 = vrot.slane %v901, 1
        %v1297 = vsel %vm1284, %v1294, %v1296
        %v1298 = vrot.slane %v902, 1
        %v1299 = vsel %vm1284, %v1296, %v1298
        %v1300 = vrot.slane %v903, 1
        %v1301 = vsel %vm1284, %v1298, %v1300
        %v1326 = vunpack.c.l.b16 %v1265
        %v1327 = vunpack.c.l.b16 %v1266
        %v1328 = vunpack.c.l.b16 %v1267
        %v1329 = vunpack.c.l.b16 %v1268
        %v1330 = vunpack.c.l.b16 %v1269
        %v1331 = vunpack.c.l.b16 %v1270
        %v1332 = vunpack.c.l.b16 %v1271
        %v1333 = vunpack.c.l.b16 %v1272
        %v1334 = vunpack.c.l.b16 %v1273
        %v1335 = vunpack.c.l.b16 %v1274
        %v1336 = vunpack.c.l.b16 %v1275
        %v1337 = vunpack.c.l.b16 %v1276
        %v1338 = vunpack.c.l.b16 %v1277
        %v1339 = vunpack.c.l.b16 %v1278
        %v1340 = vunpack.c.l.b16 %v1279
        %v1341 = vunpack.c.l.b16 %v1280
        %v1342 = vpack.c.b16 %v1327, %v1326
        %v1343 = vpack.c.b16 %v1329, %v1328
        %v1344 = vpack.c.b16 %v1331, %v1330
        %v1345 = vpack.c.b16 %v1333, %v1332
        %v1346 = vpack.c.b16 %v1335, %v1334
        %v1347 = vpack.c.b16 %v1337, %v1336
        %v1348 = vpack.c.b16 %v1339, %v1338
        %v1349 = vpack.c.b16 %v1341, %v1340
        %1358 = vmatprep.subr.bf16.mxu0 0
        %1359 = vmatpush1.bf16.msra.mxu0 %v1342
        %1360 = vmatprep.subr.bf16.mxu0 0
        %1361 = vmatpush1.bf16.msra.mxu0 %v1343
        %1362 = vmatprep.subr.bf16.mxu0 0
        %1363 = vmatpush1.bf16.msra.mxu0 %v1344
        %1364 = vmatprep.subr.bf16.mxu0 0
        %1365 = vmatpush1.bf16.msra.mxu0 %v1345
        %1366 = vmatprep.subr.bf16.mxu0 0
        %1367 = vmatpush1.bf16.msra.mxu0 %v1346
        %1368 = vmatprep.subr.bf16.mxu0 0
        %1369 = vmatpush1.bf16.msra.mxu0 %v1347
        %1370 = vmatprep.subr.bf16.mxu0 0
        %1371 = vmatpush1.bf16.msra.mxu0 %v1348
        %1372 = vmatprep.subr.bf16.mxu0 0
        %1373 = vmatpush1.bf16.msra.mxu0 %v1349
        %1374 = vmatprep.subr.bf16.mxu0 0
        %1375 = vmatpush1.bf16.msra.mxu0 0
        %1376 = vmatprep.subr.bf16.mxu0 0
        %1377 = vmatpush1.bf16.msra.mxu0 0
        %1378 = vmatprep.subr.bf16.mxu0 0
        %1379 = vmatpush1.bf16.msra.mxu0 0
        %1380 = vmatprep.subr.bf16.mxu0 0
        %1381 = vmatpush1.bf16.msra.mxu0 0
        %1382 = vmatprep.subr.bf16.mxu0 0
        %1383 = vmatpush1.bf16.msra.mxu0 0
        %1384 = vmatprep.subr.bf16.mxu0 0
        %1385 = vmatpush1.bf16.msra.mxu0 0
        %1386 = vmatprep.subr.bf16.mxu0 0
        %1387 = vmatpush1.bf16.msra.mxu0 0
        %1388 = vmatprep.subr.bf16.mxu0 0
        %1389 = vmatpush1.bf16.msra.mxu0 0
        %1390 = vmatprep.mubr.bf16.mxu0 0
        %1391 = vmatmul.mubr.bf16.gmra.mrb[0].mxu0 %v1287
        %v1392 = vpop.f32.mrb[0].mxu0
        %v1393 = vadd.f32 0.0, %v1392
        %v1394 = vpop.f32.mrb[0].mxu0
        %v1395 = vpop.f32.mrb[0].mxu0
        %v1396 = vpop.f32.mrb[0].mxu0
        %1397 = vmatprep.mubr.bf16.mxu0 0
        %1398 = vmatmul.mubr.bf16.gmra.mrb[0].mxu0 %v1289
        %v1399 = vpop.f32.mrb[0].mxu0
        %v1400 = vadd.f32 0.0, %v1399
        %v1401 = vpop.f32.mrb[0].mxu0
        %v1402 = vpop.f32.mrb[0].mxu0
        %v1403 = vpop.f32.mrb[0].mxu0
        %1404 = vmatprep.mubr.bf16.mxu0 0
        %1405 = vmatmul.mubr.bf16.gmra.mrb[0].mxu0 %v1291
        %v1406 = vpop.f32.mrb[0].mxu0
        %v1407 = vadd.f32 0.0, %v1406
        %v1408 = vpop.f32.mrb[0].mxu0
        %v1409 = vpop.f32.mrb[0].mxu0
        %v1410 = vpop.f32.mrb[0].mxu0
        %1411 = vmatprep.mubr.bf16.mxu0 0
        %1412 = vmatmul.mubr.bf16.gmra.mrb[0].mxu0 %v1293
        %v1413 = vpop.f32.mrb[0].mxu0
        %v1414 = vadd.f32 0.0, %v1413
        %v1415 = vpop.f32.mrb[0].mxu0
        %v1416 = vpop.f32.mrb[0].mxu0
        %v1417 = vpop.f32.mrb[0].mxu0
        %1418 = vmatprep.mubr.bf16.mxu0 0
        %1419 = vmatmul.mubr.bf16.gmra.mrb[0].mxu0 %v1295
        %v1420 = vpop.f32.mrb[0].mxu0
        %v1421 = vadd.f32 0.0, %v1420
        %v1422 = vpop.f32.mrb[0].mxu0
        %v1423 = vpop.f32.mrb[0].mxu0
        %v1424 = vpop.f32.mrb[0].mxu0
        %1425 = vmatprep.mubr.bf16.mxu0 0
        %1426 = vmatmul.mubr.bf16.gmra.mrb[0].mxu0 %v1297
        %v1427 = vpop.f32.mrb[0].mxu0
        %v1428 = vadd.f32 0.0, %v1427
        %v1429 = vpop.f32.mrb[0].mxu0
        %v1430 = vpop.f32.mrb[0].mxu0
        %v1431 = vpop.f32.mrb[0].mxu0
        %1432 = vmatprep.mubr.bf16.mxu0 0
        %1433 = vmatmul.mubr.bf16.gmra.mrb[0].mxu0 %v1299
        %v1434 = vpop.f32.mrb[0].mxu0
        %v1435 = vadd.f32 0.0, %v1434
        %v1436 = vpop.f32.mrb[0].mxu0
        %v1437 = vpop.f32.mrb[0].mxu0
        %v1438 = vpop.f32.mrb[0].mxu0
        %1439 = vmatprep.mubr.bf16.mxu0 0
        %1440 = vmatmul.mubr.bf16.gmra.mrb[0].mxu0 %v1301
        %v1441 = vpop.f32.mrb[0].mxu0
        %v1442 = vadd.f32 0.0, %v1441
        %v1443 = vpop.f32.mrb[0].mxu0
        %v1444 = vpop.f32.mrb[0].mxu0
        %v1445 = vpop.f32.mrb[0].mxu0
        %1446 = vdwg.mxu0
        %v1447 = vadd.f32 %v1209, %v1393
        %v1448 = vadd.f32 %v1216, %v1400
        %v1449 = vadd.f32 %v1223, %v1407
        %v1450 = vadd.f32 %v1230, %v1414
        %v1451 = vadd.f32 %v1237, %v1421
        %v1452 = vadd.f32 %v1244, %v1428
        %v1453 = vadd.f32 %v1251, %v1435
        %v1454 = vadd.f32 %v1258, %v1442
        %v1455 = vld [vmem:[#allocation2 + $0x8] sm:$0xf]
        %v1456 = vld [vmem:[#allocation2 + $0xc] sm:$0xf]
        %v1457 = vld [vmem:[#allocation2 + $0x10] sm:$0xf]
        %v1458 = vld [vmem:[#allocation2 + $0x14] sm:$0xf]
        %v1459 = vld [vmem:[#allocation2 + $0x18] sm:$0xf]
        %v1460 = vld [vmem:[#allocation2 + $0x1c] sm:$0xf]
        %v1461 = vld [vmem:[#allocation2 + $0x20] sm:$0xf]
        %v1462 = vld [vmem:[#allocation2 + $0x24] sm:$0xf]
        %v1463 = vld [vmem:[#allocation2 + $0x28] sm:$0xf]
        %v1464 = vld [vmem:[#allocation2 + $0x2c] sm:$0xf]
        %v1465 = vld [vmem:[#allocation2 + $0x30] sm:$0xf]
        %v1466 = vld [vmem:[#allocation2 + $0x34] sm:$0xf]
        %v1467 = vld [vmem:[#allocation2 + $0x38] sm:$0xf]
        %v1468 = vld [vmem:[#allocation2 + $0x3c] sm:$0xf]
        %v1469 = vld [vmem:[#allocation2 + $0x40] sm:$0xf]
        %v1470 = vld [vmem:[#allocation2 + $0x44] sm:$0xf]
        %s1471 = scalar_lea.vmem [#allocation11], 192
        %v1472 = vld [vmem:[%s1471] sm:$0xf]
        %v1473 = vld [vmem:[%s1471 + $0x4] sm:$0xf]
        %v1474 = vld [vmem:[%s1471 + $0x8] sm:$0xf]
        %v1475 = vld [vmem:[%s1471 + $0xc] sm:$0xf]
        %v1476 = vld [vmem:[%s1471 + $0x10] sm:$0xf]
        %v1477 = vld [vmem:[%s1471 + $0x14] sm:$0xf]
        %v1478 = vld [vmem:[%s1471 + $0x18] sm:$0xf]
        %v1479 = vld [vmem:[%s1471 + $0x1c] sm:$0xf]
        %v1480 = vld [vmem:[%s1471 + $0x20] sm:$0xf]
        %v1481 = vld [vmem:[%s1471 + $0x24] sm:$0xf]
        %v1482 = vld [vmem:[%s1471 + $0x28] sm:$0xf]
        %v1483 = vld [vmem:[%s1471 + $0x2c] sm:$0xf]
        %v1484 = vld [vmem:[%s1471 + $0x30] sm:$0xf]
        %v1485 = vld [vmem:[%s1471 + $0x34] sm:$0xf]
        %v1486 = vld [vmem:[%s1471 + $0x38] sm:$0xf]
        %v1487 = vld [vmem:[%s1471 + $0x3c] sm:$0xf]
        %v1504 = vunpack.c.l.b16 %v1455
        %v1505 = vunpack.c.l.b16 %v1456
        %v1506 = vunpack.c.l.b16 %v1457
        %v1507 = vunpack.c.l.b16 %v1458
        %v1508 = vunpack.c.l.b16 %v1459
        %v1509 = vunpack.c.l.b16 %v1460
        %v1510 = vunpack.c.l.b16 %v1461
        %v1511 = vunpack.c.l.b16 %v1462
        %v1512 = vunpack.c.l.b16 %v1463
        %v1513 = vunpack.c.l.b16 %v1464
        %v1514 = vunpack.c.l.b16 %v1465
        %v1515 = vunpack.c.l.b16 %v1466
        %v1516 = vunpack.c.l.b16 %v1467
        %v1517 = vunpack.c.l.b16 %v1468
        %v1518 = vunpack.c.l.b16 %v1469
        %v1519 = vunpack.c.l.b16 %v1470
        %v1520 = vpack.c.b16 %v1505, %v1504
        %v1521 = vpack.c.b16 %v1507, %v1506
        %v1522 = vpack.c.b16 %v1509, %v1508
        %v1523 = vpack.c.b16 %v1511, %v1510
        %v1524 = vpack.c.b16 %v1513, %v1512
        %v1525 = vpack.c.b16 %v1515, %v1514
        %v1526 = vpack.c.b16 %v1517, %v1516
        %v1527 = vpack.c.b16 %v1519, %v1518
        %v1552 = vunpack.c.l.b16 %v1472
        %v1553 = vunpack.c.l.b16 %v1473
        %v1554 = vunpack.c.l.b16 %v1474
        %v1555 = vunpack.c.l.b16 %v1475
        %v1556 = vunpack.c.l.b16 %v1476
        %v1557 = vunpack.c.l.b16 %v1477
        %v1558 = vunpack.c.l.b16 %v1478
        %v1559 = vunpack.c.l.b16 %v1479
        %v1560 = vunpack.c.l.b16 %v1480
        %v1561 = vunpack.c.l.b16 %v1481
        %v1562 = vunpack.c.l.b16 %v1482
        %v1563 = vunpack.c.l.b16 %v1483
        %v1564 = vunpack.c.l.b16 %v1484
        %v1565 = vunpack.c.l.b16 %v1485
        %v1566 = vunpack.c.l.b16 %v1486
        %v1567 = vunpack.c.l.b16 %v1487
        %v1568 = vpack.c.b16 %v1553, %v1552
        %v1569 = vpack.c.b16 %v1555, %v1554
        %v1570 = vpack.c.b16 %v1557, %v1556
        %v1571 = vpack.c.b16 %v1559, %v1558
        %v1572 = vpack.c.b16 %v1561, %v1560
        %v1573 = vpack.c.b16 %v1563, %v1562
        %v1574 = vpack.c.b16 %v1565, %v1564
        %v1575 = vpack.c.b16 %v1567, %v1566
        %1584 = vmatprep.subr.bf16.mxu0 0
        %1585 = vmatpush1.bf16.msra.mxu0 %v1568
        %1586 = vmatprep.subr.bf16.mxu0 0
        %1587 = vmatpush1.bf16.msra.mxu0 %v1569
        %1588 = vmatprep.subr.bf16.mxu0 0
        %1589 = vmatpush1.bf16.msra.mxu0 %v1570
        %1590 = vmatprep.subr.bf16.mxu0 0
        %1591 = vmatpush1.bf16.msra.mxu0 %v1571
        %1592 = vmatprep.subr.bf16.mxu0 0
        %1593 = vmatpush1.bf16.msra.mxu0 %v1572
        %1594 = vmatprep.subr.bf16.mxu0 0
        %1595 = vmatpush1.bf16.msra.mxu0 %v1573
        %1596 = vmatprep.subr.bf16.mxu0 0
        %1597 = vmatpush1.bf16.msra.mxu0 %v1574
        %1598 = vmatprep.subr.bf16.mxu0 0
        %1599 = vmatpush1.bf16.msra.mxu0 %v1575
        %1600 = vmatprep.subr.bf16.mxu0 0
        %1601 = vmatpush1.bf16.msra.mxu0 0
        %1602 = vmatprep.subr.bf16.mxu0 0
        %1603 = vmatpush1.bf16.msra.mxu0 0
        %1604 = vmatprep.subr.bf16.mxu0 0
        %1605 = vmatpush1.bf16.msra.mxu0 0
        %1606 = vmatprep.subr.bf16.mxu0 0
        %1607 = vmatpush1.bf16.msra.mxu0 0
        %1608 = vmatprep.subr.bf16.mxu0 0
        %1609 = vmatpush1.bf16.msra.mxu0 0
        %1610 = vmatprep.subr.bf16.mxu0 0
        %1611 = vmatpush1.bf16.msra.mxu0 0
        %1612 = vmatprep.subr.bf16.mxu0 0
        %1613 = vmatpush1.bf16.msra.mxu0 0
        %1614 = vmatprep.subr.bf16.mxu0 0
        %1615 = vmatpush1.bf16.msra.mxu0 0
        %1616 = vmatprep.mubr.bf16.mxu0 0
        %1617 = vmatmul.mubr.bf16.gmra.mrb[0].mxu0 %v1520
        %v1618 = vpop.f32.mrb[0].mxu0
        %v1619 = vadd.f32 0.0, %v1618
        %v1620 = vpop.f32.mrb[0].mxu0
        %v1621 = vpop.f32.mrb[0].mxu0
        %v1622 = vpop.f32.mrb[0].mxu0
        %1623 = vmatprep.mubr.bf16.mxu0 0
        %1624 = vmatmul.mubr.bf16.gmra.mrb[0].mxu0 %v1521
        %v1625 = vpop.f32.mrb[0].mxu0
        %v1626 = vadd.f32 0.0, %v1625
        %v1627 = vpop.f32.mrb[0].mxu0
        %v1628 = vpop.f32.mrb[0].mxu0
        %v1629 = vpop.f32.mrb[0].mxu0
        %1630 = vmatprep.mubr.bf16.mxu0 0
        %1631 = vmatmul.mubr.bf16.gmra.mrb[0].mxu0 %v1522
        %v1632 = vpop.f32.mrb[0].mxu0
        %v1633 = vadd.f32 0.0, %v1632
        %v1634 = vpop.f32.mrb[0].mxu0
        %v1635 = vpop.f32.mrb[0].mxu0
        %v1636 = vpop.f32.mrb[0].mxu0
        %1637 = vmatprep.mubr.bf16.mxu0 0
        %1638 = vmatmul.mubr.bf16.gmra.mrb[0].mxu0 %v1523
        %v1639 = vpop.f32.mrb[0].mxu0
        %v1640 = vadd.f32 0.0, %v1639
        %v1641 = vpop.f32.mrb[0].mxu0
        %v1642 = vpop.f32.mrb[0].mxu0
        %v1643 = vpop.f32.mrb[0].mxu0
        %1644 = vmatprep.mubr.bf16.mxu0 0
        %1645 = vmatmul.mubr.bf16.gmra.mrb[0].mxu0 %v1524
        %v1646 = vpop.f32.mrb[0].mxu0
        %v1647 = vadd.f32 0.0, %v1646
        %v1648 = vpop.f32.mrb[0].mxu0
        %v1649 = vpop.f32.mrb[0].mxu0
        %v1650 = vpop.f32.mrb[0].mxu0
        %1651 = vmatprep.mubr.bf16.mxu0 0
        %1652 = vmatmul.mubr.bf16.gmra.mrb[0].mxu0 %v1525
        %v1653 = vpop.f32.mrb[0].mxu0
        %v1654 = vadd.f32 0.0, %v1653
        %v1655 = vpop.f32.mrb[0].mxu0
        %v1656 = vpop.f32.mrb[0].mxu0
        %v1657 = vpop.f32.mrb[0].mxu0
        %1658 = vmatprep.mubr.bf16.mxu0 0
        %1659 = vmatmul.mubr.bf16.gmra.mrb[0].mxu0 %v1526
        %v1660 = vpop.f32.mrb[0].mxu0
        %v1661 = vadd.f32 0.0, %v1660
        %v1662 = vpop.f32.mrb[0].mxu0
        %v1663 = vpop.f32.mrb[0].mxu0
        %v1664 = vpop.f32.mrb[0].mxu0
        %1665 = vmatprep.mubr.bf16.mxu0 0
        %1666 = vmatmul.mubr.bf16.gmra.mrb[0].mxu0 %v1527
        %v1667 = vpop.f32.mrb[0].mxu0
        %v1668 = vadd.f32 0.0, %v1667
        %v1669 = vpop.f32.mrb[0].mxu0
        %v1670 = vpop.f32.mrb[0].mxu0
        %v1671 = vpop.f32.mrb[0].mxu0
        %1672 = vdwg.mxu0
        %v1673 = vadd.f32 %v1447, %v1619
        %v1674 = vadd.f32 %v1448, %v1626
        %v1675 = vadd.f32 %v1449, %v1633
        %v1676 = vadd.f32 %v1450, %v1640
        %v1677 = vadd.f32 %v1451, %v1647
        %v1678 = vadd.f32 %v1452, %v1654
        %v1679 = vadd.f32 %v1453, %v1661
        %v1680 = vadd.f32 %v1454, %v1668
        %v1681 = vld [vmem:[#allocation2 + $0x8] sm:$0xf]
        %v1682 = vld [vmem:[#allocation2 + $0xc] sm:$0xf]
        %v1683 = vld [vmem:[#allocation2 + $0x10] sm:$0xf]
        %v1684 = vld [vmem:[#allocation2 + $0x14] sm:$0xf]
        %v1685 = vld [vmem:[#allocation2 + $0x18] sm:$0xf]
        %v1686 = vld [vmem:[#allocation2 + $0x1c] sm:$0xf]
        %v1687 = vld [vmem:[#allocation2 + $0x20] sm:$0xf]
        %v1688 = vld [vmem:[#allocation2 + $0x24] sm:$0xf]
        %v1689 = vld [vmem:[#allocation2 + $0x28] sm:$0xf]
        %v1690 = vld [vmem:[#allocation2 + $0x2c] sm:$0xf]
        %v1691 = vld [vmem:[#allocation2 + $0x30] sm:$0xf]
        %v1692 = vld [vmem:[#allocation2 + $0x34] sm:$0xf]
        %v1693 = vld [vmem:[#allocation2 + $0x38] sm:$0xf]
        %v1694 = vld [vmem:[#allocation2 + $0x3c] sm:$0xf]
        %v1695 = vld [vmem:[#allocation2 + $0x40] sm:$0xf]
        %v1696 = vld [vmem:[#allocation2 + $0x44] sm:$0xf]
        %v1697 = vld [vmem:[#allocation2 + $0x48] sm:$0x1]
        %s1698 = scalar_lea.vmem [#allocation11], 256
        %v1699 = vld [vmem:[%s1698] sm:$0xf]
        %v1700 = vld [vmem:[%s1698 + $0x4] sm:$0xf]
        %v1701 = vld [vmem:[%s1698 + $0x8] sm:$0xf]
        %v1702 = vld [vmem:[%s1698 + $0xc] sm:$0xf]
        %v1703 = vld [vmem:[%s1698 + $0x10] sm:$0xf]
        %v1704 = vld [vmem:[%s1698 + $0x14] sm:$0xf]
        %v1705 = vld [vmem:[%s1698 + $0x18] sm:$0xf]
        %v1706 = vld [vmem:[%s1698 + $0x1c] sm:$0xf]
        %v1707 = vld [vmem:[%s1698 + $0x20] sm:$0xf]
        %v1708 = vld [vmem:[%s1698 + $0x24] sm:$0xf]
        %v1709 = vld [vmem:[%s1698 + $0x28] sm:$0xf]
        %v1710 = vld [vmem:[%s1698 + $0x2c] sm:$0xf]
        %v1711 = vld [vmem:[%s1698 + $0x30] sm:$0xf]
        %v1712 = vld [vmem:[%s1698 + $0x34] sm:$0xf]
        %v1713 = vld [vmem:[%s1698 + $0x38] sm:$0xf]
        %v1714 = vld [vmem:[%s1698 + $0x3c] sm:$0xf]
        %v1732 = vunpack.c.l.b16 %v1681
        %v1733 = vunpack.c.l.b16 %v1682
        %v1734 = vunpack.c.l.b16 %v1683
        %v1735 = vunpack.c.l.b16 %v1684
        %v1736 = vunpack.c.l.b16 %v1685
        %v1737 = vunpack.c.l.b16 %v1686
        %v1738 = vunpack.c.l.b16 %v1687
        %v1739 = vunpack.c.l.b16 %v1688
        %v1740 = vunpack.c.l.b16 %v1689
        %v1741 = vunpack.c.l.b16 %v1690
        %v1742 = vunpack.c.l.b16 %v1691
        %v1743 = vunpack.c.l.b16 %v1692
        %v1744 = vunpack.c.l.b16 %v1693
        %v1745 = vunpack.c.l.b16 %v1694
        %v1746 = vunpack.c.l.b16 %v1695
        %v1747 = vunpack.c.l.b16 %v1696
        %v1748 = vunpack.c.l.b16 %v1697
        %v1749 = vpack.c.b16 %v1733, %v1732
        %v1750 = vpack.c.b16 %v1735, %v1734
        %v1751 = vpack.c.b16 %v1737, %v1736
        %v1752 = vpack.c.b16 %v1739, %v1738
        %v1753 = vpack.c.b16 %v1741, %v1740
        %v1754 = vpack.c.b16 %v1743, %v1742
        %v1755 = vpack.c.b16 %v1745, %v1744
        %v1756 = vpack.c.b16 %v1747, %v1746
        %v1757 = vpack.c.b16 %v1748, %v1748
        %v1759 = vshrl.u32 %v1749, 16
        %v1761 = vshll.u32 %v1749, 16
        %v1763 = vrot.slane %v1761, 1
        %v1764 = vor.u32 %v1759, %v1763
        %v1766 = vshll.u32 %v1750, 16
        %v1768 = vrot.slane %v1766, 1
        %v1769 = vsel %vm904, %v1764, %v1768
        %v1770 = vshrl.u32 %v1750, 16
        %v1772 = vor.u32 %v1770, %v1768
        %v1774 = vshll.u32 %v1751, 16
        %v1776 = vrot.slane %v1774, 1
        %v1777 = vsel %vm904, %v1772, %v1776
        %v1778 = vshrl.u32 %v1751, 16
        %v1780 = vor.u32 %v1778, %v1776
        %v1782 = vshll.u32 %v1752, 16
        %v1784 = vrot.slane %v1782, 1
        %v1785 = vsel %vm904, %v1780, %v1784
        %v1786 = vshrl.u32 %v1752, 16
        %v1788 = vor.u32 %v1786, %v1784
        %v1790 = vshll.u32 %v1753, 16
        %v1792 = vrot.slane %v1790, 1
        %v1793 = vsel %vm904, %v1788, %v1792
        %v1794 = vshrl.u32 %v1753, 16
        %v1796 = vor.u32 %v1794, %v1792
        %v1798 = vshll.u32 %v1754, 16
        %v1800 = vrot.slane %v1798, 1
        %v1801 = vsel %vm904, %v1796, %v1800
        %v1802 = vshrl.u32 %v1754, 16
        %v1804 = vor.u32 %v1802, %v1800
        %v1806 = vshll.u32 %v1755, 16
        %v1808 = vrot.slane %v1806, 1
        %v1809 = vsel %vm904, %v1804, %v1808
        %v1810 = vshrl.u32 %v1755, 16
        %v1812 = vor.u32 %v1810, %v1808
        %v1814 = vshll.u32 %v1756, 16
        %v1816 = vrot.slane %v1814, 1
        %v1817 = vsel %vm904, %v1812, %v1816
        %v1818 = vshrl.u32 %v1756, 16
        %v1820 = vor.u32 %v1818, %v1816
        %v1822 = vshll.u32 %v1757, 16
        %v1824 = vrot.slane %v1822, 1
        %v1825 = vsel %vm904, %v1820, %v1824
        %v1850 = vunpack.c.l.b16 %v1699
        %v1851 = vunpack.c.l.b16 %v1700
        %v1852 = vunpack.c.l.b16 %v1701
        %v1853 = vunpack.c.l.b16 %v1702
        %v1854 = vunpack.c.l.b16 %v1703
        %v1855 = vunpack.c.l.b16 %v1704
        %v1856 = vunpack.c.l.b16 %v1705
        %v1857 = vunpack.c.l.b16 %v1706
        %v1858 = vunpack.c.l.b16 %v1707
        %v1859 = vunpack.c.l.b16 %v1708
        %v1860 = vunpack.c.l.b16 %v1709
        %v1861 = vunpack.c.l.b16 %v1710
        %v1862 = vunpack.c.l.b16 %v1711
        %v1863 = vunpack.c.l.b16 %v1712
        %v1864 = vunpack.c.l.b16 %v1713
        %v1865 = vunpack.c.l.b16 %v1714
        %v1866 = vpack.c.b16 %v1851, %v1850
        %v1867 = vpack.c.b16 %v1853, %v1852
        %v1868 = vpack.c.b16 %v1855, %v1854
        %v1869 = vpack.c.b16 %v1857, %v1856
        %v1870 = vpack.c.b16 %v1859, %v1858
        %v1871 = vpack.c.b16 %v1861, %v1860
        %v1872 = vpack.c.b16 %v1863, %v1862
        %v1873 = vpack.c.b16 %v1865, %v1864
        %1882 = vmatprep.subr.bf16.mxu0 0
        %1883 = vmatpush1.bf16.msra.mxu0 %v1866
        %1884 = vmatprep.subr.bf16.mxu0 0
        %1885 = vmatpush1.bf16.msra.mxu0 %v1867
        %1886 = vmatprep.subr.bf16.mxu0 0
        %1887 = vmatpush1.bf16.msra.mxu0 %v1868
        %1888 = vmatprep.subr.bf16.mxu0 0
        %1889 = vmatpush1.bf16.msra.mxu0 %v1869
        %1890 = vmatprep.subr.bf16.mxu0 0
        %1891 = vmatpush1.bf16.msra.mxu0 %v1870
        %1892 = vmatprep.subr.bf16.mxu0 0
        %1893 = vmatpush1.bf16.msra.mxu0 %v1871
        %1894 = vmatprep.subr.bf16.mxu0 0
        %1895 = vmatpush1.bf16.msra.mxu0 %v1872
        %1896 = vmatprep.subr.bf16.mxu0 0
        %1897 = vmatpush1.bf16.msra.mxu0 %v1873
        %1898 = vmatprep.subr.bf16.mxu0 0
        %1899 = vmatpush1.bf16.msra.mxu0 0
        %1900 = vmatprep.subr.bf16.mxu0 0
        %1901 = vmatpush1.bf16.msra.mxu0 0
        %1902 = vmatprep.subr.bf16.mxu0 0
        %1903 = vmatpush1.bf16.msra.mxu0 0
        %1904 = vmatprep.subr.bf16.mxu0 0
        %1905 = vmatpush1.bf16.msra.mxu0 0
        %1906 = vmatprep.subr.bf16.mxu0 0
        %1907 = vmatpush1.bf16.msra.mxu0 0
        %1908 = vmatprep.subr.bf16.mxu0 0
        %1909 = vmatpush1.bf16.msra.mxu0 0
        %1910 = vmatprep.subr.bf16.mxu0 0
        %1911 = vmatpush1.bf16.msra.mxu0 0
        %1912 = vmatprep.subr.bf16.mxu0 0
        %1913 = vmatpush1.bf16.msra.mxu0 0
        %1914 = vmatprep.mubr.bf16.mxu0 0
        %1915 = vmatmul.mubr.bf16.gmra.mrb[0].mxu0 %v1769
        %v1916 = vpop.f32.mrb[0].mxu0
        %v1917 = vadd.f32 0.0, %v1916
        %v1918 = vpop.f32.mrb[0].mxu0
        %v1919 = vpop.f32.mrb[0].mxu0
        %v1920 = vpop.f32.mrb[0].mxu0
        %1921 = vmatprep.mubr.bf16.mxu0 0
        %1922 = vmatmul.mubr.bf16.gmra.mrb[0].mxu0 %v1777
        %v1923 = vpop.f32.mrb[0].mxu0
        %v1924 = vadd.f32 0.0, %v1923
        %v1925 = vpop.f32.mrb[0].mxu0
        %v1926 = vpop.f32.mrb[0].mxu0
        %v1927 = vpop.f32.mrb[0].mxu0
        %1928 = vmatprep.mubr.bf16.mxu0 0
        %1929 = vmatmul.mubr.bf16.gmra.mrb[0].mxu0 %v1785
        %v1930 = vpop.f32.mrb[0].mxu0
        %v1931 = vadd.f32 0.0, %v1930
        %v1932 = vpop.f32.mrb[0].mxu0
        %v1933 = vpop.f32.mrb[0].mxu0
        %v1934 = vpop.f32.mrb[0].mxu0
        %1935 = vmatprep.mubr.bf16.mxu0 0
        %1936 = vmatmul.mubr.bf16.gmra.mrb[0].mxu0 %v1793
        %v1937 = vpop.f32.mrb[0].mxu0
        %v1938 = vadd.f32 0.0, %v1937
        %v1939 = vpop.f32.mrb[0].mxu0
        %v1940 = vpop.f32.mrb[0].mxu0
        %v1941 = vpop.f32.mrb[0].mxu0
        %1942 = vmatprep.mubr.bf16.mxu0 0
        %1943 = vmatmul.mubr.bf16.gmra.mrb[0].mxu0 %v1801
        %v1944 = vpop.f32.mrb[0].mxu0
        %v1945 = vadd.f32 0.0, %v1944
        %v1946 = vpop.f32.mrb[0].mxu0
        %v1947 = vpop.f32.mrb[0].mxu0
        %v1948 = vpop.f32.mrb[0].mxu0
        %1949 = vmatprep.mubr.bf16.mxu0 0
        %1950 = vmatmul.mubr.bf16.gmra.mrb[0].mxu0 %v1809
        %v1951 = vpop.f32.mrb[0].mxu0
        %v1952 = vadd.f32 0.0, %v1951
        %v1953 = vpop.f32.mrb[0].mxu0
        %v1954 = vpop.f32.mrb[0].mxu0
        %v1955 = vpop.f32.mrb[0].mxu0
        %1956 = vmatprep.mubr.bf16.mxu0 0
        %1957 = vmatmul.mubr.bf16.gmra.mrb[0].mxu0 %v1817
        %v1958 = vpop.f32.mrb[0].mxu0
        %v1959 = vadd.f32 0.0, %v1958
        %v1960 = vpop.f32.mrb[0].mxu0
        %v1961 = vpop.f32.mrb[0].mxu0
        %v1962 = vpop.f32.mrb[0].mxu0
        %1963 = vmatprep.mubr.bf16.mxu0 0
        %1964 = vmatmul.mubr.bf16.gmra.mrb[0].mxu0 %v1825
        %v1965 = vpop.f32.mrb[0].mxu0
        %v1966 = vadd.f32 0.0, %v1965
        %v1967 = vpop.f32.mrb[0].mxu0
        %v1968 = vpop.f32.mrb[0].mxu0
        %v1969 = vpop.f32.mrb[0].mxu0
        %1970 = vdwg.mxu0
        %v1971 = vadd.f32 %v1673, %v1917
        %v1972 = vadd.f32 %v1674, %v1924
        %v1973 = vadd.f32 %v1675, %v1931
        %v1974 = vadd.f32 %v1676, %v1938
        %v1975 = vadd.f32 %v1677, %v1945
        %v1976 = vadd.f32 %v1678, %v1952
        %v1977 = vadd.f32 %v1679, %v1959
        %v1978 = vadd.f32 %v1680, %v1966
        %v1979 = vld [vmem:[#allocation2 + $0x8] sm:$0xe]
        %s1980 = scalar_lea.vmem [#allocation11], 320
        %v1981 = vld [vmem:[%s1980] sm:$0xf]
        %v1982 = vld [vmem:[%s1980 + $0x4] sm:$0xf]
        %v1983 = vld [vmem:[%s1980 + $0x8] sm:$0xf]
        %v1984 = vld [vmem:[%s1980 + $0xc] sm:$0xf]
        %v1985 = vld [vmem:[%s1980 + $0x10] sm:$0xf]
        %v1986 = vld [vmem:[%s1980 + $0x14] sm:$0xf]
        %v1987 = vld [vmem:[%s1980 + $0x18] sm:$0xf]
        %v1988 = vld [vmem:[%s1980 + $0x1c] sm:$0xf]
        %v1989 = vld [vmem:[%s1980 + $0x20] sm:$0xf]
        %v1990 = vld [vmem:[%s1980 + $0x24] sm:$0xf]
        %v1991 = vld [vmem:[%s1980 + $0x28] sm:$0xf]
        %v1992 = vld [vmem:[%s1980 + $0x2c] sm:$0xf]
        %v1993 = vld [vmem:[%s1980 + $0x30] sm:$0xf]
        %v1994 = vld [vmem:[%s1980 + $0x34] sm:$0xf]
        %v1995 = vld [vmem:[%s1980 + $0x38] sm:$0xf]
        %v1996 = vld [vmem:[%s1980 + $0x3c] sm:$0xf]
        %v1998 = vunpack.c.l.b16 %v1979
        %v1999 = vpack.c.b16 %v1733, %v1998
        %v2000 = vrot.slane %v1999, 1
        %v2001 = vrot.slane %v1750, 1
        %v2002 = vsel %vm1284, %v2000, %v2001
        %v2003 = vrot.slane %v1751, 1
        %v2004 = vsel %vm1284, %v2001, %v2003
        %v2005 = vrot.slane %v1752, 1
        %v2006 = vsel %vm1284, %v2003, %v2005
        %v2007 = vrot.slane %v1753, 1
        %v2008 = vsel %vm1284, %v2005, %v2007
        %v2009 = vrot.slane %v1754, 1
        %v2010 = vsel %vm1284, %v2007, %v2009
        %v2011 = vrot.slane %v1755, 1
        %v2012 = vsel %vm1284, %v2009, %v2011
        %v2013 = vrot.slane %v1756, 1
        %v2014 = vsel %vm1284, %v2011, %v2013
        %v2015 = vrot.slane %v1757, 1
        %v2016 = vsel %vm1284, %v2013, %v2015
        %v2041 = vunpack.c.l.b16 %v1981
        %v2042 = vunpack.c.l.b16 %v1982
        %v2043 = vunpack.c.l.b16 %v1983
        %v2044 = vunpack.c.l.b16 %v1984
        %v2045 = vunpack.c.l.b16 %v1985
        %v2046 = vunpack.c.l.b16 %v1986
        %v2047 = vunpack.c.l.b16 %v1987
        %v2048 = vunpack.c.l.b16 %v1988
        %v2049 = vunpack.c.l.b16 %v1989
        %v2050 = vunpack.c.l.b16 %v1990
        %v2051 = vunpack.c.l.b16 %v1991
        %v2052 = vunpack.c.l.b16 %v1992
        %v2053 = vunpack.c.l.b16 %v1993
        %v2054 = vunpack.c.l.b16 %v1994
        %v2055 = vunpack.c.l.b16 %v1995
        %v2056 = vunpack.c.l.b16 %v1996
        %v2057 = vpack.c.b16 %v2042, %v2041
        %v2058 = vpack.c.b16 %v2044, %v2043
        %v2059 = vpack.c.b16 %v2046, %v2045
        %v2060 = vpack.c.b16 %v2048, %v2047
        %v2061 = vpack.c.b16 %v2050, %v2049
        %v2062 = vpack.c.b16 %v2052, %v2051
        %v2063 = vpack.c.b16 %v2054, %v2053
        %v2064 = vpack.c.b16 %v2056, %v2055
        %2073 = vmatprep.subr.bf16.mxu0 0
        %2074 = vmatpush1.bf16.msra.mxu0 %v2057
        %2075 = vmatprep.subr.bf16.mxu0 0
        %2076 = vmatpush1.bf16.msra.mxu0 %v2058
        %2077 = vmatprep.subr.bf16.mxu0 0
        %2078 = vmatpush1.bf16.msra.mxu0 %v2059
        %2079 = vmatprep.subr.bf16.mxu0 0
        %2080 = vmatpush1.bf16.msra.mxu0 %v2060
        %2081 = vmatprep.subr.bf16.mxu0 0
        %2082 = vmatpush1.bf16.msra.mxu0 %v2061
        %2083 = vmatprep.subr.bf16.mxu0 0
        %2084 = vmatpush1.bf16.msra.mxu0 %v2062
        %2085 = vmatprep.subr.bf16.mxu0 0
        %2086 = vmatpush1.bf16.msra.mxu0 %v2063
        %2087 = vmatprep.subr.bf16.mxu0 0
        %2088 = vmatpush1.bf16.msra.mxu0 %v2064
        %2089 = vmatprep.subr.bf16.mxu0 0
        %2090 = vmatpush1.bf16.msra.mxu0 0
        %2091 = vmatprep.subr.bf16.mxu0 0
        %2092 = vmatpush1.bf16.msra.mxu0 0
        %2093 = vmatprep.subr.bf16.mxu0 0
        %2094 = vmatpush1.bf16.msra.mxu0 0
        %2095 = vmatprep.subr.bf16.mxu0 0
        %2096 = vmatpush1.bf16.msra.mxu0 0
        %2097 = vmatprep.subr.bf16.mxu0 0
        %2098 = vmatpush1.bf16.msra.mxu0 0
        %2099 = vmatprep.subr.bf16.mxu0 0
        %2100 = vmatpush1.bf16.msra.mxu0 0
        %2101 = vmatprep.subr.bf16.mxu0 0
        %2102 = vmatpush1.bf16.msra.mxu0 0
        %2103 = vmatprep.subr.bf16.mxu0 0
        %2104 = vmatpush1.bf16.msra.mxu0 0
        %2105 = vmatprep.mubr.bf16.mxu0 0
        %2106 = vmatmul.mubr.bf16.gmra.mrb[0].mxu0 %v2002
        %v2107 = vpop.f32.mrb[0].mxu0
        %v2108 = vadd.f32 0.0, %v2107
        %v2109 = vpop.f32.mrb[0].mxu0
        %v2110 = vpop.f32.mrb[0].mxu0
        %v2111 = vpop.f32.mrb[0].mxu0
        %2112 = vmatprep.mubr.bf16.mxu0 0
        %2113 = vmatmul.mubr.bf16.gmra.mrb[0].mxu0 %v2004
        %v2114 = vpop.f32.mrb[0].mxu0
        %v2115 = vadd.f32 0.0, %v2114
        %v2116 = vpop.f32.mrb[0].mxu0
        %v2117 = vpop.f32.mrb[0].mxu0
        %v2118 = vpop.f32.mrb[0].mxu0
        %2119 = vmatprep.mubr.bf16.mxu0 0
        %2120 = vmatmul.mubr.bf16.gmra.mrb[0].mxu0 %v2006
        %v2121 = vpop.f32.mrb[0].mxu0
        %v2122 = vadd.f32 0.0, %v2121
        %v2123 = vpop.f32.mrb[0].mxu0
        %v2124 = vpop.f32.mrb[0].mxu0
        %v2125 = vpop.f32.mrb[0].mxu0
        %2126 = vmatprep.mubr.bf16.mxu0 0
        %2127 = vmatmul.mubr.bf16.gmra.mrb[0].mxu0 %v2008
        %v2128 = vpop.f32.mrb[0].mxu0
        %v2129 = vadd.f32 0.0, %v2128
        %v2130 = vpop.f32.mrb[0].mxu0
        %v2131 = vpop.f32.mrb[0].mxu0
        %v2132 = vpop.f32.mrb[0].mxu0
        %2133 = vmatprep.mubr.bf16.mxu0 0
        %2134 = vmatmul.mubr.bf16.gmra.mrb[0].mxu0 %v2010
        %v2135 = vpop.f32.mrb[0].mxu0
        %v2136 = vadd.f32 0.0, %v2135
        %v2137 = vpop.f32.mrb[0].mxu0
        %v2138 = vpop.f32.mrb[0].mxu0
        %v2139 = vpop.f32.mrb[0].mxu0
        %2140 = vmatprep.mubr.bf16.mxu0 0
        %2141 = vmatmul.mubr.bf16.gmra.mrb[0].mxu0 %v2012
        %v2142 = vpop.f32.mrb[0].mxu0
        %v2143 = vadd.f32 0.0, %v2142
        %v2144 = vpop.f32.mrb[0].mxu0
        %v2145 = vpop.f32.mrb[0].mxu0
        %v2146 = vpop.f32.mrb[0].mxu0
        %2147 = vmatprep.mubr.bf16.mxu0 0
        %2148 = vmatmul.mubr.bf16.gmra.mrb[0].mxu0 %v2014
        %v2149 = vpop.f32.mrb[0].mxu0
        %v2150 = vadd.f32 0.0, %v2149
        %v2151 = vpop.f32.mrb[0].mxu0
        %v2152 = vpop.f32.mrb[0].mxu0
        %v2153 = vpop.f32.mrb[0].mxu0
        %2154 = vmatprep.mubr.bf16.mxu0 0
        %2155 = vmatmul.mubr.bf16.gmra.mrb[0].mxu0 %v2016
        %v2156 = vpop.f32.mrb[0].mxu0
        %v2157 = vadd.f32 0.0, %v2156
        %v2158 = vpop.f32.mrb[0].mxu0
        %v2159 = vpop.f32.mrb[0].mxu0
        %v2160 = vpop.f32.mrb[0].mxu0
        %2161 = vdwg.mxu0
        %v2162 = vadd.f32 %v1971, %v2108
        %v2163 = vadd.f32 %v1972, %v2115
        %v2164 = vadd.f32 %v1973, %v2122
        %v2165 = vadd.f32 %v1974, %v2129
        %v2166 = vadd.f32 %v1975, %v2136
        %v2167 = vadd.f32 %v1976, %v2143
        %v2168 = vadd.f32 %v1977, %v2150
        %v2169 = vadd.f32 %v1978, %v2157
        %v2170 = vld [vmem:[#allocation2 + $0x10] sm:$0xf]
        %v2171 = vld [vmem:[#allocation2 + $0x14] sm:$0xf]
        %v2172 = vld [vmem:[#allocation2 + $0x18] sm:$0xf]
        %v2173 = vld [vmem:[#allocation2 + $0x1c] sm:$0xf]
        %v2174 = vld [vmem:[#allocation2 + $0x20] sm:$0xf]
        %v2175 = vld [vmem:[#allocation2 + $0x24] sm:$0xf]
        %v2176 = vld [vmem:[#allocation2 + $0x28] sm:$0xf]
        %v2177 = vld [vmem:[#allocation2 + $0x2c] sm:$0xf]
        %v2178 = vld [vmem:[#allocation2 + $0x30] sm:$0xf]
        %v2179 = vld [vmem:[#allocation2 + $0x34] sm:$0xf]
        %v2180 = vld [vmem:[#allocation2 + $0x38] sm:$0xf]
        %v2181 = vld [vmem:[#allocation2 + $0x3c] sm:$0xf]
        %v2182 = vld [vmem:[#allocation2 + $0x40] sm:$0xf]
        %v2183 = vld [vmem:[#allocation2 + $0x44] sm:$0xf]
        %v2184 = vld [vmem:[#allocation2 + $0x48] sm:$0xf]
        %v2185 = vld [vmem:[#allocation2 + $0x4c] sm:$0xf]
        %s2186 = scalar_lea.vmem [#allocation11], 384
        %v2187 = vld [vmem:[%s2186] sm:$0xf]
        %v2188 = vld [vmem:[%s2186 + $0x4] sm:$0xf]
        %v2189 = vld [vmem:[%s2186 + $0x8] sm:$0xf]
        %v2190 = vld [vmem:[%s2186 + $0xc] sm:$0xf]
        %v2191 = vld [vmem:[%s2186 + $0x10] sm:$0xf]
        %v2192 = vld [vmem:[%s2186 + $0x14] sm:$0xf]
        %v2193 = vld [vmem:[%s2186 + $0x18] sm:$0xf]
        %v2194 = vld [vmem:[%s2186 + $0x1c] sm:$0xf]
        %v2195 = vld [vmem:[%s2186 + $0x20] sm:$0xf]
        %v2196 = vld [vmem:[%s2186 + $0x24] sm:$0xf]
        %v2197 = vld [vmem:[%s2186 + $0x28] sm:$0xf]
        %v2198 = vld [vmem:[%s2186 + $0x2c] sm:$0xf]
        %v2199 = vld [vmem:[%s2186 + $0x30] sm:$0xf]
        %v2200 = vld [vmem:[%s2186 + $0x34] sm:$0xf]
        %v2201 = vld [vmem:[%s2186 + $0x38] sm:$0xf]
        %v2202 = vld [vmem:[%s2186 + $0x3c] sm:$0xf]
        %v2219 = vunpack.c.l.b16 %v2170
        %v2220 = vunpack.c.l.b16 %v2171
        %v2221 = vunpack.c.l.b16 %v2172
        %v2222 = vunpack.c.l.b16 %v2173
        %v2223 = vunpack.c.l.b16 %v2174
        %v2224 = vunpack.c.l.b16 %v2175
        %v2225 = vunpack.c.l.b16 %v2176
        %v2226 = vunpack.c.l.b16 %v2177
        %v2227 = vunpack.c.l.b16 %v2178
        %v2228 = vunpack.c.l.b16 %v2179
        %v2229 = vunpack.c.l.b16 %v2180
        %v2230 = vunpack.c.l.b16 %v2181
        %v2231 = vunpack.c.l.b16 %v2182
        %v2232 = vunpack.c.l.b16 %v2183
        %v2233 = vunpack.c.l.b16 %v2184
        %v2234 = vunpack.c.l.b16 %v2185
        %v2235 = vpack.c.b16 %v2220, %v2219
        %v2236 = vpack.c.b16 %v2222, %v2221
        %v2237 = vpack.c.b16 %v2224, %v2223
        %v2238 = vpack.c.b16 %v2226, %v2225
        %v2239 = vpack.c.b16 %v2228, %v2227
        %v2240 = vpack.c.b16 %v2230, %v2229
        %v2241 = vpack.c.b16 %v2232, %v2231
        %v2242 = vpack.c.b16 %v2234, %v2233
        %v2267 = vunpack.c.l.b16 %v2187
        %v2268 = vunpack.c.l.b16 %v2188
        %v2269 = vunpack.c.l.b16 %v2189
        %v2270 = vunpack.c.l.b16 %v2190
        %v2271 = vunpack.c.l.b16 %v2191
        %v2272 = vunpack.c.l.b16 %v2192
        %v2273 = vunpack.c.l.b16 %v2193
        %v2274 = vunpack.c.l.b16 %v2194
        %v2275 = vunpack.c.l.b16 %v2195
        %v2276 = vunpack.c.l.b16 %v2196
        %v2277 = vunpack.c.l.b16 %v2197
        %v2278 = vunpack.c.l.b16 %v2198
        %v2279 = vunpack.c.l.b16 %v2199
        %v2280 = vunpack.c.l.b16 %v2200
        %v2281 = vunpack.c.l.b16 %v2201
        %v2282 = vunpack.c.l.b16 %v2202
        %v2283 = vpack.c.b16 %v2268, %v2267
        %v2284 = vpack.c.b16 %v2270, %v2269
        %v2285 = vpack.c.b16 %v2272, %v2271
        %v2286 = vpack.c.b16 %v2274, %v2273
        %v2287 = vpack.c.b16 %v2276, %v2275
        %v2288 = vpack.c.b16 %v2278, %v2277
        %v2289 = vpack.c.b16 %v2280, %v2279
        %v2290 = vpack.c.b16 %v2282, %v2281
        %2299 = vmatprep.subr.bf16.mxu0 0
        %2300 = vmatpush1.bf16.msra.mxu0 %v2283
        %2301 = vmatprep.subr.bf16.mxu0 0
        %2302 = vmatpush1.bf16.msra.mxu0 %v2284
        %2303 = vmatprep.subr.bf16.mxu0 0
        %2304 = vmatpush1.bf16.msra.mxu0 %v2285
        %2305 = vmatprep.subr.bf16.mxu0 0
        %2306 = vmatpush1.bf16.msra.mxu0 %v2286
        %2307 = vmatprep.subr.bf16.mxu0 0
        %2308 = vmatpush1.bf16.msra.mxu0 %v2287
        %2309 = vmatprep.subr.bf16.mxu0 0
        %2310 = vmatpush1.bf16.msra.mxu0 %v2288
        %2311 = vmatprep.subr.bf16.mxu0 0
        %2312 = vmatpush1.bf16.msra.mxu0 %v2289
        %2313 = vmatprep.subr.bf16.mxu0 0
        %2314 = vmatpush1.bf16.msra.mxu0 %v2290
        %2315 = vmatprep.subr.bf16.mxu0 0
        %2316 = vmatpush1.bf16.msra.mxu0 0
        %2317 = vmatprep.subr.bf16.mxu0 0
        %2318 = vmatpush1.bf16.msra.mxu0 0
        %2319 = vmatprep.subr.bf16.mxu0 0
        %2320 = vmatpush1.bf16.msra.mxu0 0
        %2321 = vmatprep.subr.bf16.mxu0 0
        %2322 = vmatpush1.bf16.msra.mxu0 0
        %2323 = vmatprep.subr.bf16.mxu0 0
        %2324 = vmatpush1.bf16.msra.mxu0 0
        %2325 = vmatprep.subr.bf16.mxu0 0
        %2326 = vmatpush1.bf16.msra.mxu0 0
        %2327 = vmatprep.subr.bf16.mxu0 0
        %2328 = vmatpush1.bf16.msra.mxu0 0
        %2329 = vmatprep.subr.bf16.mxu0 0
        %2330 = vmatpush1.bf16.msra.mxu0 0
        %2331 = vmatprep.mubr.bf16.mxu0 0
        %2332 = vmatmul.mubr.bf16.gmra.mrb[0].mxu0 %v2235
        %v2333 = vpop.f32.mrb[0].mxu0
        %v2334 = vadd.f32 0.0, %v2333
        %v2335 = vpop.f32.mrb[0].mxu0
        %v2336 = vpop.f32.mrb[0].mxu0
        %v2337 = vpop.f32.mrb[0].mxu0
        %2338 = vmatprep.mubr.bf16.mxu0 0
        %2339 = vmatmul.mubr.bf16.gmra.mrb[0].mxu0 %v2236
        %v2340 = vpop.f32.mrb[0].mxu0
        %v2341 = vadd.f32 0.0, %v2340
        %v2342 = vpop.f32.mrb[0].mxu0
        %v2343 = vpop.f32.mrb[0].mxu0
        %v2344 = vpop.f32.mrb[0].mxu0
        %2345 = vmatprep.mubr.bf16.mxu0 0
        %2346 = vmatmul.mubr.bf16.gmra.mrb[0].mxu0 %v2237
        %v2347 = vpop.f32.mrb[0].mxu0
        %v2348 = vadd.f32 0.0, %v2347
        %v2349 = vpop.f32.mrb[0].mxu0
        %v2350 = vpop.f32.mrb[0].mxu0
        %v2351 = vpop.f32.mrb[0].mxu0
        %2352 = vmatprep.mubr.bf16.mxu0 0
        %2353 = vmatmul.mubr.bf16.gmra.mrb[0].mxu0 %v2238
        %v2354 = vpop.f32.mrb[0].mxu0
        %v2355 = vadd.f32 0.0, %v2354
        %v2356 = vpop.f32.mrb[0].mxu0
        %v2357 = vpop.f32.mrb[0].mxu0
        %v2358 = vpop.f32.mrb[0].mxu0
        %2359 = vmatprep.mubr.bf16.mxu0 0
        %2360 = vmatmul.mubr.bf16.gmra.mrb[0].mxu0 %v2239
        %v2361 = vpop.f32.mrb[0].mxu0
        %v2362 = vadd.f32 0.0, %v2361
        %v2363 = vpop.f32.mrb[0].mxu0
        %v2364 = vpop.f32.mrb[0].mxu0
        %v2365 = vpop.f32.mrb[0].mxu0
        %2366 = vmatprep.mubr.bf16.mxu0 0
        %2367 = vmatmul.mubr.bf16.gmra.mrb[0].mxu0 %v2240
        %v2368 = vpop.f32.mrb[0].mxu0
        %v2369 = vadd.f32 0.0, %v2368
        %v2370 = vpop.f32.mrb[0].mxu0
        %v2371 = vpop.f32.mrb[0].mxu0
        %v2372 = vpop.f32.mrb[0].mxu0
        %2373 = vmatprep.mubr.bf16.mxu0 0
        %2374 = vmatmul.mubr.bf16.gmra.mrb[0].mxu0 %v2241
        %v2375 = vpop.f32.mrb[0].mxu0
        %v2376 = vadd.f32 0.0, %v2375
        %v2377 = vpop.f32.mrb[0].mxu0
        %v2378 = vpop.f32.mrb[0].mxu0
        %v2379 = vpop.f32.mrb[0].mxu0
        %2380 = vmatprep.mubr.bf16.mxu0 0
        %2381 = vmatmul.mubr.bf16.gmra.mrb[0].mxu0 %v2242
        %v2382 = vpop.f32.mrb[0].mxu0
        %v2383 = vadd.f32 0.0, %v2382
        %v2384 = vpop.f32.mrb[0].mxu0
        %v2385 = vpop.f32.mrb[0].mxu0
        %v2386 = vpop.f32.mrb[0].mxu0
        %2387 = vdwg.mxu0
        %v2388 = vadd.f32 %v2162, %v2334
        %v2389 = vadd.f32 %v2163, %v2341
        %v2390 = vadd.f32 %v2164, %v2348
        %v2391 = vadd.f32 %v2165, %v2355
        %v2392 = vadd.f32 %v2166, %v2362
        %v2393 = vadd.f32 %v2167, %v2369
        %v2394 = vadd.f32 %v2168, %v2376
        %v2395 = vadd.f32 %v2169, %v2383
        %v2396 = vld [vmem:[#allocation2 + $0x10] sm:$0xf]
        %v2397 = vld [vmem:[#allocation2 + $0x14] sm:$0xf]
        %v2398 = vld [vmem:[#allocation2 + $0x18] sm:$0xf]
        %v2399 = vld [vmem:[#allocation2 + $0x1c] sm:$0xf]
        %v2400 = vld [vmem:[#allocation2 + $0x20] sm:$0xf]
        %v2401 = vld [vmem:[#allocation2 + $0x24] sm:$0xf]
        %v2402 = vld [vmem:[#allocation2 + $0x28] sm:$0xf]
        %v2403 = vld [vmem:[#allocation2 + $0x2c] sm:$0xf]
        %v2404 = vld [vmem:[#allocation2 + $0x30] sm:$0xf]
        %v2405 = vld [vmem:[#allocation2 + $0x34] sm:$0xf]
        %v2406 = vld [vmem:[#allocation2 + $0x38] sm:$0xf]
        %v2407 = vld [vmem:[#allocation2 + $0x3c] sm:$0xf]
        %v2408 = vld [vmem:[#allocation2 + $0x40] sm:$0xf]
        %v2409 = vld [vmem:[#allocation2 + $0x44] sm:$0xf]
        %v2410 = vld [vmem:[#allocation2 + $0x48] sm:$0xf]
        %v2411 = vld [vmem:[#allocation2 + $0x4c] sm:$0xf]
        %v2412 = vld [vmem:[#allocation2 + $0x50] sm:$0x1]
        %s2413 = scalar_lea.vmem [#allocation11], 448
        %v2414 = vld [vmem:[%s2413] sm:$0xf]
        %v2415 = vld [vmem:[%s2413 + $0x4] sm:$0xf]
        %v2416 = vld [vmem:[%s2413 + $0x8] sm:$0xf]
        %v2417 = vld [vmem:[%s2413 + $0xc] sm:$0xf]
        %v2418 = vld [vmem:[%s2413 + $0x10] sm:$0xf]
        %v2419 = vld [vmem:[%s2413 + $0x14] sm:$0xf]
        %v2420 = vld [vmem:[%s2413 + $0x18] sm:$0xf]
        %v2421 = vld [vmem:[%s2413 + $0x1c] sm:$0xf]
        %v2422 = vld [vmem:[%s2413 + $0x20] sm:$0xf]
        %v2423 = vld [vmem:[%s2413 + $0x24] sm:$0xf]
        %v2424 = vld [vmem:[%s2413 + $0x28] sm:$0xf]
        %v2425 = vld [vmem:[%s2413 + $0x2c] sm:$0xf]
        %v2426 = vld [vmem:[%s2413 + $0x30] sm:$0xf]
        %v2427 = vld [vmem:[%s2413 + $0x34] sm:$0xf]
        %v2428 = vld [vmem:[%s2413 + $0x38] sm:$0xf]
        %v2429 = vld [vmem:[%s2413 + $0x3c] sm:$0xf]
        %v2447 = vunpack.c.l.b16 %v2396
        %v2448 = vunpack.c.l.b16 %v2397
        %v2449 = vunpack.c.l.b16 %v2398
        %v2450 = vunpack.c.l.b16 %v2399
        %v2451 = vunpack.c.l.b16 %v2400
        %v2452 = vunpack.c.l.b16 %v2401
        %v2453 = vunpack.c.l.b16 %v2402
        %v2454 = vunpack.c.l.b16 %v2403
        %v2455 = vunpack.c.l.b16 %v2404
        %v2456 = vunpack.c.l.b16 %v2405
        %v2457 = vunpack.c.l.b16 %v2406
        %v2458 = vunpack.c.l.b16 %v2407
        %v2459 = vunpack.c.l.b16 %v2408
        %v2460 = vunpack.c.l.b16 %v2409
        %v2461 = vunpack.c.l.b16 %v2410
        %v2462 = vunpack.c.l.b16 %v2411
        %v2463 = vunpack.c.l.b16 %v2412
        %v2464 = vpack.c.b16 %v2448, %v2447
        %v2465 = vpack.c.b16 %v2450, %v2449
        %v2466 = vpack.c.b16 %v2452, %v2451
        %v2467 = vpack.c.b16 %v2454, %v2453
        %v2468 = vpack.c.b16 %v2456, %v2455
        %v2469 = vpack.c.b16 %v2458, %v2457
        %v2470 = vpack.c.b16 %v2460, %v2459
        %v2471 = vpack.c.b16 %v2462, %v2461
        %v2472 = vpack.c.b16 %v2463, %v2463
        %v2474 = vshrl.u32 %v2464, 16
        %v2476 = vshll.u32 %v2464, 16
        %v2478 = vrot.slane %v2476, 1
        %v2479 = vor.u32 %v2474, %v2478
        %v2481 = vshll.u32 %v2465, 16
        %v2483 = vrot.slane %v2481, 1
        %v2484 = vsel %vm904, %v2479, %v2483
        %v2485 = vshrl.u32 %v2465, 16
        %v2487 = vor.u32 %v2485, %v2483
        %v2489 = vshll.u32 %v2466, 16
        %v2491 = vrot.slane %v2489, 1
        %v2492 = vsel %vm904, %v2487, %v2491
        %v2493 = vshrl.u32 %v2466, 16
        %v2495 = vor.u32 %v2493, %v2491
        %v2497 = vshll.u32 %v2467, 16
        %v2499 = vrot.slane %v2497, 1
        %v2500 = vsel %vm904, %v2495, %v2499
        %v2501 = vshrl.u32 %v2467, 16
        %v2503 = vor.u32 %v2501, %v2499
        %v2505 = vshll.u32 %v2468, 16
        %v2507 = vrot.slane %v2505, 1
        %v2508 = vsel %vm904, %v2503, %v2507
        %v2509 = vshrl.u32 %v2468, 16
        %v2511 = vor.u32 %v2509, %v2507
        %v2513 = vshll.u32 %v2469, 16
        %v2515 = vrot.slane %v2513, 1
        %v2516 = vsel %vm904, %v2511, %v2515
        %v2517 = vshrl.u32 %v2469, 16
        %v2519 = vor.u32 %v2517, %v2515
        %v2521 = vshll.u32 %v2470, 16
        %v2523 = vrot.slane %v2521, 1
        %v2524 = vsel %vm904, %v2519, %v2523
        %v2525 = vshrl.u32 %v2470, 16
        %v2527 = vor.u32 %v2525, %v2523
        %v2529 = vshll.u32 %v2471, 16
        %v2531 = vrot.slane %v2529, 1
        %v2532 = vsel %vm904, %v2527, %v2531
        %v2533 = vshrl.u32 %v2471, 16
        %v2535 = vor.u32 %v2533, %v2531
        %v2537 = vshll.u32 %v2472, 16
        %v2539 = vrot.slane %v2537, 1
        %v2540 = vsel %vm904, %v2535, %v2539
        %v2565 = vunpack.c.l.b16 %v2414
        %v2566 = vunpack.c.l.b16 %v2415
        %v2567 = vunpack.c.l.b16 %v2416
        %v2568 = vunpack.c.l.b16 %v2417
        %v2569 = vunpack.c.l.b16 %v2418
        %v2570 = vunpack.c.l.b16 %v2419
        %v2571 = vunpack.c.l.b16 %v2420
        %v2572 = vunpack.c.l.b16 %v2421
        %v2573 = vunpack.c.l.b16 %v2422
        %v2574 = vunpack.c.l.b16 %v2423
        %v2575 = vunpack.c.l.b16 %v2424
        %v2576 = vunpack.c.l.b16 %v2425
        %v2577 = vunpack.c.l.b16 %v2426
        %v2578 = vunpack.c.l.b16 %v2427
        %v2579 = vunpack.c.l.b16 %v2428
        %v2580 = vunpack.c.l.b16 %v2429
        %v2581 = vpack.c.b16 %v2566, %v2565
        %v2582 = vpack.c.b16 %v2568, %v2567
        %v2583 = vpack.c.b16 %v2570, %v2569
        %v2584 = vpack.c.b16 %v2572, %v2571
        %v2585 = vpack.c.b16 %v2574, %v2573
        %v2586 = vpack.c.b16 %v2576, %v2575
        %v2587 = vpack.c.b16 %v2578, %v2577
        %v2588 = vpack.c.b16 %v2580, %v2579
        %2597 = vmatprep.subr.bf16.mxu0 0
        %2598 = vmatpush1.bf16.msra.mxu0 %v2581
        %2599 = vmatprep.subr.bf16.mxu0 0
        %2600 = vmatpush1.bf16.msra.mxu0 %v2582
        %2601 = vmatprep.subr.bf16.mxu0 0
        %2602 = vmatpush1.bf16.msra.mxu0 %v2583
        %2603 = vmatprep.subr.bf16.mxu0 0
        %2604 = vmatpush1.bf16.msra.mxu0 %v2584
        %2605 = vmatprep.subr.bf16.mxu0 0
        %2606 = vmatpush1.bf16.msra.mxu0 %v2585
        %2607 = vmatprep.subr.bf16.mxu0 0
        %2608 = vmatpush1.bf16.msra.mxu0 %v2586
        %2609 = vmatprep.subr.bf16.mxu0 0
        %2610 = vmatpush1.bf16.msra.mxu0 %v2587
        %2611 = vmatprep.subr.bf16.mxu0 0
        %2612 = vmatpush1.bf16.msra.mxu0 %v2588
        %2613 = vmatprep.subr.bf16.mxu0 0
        %2614 = vmatpush1.bf16.msra.mxu0 0
        %2615 = vmatprep.subr.bf16.mxu0 0
        %2616 = vmatpush1.bf16.msra.mxu0 0
        %2617 = vmatprep.subr.bf16.mxu0 0
        %2618 = vmatpush1.bf16.msra.mxu0 0
        %2619 = vmatprep.subr.bf16.mxu0 0
        %2620 = vmatpush1.bf16.msra.mxu0 0
        %2621 = vmatprep.subr.bf16.mxu0 0
        %2622 = vmatpush1.bf16.msra.mxu0 0
        %2623 = vmatprep.subr.bf16.mxu0 0
        %2624 = vmatpush1.bf16.msra.mxu0 0
        %2625 = vmatprep.subr.bf16.mxu0 0
        %2626 = vmatpush1.bf16.msra.mxu0 0
        %2627 = vmatprep.subr.bf16.mxu0 0
        %2628 = vmatpush1.bf16.msra.mxu0 0
        %2629 = vmatprep.mubr.bf16.mxu0 0
        %2630 = vmatmul.mubr.bf16.gmra.mrb[0].mxu0 %v2484
        %v2631 = vpop.f32.mrb[0].mxu0
        %v2632 = vadd.f32 0.0, %v2631
        %v2633 = vpop.f32.mrb[0].mxu0
        %v2634 = vpop.f32.mrb[0].mxu0
        %v2635 = vpop.f32.mrb[0].mxu0
        %2636 = vmatprep.mubr.bf16.mxu0 0
        %2637 = vmatmul.mubr.bf16.gmra.mrb[0].mxu0 %v2492
        %v2638 = vpop.f32.mrb[0].mxu0
        %v2639 = vadd.f32 0.0, %v2638
        %v2640 = vpop.f32.mrb[0].mxu0
        %v2641 = vpop.f32.mrb[0].mxu0
        %v2642 = vpop.f32.mrb[0].mxu0
        %2643 = vmatprep.mubr.bf16.mxu0 0
        %2644 = vmatmul.mubr.bf16.gmra.mrb[0].mxu0 %v2500
        %v2645 = vpop.f32.mrb[0].mxu0
        %v2646 = vadd.f32 0.0, %v2645
        %v2647 = vpop.f32.mrb[0].mxu0
        %v2648 = vpop.f32.mrb[0].mxu0
        %v2649 = vpop.f32.mrb[0].mxu0
        %2650 = vmatprep.mubr.bf16.mxu0 0
        %2651 = vmatmul.mubr.bf16.gmra.mrb[0].mxu0 %v2508
        %v2652 = vpop.f32.mrb[0].mxu0
        %v2653 = vadd.f32 0.0, %v2652
        %v2654 = vpop.f32.mrb[0].mxu0
        %v2655 = vpop.f32.mrb[0].mxu0
        %v2656 = vpop.f32.mrb[0].mxu0
        %2657 = vmatprep.mubr.bf16.mxu0 0
        %2658 = vmatmul.mubr.bf16.gmra.mrb[0].mxu0 %v2516
        %v2659 = vpop.f32.mrb[0].mxu0
        %v2660 = vadd.f32 0.0, %v2659
        %v2661 = vpop.f32.mrb[0].mxu0
        %v2662 = vpop.f32.mrb[0].mxu0
        %v2663 = vpop.f32.mrb[0].mxu0
        %2664 = vmatprep.mubr.bf16.mxu0 0
        %2665 = vmatmul.mubr.bf16.gmra.mrb[0].mxu0 %v2524
        %v2666 = vpop.f32.mrb[0].mxu0
        %v2667 = vadd.f32 0.0, %v2666
        %v2668 = vpop.f32.mrb[0].mxu0
        %v2669 = vpop.f32.mrb[0].mxu0
        %v2670 = vpop.f32.mrb[0].mxu0
        %2671 = vmatprep.mubr.bf16.mxu0 0
        %2672 = vmatmul.mubr.bf16.gmra.mrb[0].mxu0 %v2532
        %v2673 = vpop.f32.mrb[0].mxu0
        %v2674 = vadd.f32 0.0, %v2673
        %v2675 = vpop.f32.mrb[0].mxu0
        %v2676 = vpop.f32.mrb[0].mxu0
        %v2677 = vpop.f32.mrb[0].mxu0
        %2678 = vmatprep.mubr.bf16.mxu0 0
        %2679 = vmatmul.mubr.bf16.gmra.mrb[0].mxu0 %v2540
        %v2680 = vpop.f32.mrb[0].mxu0
        %v2681 = vadd.f32 0.0, %v2680
        %v2682 = vpop.f32.mrb[0].mxu0
        %v2683 = vpop.f32.mrb[0].mxu0
        %v2684 = vpop.f32.mrb[0].mxu0
        %2685 = vdwg.mxu0
        %v2686 = vadd.f32 %v2388, %v2632
        %v2687 = vadd.f32 %v2389, %v2639
        %v2688 = vadd.f32 %v2390, %v2646
        %v2689 = vadd.f32 %v2391, %v2653
        %v2690 = vadd.f32 %v2392, %v2660
        %v2691 = vadd.f32 %v2393, %v2667
        %v2692 = vadd.f32 %v2394, %v2674
        %v2693 = vadd.f32 %v2395, %v2681
        %v2694 = vld [vmem:[#allocation2 + $0x10] sm:$0xe]
        %s2695 = scalar_lea.vmem [#allocation11], 512
        %v2696 = vld [vmem:[%s2695] sm:$0xf]
        %v2697 = vld [vmem:[%s2695 + $0x4] sm:$0xf]
        %v2698 = vld [vmem:[%s2695 + $0x8] sm:$0xf]
        %v2699 = vld [vmem:[%s2695 + $0xc] sm:$0xf]
        %v2700 = vld [vmem:[%s2695 + $0x10] sm:$0xf]
        %v2701 = vld [vmem:[%s2695 + $0x14] sm:$0xf]
        %v2702 = vld [vmem:[%s2695 + $0x18] sm:$0xf]
        %v2703 = vld [vmem:[%s2695 + $0x1c] sm:$0xf]
        %v2704 = vld [vmem:[%s2695 + $0x20] sm:$0xf]
        %v2705 = vld [vmem:[%s2695 + $0x24] sm:$0xf]
        %v2706 = vld [vmem:[%s2695 + $0x28] sm:$0xf]
        %v2707 = vld [vmem:[%s2695 + $0x2c] sm:$0xf]
        %v2708 = vld [vmem:[%s2695 + $0x30] sm:$0xf]
        %v2709 = vld [vmem:[%s2695 + $0x34] sm:$0xf]
        %v2710 = vld [vmem:[%s2695 + $0x38] sm:$0xf]
        %v2711 = vld [vmem:[%s2695 + $0x3c] sm:$0xf]
        %v2713 = vunpack.c.l.b16 %v2694
        %v2714 = vpack.c.b16 %v2448, %v2713
        %v2715 = vrot.slane %v2714, 1
        %v2716 = vrot.slane %v2465, 1
        %v2717 = vsel %vm1284, %v2715, %v2716
        %v2718 = vrot.slane %v2466, 1
        %v2719 = vsel %vm1284, %v2716, %v2718
        %v2720 = vrot.slane %v2467, 1
        %v2721 = vsel %vm1284, %v2718, %v2720
        %v2722 = vrot.slane %v2468, 1
        %v2723 = vsel %vm1284, %v2720, %v2722
        %v2724 = vrot.slane %v2469, 1
        %v2725 = vsel %vm1284, %v2722, %v2724
        %v2726 = vrot.slane %v2470, 1
        %v2727 = vsel %vm1284, %v2724, %v2726
        %v2728 = vrot.slane %v2471, 1
        %v2729 = vsel %vm1284, %v2726, %v2728
        %v2730 = vrot.slane %v2472, 1
        %v2731 = vsel %vm1284, %v2728, %v2730
        %v2756 = vunpack.c.l.b16 %v2696
        %v2757 = vunpack.c.l.b16 %v2697
        %v2758 = vunpack.c.l.b16 %v2698
        %v2759 = vunpack.c.l.b16 %v2699
        %v2760 = vunpack.c.l.b16 %v2700
        %v2761 = vunpack.c.l.b16 %v2701
        %v2762 = vunpack.c.l.b16 %v2702
        %v2763 = vunpack.c.l.b16 %v2703
        %v2764 = vunpack.c.l.b16 %v2704
        %v2765 = vunpack.c.l.b16 %v2705
        %v2766 = vunpack.c.l.b16 %v2706
        %v2767 = vunpack.c.l.b16 %v2707
        %v2768 = vunpack.c.l.b16 %v2708
        %v2769 = vunpack.c.l.b16 %v2709
        %v2770 = vunpack.c.l.b16 %v2710
        %v2771 = vunpack.c.l.b16 %v2711
        %v2772 = vpack.c.b16 %v2757, %v2756
        %v2773 = vpack.c.b16 %v2759, %v2758
        %v2774 = vpack.c.b16 %v2761, %v2760
        %v2775 = vpack.c.b16 %v2763, %v2762
        %v2776 = vpack.c.b16 %v2765, %v2764
        %v2777 = vpack.c.b16 %v2767, %v2766
        %v2778 = vpack.c.b16 %v2769, %v2768
        %v2779 = vpack.c.b16 %v2771, %v2770
        %2788 = vmatprep.subr.bf16.mxu0 0
        %2789 = vmatpush1.bf16.msra.mxu0 %v2772
        %2790 = vmatprep.subr.bf16.mxu0 0
        %2791 = vmatpush1.bf16.msra.mxu0 %v2773
        %2792 = vmatprep.subr.bf16.mxu0 0
        %2793 = vmatpush1.bf16.msra.mxu0 %v2774
        %2794 = vmatprep.subr.bf16.mxu0 0
        %2795 = vmatpush1.bf16.msra.mxu0 %v2775
        %2796 = vmatprep.subr.bf16.mxu0 0
        %2797 = vmatpush1.bf16.msra.mxu0 %v2776
        %2798 = vmatprep.subr.bf16.mxu0 0
        %2799 = vmatpush1.bf16.msra.mxu0 %v2777
        %2800 = vmatprep.subr.bf16.mxu0 0
        %2801 = vmatpush1.bf16.msra.mxu0 %v2778
        %2802 = vmatprep.subr.bf16.mxu0 0
        %2803 = vmatpush1.bf16.msra.mxu0 %v2779
        %2804 = vmatprep.subr.bf16.mxu0 0
        %2805 = vmatpush1.bf16.msra.mxu0 0
        %2806 = vmatprep.subr.bf16.mxu0 0
        %2807 = vmatpush1.bf16.msra.mxu0 0
        %2808 = vmatprep.subr.bf16.mxu0 0
        %2809 = vmatpush1.bf16.msra.mxu0 0
        %2810 = vmatprep.subr.bf16.mxu0 0
        %2811 = vmatpush1.bf16.msra.mxu0 0
        %2812 = vmatprep.subr.bf16.mxu0 0
        %2813 = vmatpush1.bf16.msra.mxu0 0
        %2814 = vmatprep.subr.bf16.mxu0 0
        %2815 = vmatpush1.bf16.msra.mxu0 0
        %2816 = vmatprep.subr.bf16.mxu0 0
        %2817 = vmatpush1.bf16.msra.mxu0 0
        %2818 = vmatprep.subr.bf16.mxu0 0
        %2819 = vmatpush1.bf16.msra.mxu0 0
        %2820 = vmatprep.mubr.bf16.mxu0 0
        %2821 = vmatmul.mubr.bf16.gmra.mrb[0].mxu0 %v2717
        %v2822 = vpop.f32.mrb[0].mxu0
        %v2823 = vadd.f32 0.0, %v2822
        %v2824 = vpop.f32.mrb[0].mxu0
        %v2825 = vpop.f32.mrb[0].mxu0
        %v2826 = vpop.f32.mrb[0].mxu0
        %2827 = vmatprep.mubr.bf16.mxu0 0
        %2828 = vmatmul.mubr.bf16.gmra.mrb[0].mxu0 %v2719
        %v2829 = vpop.f32.mrb[0].mxu0
        %v2830 = vadd.f32 0.0, %v2829
        %v2831 = vpop.f32.mrb[0].mxu0
        %v2832 = vpop.f32.mrb[0].mxu0
        %v2833 = vpop.f32.mrb[0].mxu0
        %2834 = vmatprep.mubr.bf16.mxu0 0
        %2835 = vmatmul.mubr.bf16.gmra.mrb[0].mxu0 %v2721
        %v2836 = vpop.f32.mrb[0].mxu0
        %v2837 = vadd.f32 0.0, %v2836
        %v2838 = vpop.f32.mrb[0].mxu0
        %v2839 = vpop.f32.mrb[0].mxu0
        %v2840 = vpop.f32.mrb[0].mxu0
        %2841 = vmatprep.mubr.bf16.mxu0 0
        %2842 = vmatmul.mubr.bf16.gmra.mrb[0].mxu0 %v2723
        %v2843 = vpop.f32.mrb[0].mxu0
        %v2844 = vadd.f32 0.0, %v2843
        %v2845 = vpop.f32.mrb[0].mxu0
        %v2846 = vpop.f32.mrb[0].mxu0
        %v2847 = vpop.f32.mrb[0].mxu0
        %2848 = vmatprep.mubr.bf16.mxu0 0
        %2849 = vmatmul.mubr.bf16.gmra.mrb[0].mxu0 %v2725
        %v2850 = vpop.f32.mrb[0].mxu0
        %v2851 = vadd.f32 0.0, %v2850
        %v2852 = vpop.f32.mrb[0].mxu0
        %v2853 = vpop.f32.mrb[0].mxu0
        %v2854 = vpop.f32.mrb[0].mxu0
        %2855 = vmatprep.mubr.bf16.mxu0 0
        %2856 = vmatmul.mubr.bf16.gmra.mrb[0].mxu0 %v2727
        %v2857 = vpop.f32.mrb[0].mxu0
        %v2858 = vadd.f32 0.0, %v2857
        %v2859 = vpop.f32.mrb[0].mxu0
        %v2860 = vpop.f32.mrb[0].mxu0
        %v2861 = vpop.f32.mrb[0].mxu0
        %2862 = vmatprep.mubr.bf16.mxu0 0
        %2863 = vmatmul.mubr.bf16.gmra.mrb[0].mxu0 %v2729
        %v2864 = vpop.f32.mrb[0].mxu0
        %v2865 = vadd.f32 0.0, %v2864
        %v2866 = vpop.f32.mrb[0].mxu0
        %v2867 = vpop.f32.mrb[0].mxu0
        %v2868 = vpop.f32.mrb[0].mxu0
        %2869 = vmatprep.mubr.bf16.mxu0 0
        %2870 = vmatmul.mubr.bf16.gmra.mrb[0].mxu0 %v2731
        %v2871 = vpop.f32.mrb[0].mxu0
        %v2872 = vadd.f32 0.0, %v2871
        %v2873 = vpop.f32.mrb[0].mxu0
        %v2874 = vpop.f32.mrb[0].mxu0
        %v2875 = vpop.f32.mrb[0].mxu0
        %2876 = vdwg.mxu0
        %v2877 = vadd.f32 %v2686, %v2823
        %v2878 = vadd.f32 %v2687, %v2830
        %v2879 = vadd.f32 %v2688, %v2837
        %v2880 = vadd.f32 %v2689, %v2844
        %v2881 = vadd.f32 %v2690, %v2851
        %v2882 = vadd.f32 %v2691, %v2858
        %v2883 = vadd.f32 %v2692, %v2865
        %v2884 = vadd.f32 %v2693, %v2872
        %v2885 = vld [vmem:[#allocation12] sm:$0x1]
        %v2887 = vlaneseq
        %v2888 = vshrl.u32 %v2887, 7
        %v2889 = vsub.s32 0, %v2888
        %v2890 = vrot.slane %v2885, %v2889
        %v2892 = vmul.f32 %v2877, %v2890
        %v2893 = vmul.f32 %v2878, %v2890
        %v2894 = vmul.f32 %v2879, %v2890
        %v2895 = vmul.f32 %v2880, %v2890
        %v2896 = vmul.f32 %v2881, %v2890
        %v2897 = vmul.f32 %v2882, %v2890
        %v2898 = vmul.f32 %v2883, %v2890
        %v2899 = vmul.f32 %v2884, %v2890
        %v2900 = vld [vmem:[#allocation14] sm:$0x1]
        %v2902 = vlaneseq
        %v2903 = vshrl.u32 %v2902, 7
        %v2904 = vsub.s32 0, %v2903
        %v2905 = vrot.slane %v2900, %v2904
        %v2907 = vadd.f32 %v2892, %v2905
        %v2908 = vadd.f32 %v2893, %v2905
        %v2909 = vadd.f32 %v2894, %v2905
        %v2910 = vadd.f32 %v2895, %v2905
        %v2911 = vadd.f32 %v2896, %v2905
        %v2912 = vadd.f32 %v2897, %v2905
        %v2913 = vadd.f32 %v2898, %v2905
        %v2914 = vadd.f32 %v2899, %v2905
        %v2915 = vxor.u32 %v2907, 2147483648
        %v2916 = vxor.u32 %v2908, 2147483648
        %v2917 = vxor.u32 %v2909, 2147483648
        %v2918 = vxor.u32 %v2910, 2147483648
        %v2919 = vxor.u32 %v2911, 2147483648
        %v2920 = vxor.u32 %v2912, 2147483648
        %v2921 = vxor.u32 %v2913, 2147483648
        %v2922 = vxor.u32 %v2914, 2147483648
        %v2923 = vmul.f32 %v2915, 1.442695
        %v2924 = vpow.pop %v2923
        %v2925 = vmul.f32 %v2916, 1.442695
        %v2926 = vpow.pop %v2925
        %v2927 = vmul.f32 %v2917, 1.442695
        %v2928 = vpow.pop %v2927
        %v2929 = vmul.f32 %v2918, 1.442695
        %v2930 = vpow.pop %v2929
        %v2931 = vmul.f32 %v2919, 1.442695
        %v2932 = vpow.pop %v2931
        %v2933 = vmul.f32 %v2920, 1.442695
        %v2934 = vpow.pop %v2933
        %v2935 = vmul.f32 %v2921, 1.442695
        %v2936 = vpow.pop %v2935
        %v2937 = vmul.f32 %v2922, 1.442695
        %v2938 = vpow.pop %v2937
        %v2939 = vadd.f32 %v2924, 1.0
        %v2940 = vadd.f32 %v2926, 1.0
        %v2941 = vadd.f32 %v2928, 1.0
        %v2942 = vadd.f32 %v2930, 1.0
        %v2943 = vadd.f32 %v2932, 1.0
        %v2944 = vadd.f32 %v2934, 1.0
        %v2945 = vadd.f32 %v2936, 1.0
        %v2946 = vadd.f32 %v2938, 1.0
        %v2947 = vrcp.pop %v2939
        %v2948 = vmul.f32 1.0, %v2947
        %v2949 = vrcp.pop %v2940
        %v2950 = vmul.f32 1.0, %v2949
        %v2951 = vrcp.pop %v2941
        %v2952 = vmul.f32 1.0, %v2951
        %v2953 = vrcp.pop %v2942
        %v2954 = vmul.f32 1.0, %v2953
        %v2955 = vrcp.pop %v2943
        %v2956 = vmul.f32 1.0, %v2955
        %v2957 = vrcp.pop %v2944
        %v2958 = vmul.f32 1.0, %v2957
        %v2959 = vrcp.pop %v2945
        %v2960 = vmul.f32 1.0, %v2959
        %v2961 = vrcp.pop %v2946
        %v2962 = vmul.f32 1.0, %v2961
        %v2963 = vmul.f32 %v2907, %v2948
        %v2964 = vmul.f32 %v2908, %v2950
        %v2965 = vmul.f32 %v2909, %v2952
        %v2966 = vmul.f32 %v2910, %v2954
        %v2967 = vmul.f32 %v2911, %v2956
        %v2968 = vmul.f32 %v2912, %v2958
        %v2969 = vmul.f32 %v2913, %v2960
        %v2970 = vmul.f32 %v2914, %v2962
        %v2971 = vld [vmem:[%s321] sm:$0xf]
        %v2972 = vld [vmem:[%s321 + $0x4] sm:$0xf]
        %v2973 = vld [vmem:[%s321 + $0x8] sm:$0xf]
        %v2974 = vld [vmem:[%s321 + $0xc] sm:$0xf]
        %v2975 = vld [vmem:[%s321 + $0x10] sm:$0xf]
        %v2976 = vld [vmem:[%s321 + $0x14] sm:$0xf]
        %v2977 = vld [vmem:[%s321 + $0x18] sm:$0xf]
        %v2978 = vld [vmem:[%s321 + $0x1c] sm:$0xf]
        %v2979 = vunpack.c.l.bf16 %v2971
        %v2980 = vunpack.c.l.bf16 %v2972
        %v2981 = vunpack.c.l.bf16 %v2973
        %v2982 = vunpack.c.l.bf16 %v2974
        %v2983 = vunpack.c.l.bf16 %v2975
        %v2984 = vunpack.c.l.bf16 %v2976
        %v2985 = vunpack.c.l.bf16 %v2977
        %v2986 = vunpack.c.l.bf16 %v2978
        %v2987 = vadd.f32 %v2963, %v2979
        %v2988 = vadd.f32 %v2964, %v2980
        %v2989 = vadd.f32 %v2965, %v2981
        %v2990 = vadd.f32 %v2966, %v2982
        %v2991 = vadd.f32 %v2967, %v2983
        %v2992 = vadd.f32 %v2968, %v2984
        %v2993 = vadd.f32 %v2969, %v2985
        %v2994 = vadd.f32 %v2970, %v2986
        %v2995 = vpack.c.bf16 %v2987, %v2987
        %v2996 = vpack.c.bf16 %v2988, %v2988
        %v2997 = vpack.c.bf16 %v2989, %v2989
        %v2998 = vpack.c.bf16 %v2990, %v2990
        %v2999 = vpack.c.bf16 %v2991, %v2991
        %v3000 = vpack.c.bf16 %v2992, %v2992
        %v3001 = vpack.c.bf16 %v2993, %v2993
        %v3002 = vpack.c.bf16 %v2994, %v2994
        %3003 = vst [vmem:[%s375] sm:$0xf] %v2995
        %3004 = vst [vmem:[%s375 + $0x4] sm:$0xf] %v2996
        %3005 = vst [vmem:[%s375 + $0x8] sm:$0xf] %v2997
        %3006 = vst [vmem:[%s375 + $0xc] sm:$0xf] %v2998
        %3007 = vst [vmem:[%s375 + $0x10] sm:$0xf] %v2999
        %3008 = vst [vmem:[%s375 + $0x14] sm:$0xf] %v3000
        %3009 = vst [vmem:[%s375 + $0x18] sm:$0xf] %v3001
        %3010 = vst [vmem:[%s375 + $0x1c] sm:$0xf] %v3002
        %s3011 = sand.u32 %s187, 1
        %s3012 = scalar_lea.sflag [#allocation5], %s3011
        %s3013 = sand.u32 %s187, 1
        %s3014 = smul.addr %s3013, 32
        %s3015 = scalar_lea.vmem [#allocation15], %s3014
        // Predicated region
        $region77: #{res_block_forward.4} parent=47 // pred_check
          %p3016 = pneg %p197
        $region78: #{res_block_forward.4} parent=47 // pred_check_branch
          %3018 = sbr.rel (%p3016) target = $region80
        $region79: #{res_block_forward.4} parent=47 // pred_region
          %s3020 = ssub.s32 512, 512
          %3021 = vsyncadd %s3012, %s3020
          %s3022 = smul.addr %s27, 8
          %s3023 = smul.addr %s3022, 64
          %s3024 = scalar_lea.hbm %s7, %s3023
          %s3025 = sshll.u32 %s3015, 4
          %s3026 = int_to_ptr.vmem [resolvable:$true] %s3025
          %3031 = dma.vmem_to_hbm [thread:$0]  %s3026, 512, %s3024, %s3012, 64, 64, 4
        $region80: #{res_block_forward.4} parent=47 // pred_fallthru
          _
      $region48: #{res_block_forward.4} parent=5 // pred_fallthru
        _
      %p3032 = scmp.le.s32.totalorder 2, %s22
      // Predicated region
      $region81: #{res_block_forward.4} parent=5 // pred_check
        %p3033 = pneg %p3032
      $region82: #{res_block_forward.4} parent=5 // pred_check_branch
        %3035 = sbr.rel (%p3033) target = $region84
      $region83: #{res_block_forward.4} parent=5 // pred_region
        %s3036 = ssub.s32 %s22, 2
        // Predicated region
        $region85: #{res_block_forward.4} parent=83 // pred_check
          %p3037 = pneg %p203
        $region86: #{res_block_forward.4} parent=83 // pred_check_branch
          %3039 = sbr.rel (%p3037) target = $region88
        $region87: #{res_block_forward.4} parent=83 // pred_region
          %s3040 = sand.u32 %s188, 1
          %s3041 = scalar_lea.sflag [#allocation5], %s3040
          %s3042 = sand.u32 %s188, 1
          %s3043 = smul.addr %s3042, 32
          %s3044 = scalar_lea.vmem [#allocation15], %s3043
          %3045 = dma.done %s3041, 512
        $region88: #{res_block_forward.4} parent=83 // pred_fallthru
          _
      $region84: #{res_block_forward.4} parent=5 // pred_fallthru
        _
    $region6: #{res_block_forward.4} parent=1 // loop_footer
      %s26 = sadd.s32 1, %s22
    $region7: #{res_block_forward.4} parent=1 // loop_footer_branch
      %21 = sbr.rel target = $region3
    $region8: #{res_block_forward.4} parent=1 // loop_exit
      _
    %3046 = vsyncpa [#allocation4], 1
    %s3047 = scalar_lea.sflag [#allocation4], 1
    %3048 = vsyncpa %s3047, 1
    %3049 = vsyncpa [#allocation7], 1
    %3050 = vsyncpa [#allocation10], 1
    %3051 = vsyncpa [#allocation13], 1
    %3052 = vsyncpa [#allocation5], 1
    %s3053 = scalar_lea.sflag [#allocation5], 1
    %3054 = vsyncpa %s3053, 1

</llo_original>
